<compile_context>
chip_gen: v7x
topology: tpu7x:2x2x1
jax: 0.10.0
libtpu: 0.0.40
codegen_flags: <defaults>
</compile_context>

<pallas_src>
import functools

import jax
import jax.numpy as jnp
from jax.experimental import pallas as pl
from jax.experimental.pallas import tpu as pltpu

# ----------------------------- configuration -------------------------------
B = 2                 # batch
N = 8                 # number of interactions (<= max_interactions)
IN_DIM = 64           # text-embedding dim (small for the demo)
OUT_DIM = 64          # condition-token dim
FOURIER_FREQS = 8
POS_DIM = FOURIER_FREQS * 2 * 4          # 64
CAT_DIM = IN_DIM + POS_DIM               # 128 -> lane-dense K for 1st matmul
HIDDEN = 512                             # hard-coded in the module
OUT_PAD = 128                            # lane-dense padded output width
MAX_INTERACTIONS = 30


# ------------------------------ Pallas kernel ------------------------------
def _hoi_fused_kernel(x_so_ref, x_act_ref, m_so_ref, m_act_ref,
                      null_so_ref, null_act_ref,
                      w1_ref, b1_ref, w2_ref, b2_ref, w3_ref, b3_ref,
                      padd_so_ref, padd_act_ref,
                      o_so_ref, o_act_ref):
    """Whole forward in one invocation.

    x_so   : (2*Mp, CAT_DIM) bf16  subject rows then object rows
    x_act  : (Mp,   CAT_DIM) bf16  action rows
    m_*    : (rows, 1)       f32   interaction mask (0/1)
    null_* : (1, CAT_DIM)    bf16  concat(null_semantic, null_position)
    w*     : (2, K, H)       bf16  slab 0 = `linears`, slab 1 = `linear_action`
    b*     : (2, 1, H)       f32
    padd_* : (rows, OUT_PAD) f32   interaction-emb + position-emb (zero padded)
    o_*    : (rows, OUT_PAD) f32
    """

    def silu(h):
        # exp + approximate reciprocal both live on the EUP slot.
        return h * pl.reciprocal(1.0 + jnp.exp(-h), approx=True)

    def mlp(x, slab):
        h = jnp.dot(x, w1_ref[slab],
                    preferred_element_type=jnp.float32) + b1_ref[slab]
        h = silu(h).astype(jnp.bfloat16)
        h = jnp.dot(h, w2_ref[slab],
                    preferred_element_type=jnp.float32) + b2_ref[slab]
        h = silu(h).astype(jnp.bfloat16)
        return jnp.dot(h, w3_ref[slab],
                       preferred_element_type=jnp.float32) + b3_ref[slab]

    # Null-feature blend: mask is binary, so a single select is exact.
    x_so = jnp.where(m_so_ref[...] > 0.5, x_so_ref[...],
                     jnp.broadcast_to(null_so_ref[...], x_so_ref.shape))
    x_act = jnp.where(m_act_ref[...] > 0.5, x_act_ref[...],
                      jnp.broadcast_to(null_act_ref[...], x_act_ref.shape))

    o_so_ref[...] = mlp(x_so, 0) + padd_so_ref[...]     # subject + object rows
    o_act_ref[...] = mlp(x_act, 1) + padd_act_ref[...]  # action rows


def _run_fused(x_so, x_act, m_so, m_act, null_so, null_act,
               w1, b1, w2, b2, w3, b3, padd_so, padd_act):
    n_so, _ = x_so.shape
    n_act, _ = x_act.shape
    assert n_so % 16 == 0 and n_act % 16 == 0   # bf16 sublane packing (16,128)

    vmem = pl.BlockSpec(memory_space=pltpu.MemorySpace.VMEM)

    rows = n_so + n_act
    flops = 2 * rows * (CAT_DIM * HIDDEN + HIDDEN * HIDDEN + HIDDEN * OUT_PAD)
    weight_bytes = (2 * 2 * (CAT_DIM * HIDDEN + HIDDEN * HIDDEN
                             + HIDDEN * OUT_PAD)            # bf16 weights
                    + 4 * 2 * (HIDDEN + HIDDEN + OUT_PAD))  # f32 biases
    act_bytes = (rows * (2 * CAT_DIM + 4 + 4 * OUT_PAD + 4 * OUT_PAD)
                 + 2 * 2 * CAT_DIM)
    cost = pl.CostEstimate(flops=flops,
                           transcendentals=2 * rows * HIDDEN,
                           bytes_accessed=weight_bytes + act_bytes)

    return pl.pallas_call(
        _hoi_fused_kernel,
        out_shape=(jax.ShapeDtypeStruct((n_so, OUT_PAD), jnp.float32),
                   jax.ShapeDtypeStruct((n_act, OUT_PAD), jnp.float32)),
        in_specs=[vmem] * 14,
        out_specs=(vmem, vmem),
        cost_estimate=cost,
    )(x_so, x_act, m_so, m_act, null_so, null_act,
      w1, b1, w2, b2, w3, b3, padd_so, padd_act)


# ------------------------------- JAX glue ----------------------------------
def fourier_embed(x, num_freqs=FOURIER_FREQS, temperature=100.0):
    """GLIGEN FourierEmbedder: cat_{freq}[sin(f*x), cos(f*x)] on the last dim."""
    freqs = temperature ** (jnp.arange(num_freqs, dtype=jnp.float32) / num_freqs)
    ang = x[..., None, :] * freqs[:, None]                   # (..., F, 4)
    emb = jnp.stack([jnp.sin(ang), jnp.cos(ang)], axis=-2)   # (..., F, 2, 4)
    return emb.reshape(*x.shape[:-1], num_freqs * 2 * x.shape[-1])


def get_between_box(bbox1, bbox2):
    all_x = jnp.concatenate([bbox1[..., 0::2], bbox2[..., 0::2]], axis=-1)
    all_y = jnp.concatenate([bbox1[..., 1::2], bbox2[..., 1::2]], axis=-1)
    all_x = jnp.sort(all_x, axis=-1)
    all_y = jnp.sort(all_y, axis=-1)
    return jnp.stack(
        [all_x[..., 1], all_y[..., 1], all_x[..., 2], all_y[..., 2]], axis=-1)


def init_params(key):
    """Master (f32) parameters matching the torch module."""
    def linear(k, fan_in, fan_out):
        kw, kb = jax.random.split(k)
        lim = 1.0 / jnp.sqrt(fan_in)
        w = jax.random.uniform(kw, (fan_in, fan_out), jnp.float32, -lim, lim)
        b = jax.random.uniform(kb, (1, fan_out), jnp.float32, -lim, lim)
        return w, b

    ks = jax.random.split(key, 16)
    params = {}
    for name, base in (("linears", 0), ("linear_action", 4)):
        w1, b1 = linear(ks[base + 0], CAT_DIM, HIDDEN)
        w2, b2 = linear(ks[base + 1], HIDDEN, HIDDEN)
        w3, b3 = linear(ks[base + 2], HIDDEN, OUT_DIM)
        params[name] = {"w1": w1, "b1": b1, "w2": w2, "b2": b2,
                        "w3": w3, "b3": b3}
    # null features (zeros in the torch __init__; small random values so the
    # masking path is actually exercised — these are learned parameters).
    params["null_positive"] = 0.1 * jax.random.normal(ks[8], (1, IN_DIM), jnp.float32)
    params["null_action"] = 0.1 * jax.random.normal(ks[9], (1, IN_DIM), jnp.float32)
    params["null_position"] = 0.1 * jax.random.normal(ks[10], (1, POS_DIM), jnp.float32)
    # AbsolutePositionalEmbedding tables (x_transformers style: emb * dim**-0.5
    # when called as a module; raw table when .emb(idx) is used directly).
    params["interaction_emb"] = 0.02 * jax.random.normal(
        ks[11], (MAX_INTERACTIONS, OUT_DIM), jnp.float32)
    params["position_emb"] = 0.02 * jax.random.normal(
        ks[12], (3, OUT_DIM), jnp.float32)
    return params


def prepare_kernel_weights(params):
    """Stack the two MLPs into (2, ...) slabs.

    Weights -> bf16, biases stay f32; layer-3 padded to 128 lanes.
    """
    lin, act = params["linears"], params["linear_action"]

    def pad3(w, b):
        return (jnp.pad(w, ((0, 0), (0, OUT_PAD - OUT_DIM))),
                jnp.pad(b, ((0, 0), (0, OUT_PAD - OUT_DIM))))

    w3_l, b3_l = pad3(lin["w3"], lin["b3"])
    w3_a, b3_a = pad3(act["w3"], act["b3"])

    w1 = jnp.stack([lin["w1"], act["w1"]], 0).astype(jnp.bfloat16)
    w2 = jnp.stack([lin["w2"], act["w2"]], 0).astype(jnp.bfloat16)
    w3 = jnp.stack([w3_l, w3_a], 0).astype(jnp.bfloat16)
    b1 = jnp.stack([lin["b1"], act["b1"]], 0)          # (2, 1, H)   f32
    b2 = jnp.stack([lin["b2"], act["b2"]], 0)          # (2, 1, H)   f32
    b3 = jnp.stack([b3_l, b3_a], 0)                    # (2, 1, 128) f32
    return w1, b1, w2, b2, w3, b3


def hoi_position_net_v5(params, subject_boxes, object_boxes, masks,
                        subj_pos_emb, obj_pos_emb, act_pos_emb):
    b, n, _ = subject_boxes.shape
    m_rows = b * n
    m_pad = ((m_rows + 15) // 16) * 16      # bf16 sublane packing is (16, 128)

    action_boxes = get_between_box(subject_boxes, object_boxes)
    subj_xyxy = fourier_embed(subject_boxes).reshape(m_rows, POS_DIM)
    obj_xyxy = fourier_embed(object_boxes).reshape(m_rows, POS_DIM)
    act_xyxy = fourier_embed(action_boxes).reshape(m_rows, POS_DIM)

    def prep(sem, xyxy):
        x = jnp.concatenate([sem.reshape(m_rows, IN_DIM), xyxy], -1)
        x = jnp.pad(x, ((0, m_pad - m_rows), (0, 0)))
        return x.astype(jnp.bfloat16)

    # Subject + object rows stacked -> one MXU pass against shared `linears`.
    x_so = jnp.concatenate([prep(subj_pos_emb, subj_xyxy),
                            prep(obj_pos_emb, obj_xyxy)], 0)   # (2*Mp, CAT)
    x_act = prep(act_pos_emb, act_xyxy)                        # (Mp, CAT)

    mask_col = jnp.pad(masks.reshape(m_rows, 1).astype(jnp.float32),
                       ((0, m_pad - m_rows), (0, 0)))
    m_so = jnp.concatenate([mask_col, mask_col], 0)            # (2*Mp, 1)

    null_so = jnp.concatenate(
        [params["null_positive"], params["null_position"]], -1).astype(jnp.bfloat16)
    null_act = jnp.concatenate(
        [params["null_action"], params["null_position"]], -1).astype(jnp.bfloat16)

    # interaction embedding (scaled, module __call__) + position embedding
    # (raw table, .emb(idx)); kept f32 and padded to 128 lanes.
    scale = OUT_DIM ** -0.5
    inter = params["interaction_emb"][:n] * scale              # (N, OUT_DIM)
    pos_tbl = params["position_emb"]                           # (3, OUT_DIM)

    def padd(idx):
        p = jnp.tile(inter + pos_tbl[idx][None, :], (b, 1))    # (M, OUT_DIM)
        return jnp.pad(p, ((0, m_pad - m_rows), (0, OUT_PAD - OUT_DIM)))

    padd_so = jnp.concatenate([padd(0), padd(1)], 0)           # (2*Mp, OUT_PAD)
    padd_act = padd(2)                                         # (Mp, OUT_PAD)

    w1, b1, w2, b2, w3, b3 = prepare_kernel_weights(params)

    out_so, out_act = _run_fused(x_so, x_act, m_so, mask_col, null_so, null_act,
                                 w1, b1, w2, b2, w3, b3, padd_so, padd_act)

    objs_subject = out_so[:m_rows, :OUT_DIM].reshape(b, n, OUT_DIM)
    objs_object = out_so[m_pad:m_pad + m_rows, :OUT_DIM].reshape(b, n, OUT_DIM)
    objs_action = out_act[:m_rows, :OUT_DIM].reshape(b, n, OUT_DIM)
    objs = jnp.concatenate([objs_subject, objs_action, objs_object], axis=1)
    assert objs.shape == (b, n * 3, OUT_DIM)
    return objs


# --------------------------- pure-JAX reference ----------------------------
def _silu(x):
    return x * jax.nn.sigmoid(x)


def reference(params, subject_boxes, object_boxes, masks,
              subj_pos_emb, obj_pos_emb, act_pos_emb):
    hp = functools.partial(jnp.dot, precision="highest")
    b, n, _ = subject_boxes.shape
    m = masks[..., None].astype(jnp.float32)
    action_boxes = get_between_box(subject_boxes, object_boxes)

    def branch(pe, box_emb, null_sem, null_xyxy, w):
        pe = pe * m + (1 - m) * null_sem[0]
        box_emb = box_emb * m + (1 - m) * null_xyxy[0]
        x = jnp.concatenate([pe, box_emb], -1)
        h = _silu(hp(x, w["w1"]) + w["b1"][0])
        h = _silu(hp(h, w["w2"]) + w["b2"][0])
        return hp(h, w["w3"]) + w["b3"][0]

    scale = OUT_DIM ** -0.5
    inter = params["interaction_emb"][:n] * scale
    subj = branch(subj_pos_emb, fourier_embed(subject_boxes),
                  params["null_positive"], params["null_position"],
                  params["linears"]) + inter + params["position_emb"][0]
    obj = branch(obj_pos_emb, fourier_embed(object_boxes),
                 params["null_positive"], params["null_position"],
                 params["linears"]) + inter + params["position_emb"][1]
    act = branch(act_pos_emb, fourier_embed(action_boxes),
                 params["null_action"], params["null_position"],
                 params["linear_action"]) + inter + params["position_emb"][2]
    return jnp.concatenate([subj, act, obj], axis=1)


# --------------------------------- main -------------------------------------
if __name__ == "__main__":
    key = jax.random.PRNGKey(0)
    kp, kb1, kb2, km, ke1, ke2, ke3 = jax.random.split(key, 7)

    params = init_params(kp)

    subject_boxes = jax.random.uniform(kb1, (B, N, 4), jnp.float32)
    object_boxes = jax.random.uniform(kb2, (B, N, 4), jnp.float32)
    masks = (jax.random.uniform(km, (B, N)) > 0.3).astype(jnp.float32)
    subj_pos_emb = jax.random.normal(ke1, (B, N, IN_DIM), jnp.float32)
    obj_pos_emb = jax.random.normal(ke2, (B, N, IN_DIM), jnp.float32)
    act_pos_emb = jax.random.normal(ke3, (B, N, IN_DIM), jnp.float32)

    out = hoi_position_net_v5(params, subject_boxes, object_boxes, masks,
                              subj_pos_emb, obj_pos_emb, act_pos_emb)
    out = jax.block_until_ready(out)
    assert out.shape == (B, 3 * N, OUT_DIM)

    ref = jax.block_until_ready(
        reference(params, subject_boxes, object_boxes, masks,
                  subj_pos_emb, obj_pos_emb, act_pos_emb))
    max_err = float(jnp.max(jnp.abs(out - ref)))
    # bf16 weights/activations with f32 accumulation stay well inside 1e-2.
    assert jnp.allclose(out, ref, rtol=1e-2, atol=1e-2), max_err

    print("KERNEL_OK")
</pallas_src>

<mosaic_0001>
module attributes {stable_mosaic.version = 11 : i64} {
  func.func @_hoi_fused_kernel(%arg0: memref<32x128xbf16, #tpu.memory_space<vmem>>, %arg1: memref<16x128xbf16, #tpu.memory_space<vmem>>, %arg2: memref<32x1xf32, #tpu.memory_space<vmem>>, %arg3: memref<16x1xf32, #tpu.memory_space<vmem>>, %arg4: memref<1x128xbf16, #tpu.memory_space<vmem>>, %arg5: memref<1x128xbf16, #tpu.memory_space<vmem>>, %arg6: memref<2x128x512xbf16, #tpu.memory_space<vmem>>, %arg7: memref<2x1x512xf32, #tpu.memory_space<vmem>>, %arg8: memref<2x512x512xbf16, #tpu.memory_space<vmem>>, %arg9: memref<2x1x512xf32, #tpu.memory_space<vmem>>, %arg10: memref<2x512x128xbf16, #tpu.memory_space<vmem>>, %arg11: memref<2x1x128xf32, #tpu.memory_space<vmem>>, %arg12: memref<32x128xf32, #tpu.memory_space<vmem>>, %arg13: memref<16x128xf32, #tpu.memory_space<vmem>>, %arg14: memref<32x128xf32, #tpu.memory_space<vmem>>, %arg15: memref<16x128xf32, #tpu.memory_space<vmem>>) attributes {dimension_semantics = [], scalar_prefetch = 0 : i64, scratch_operands = 0 : i64, tpu.core_type = #tpu.core_type<tc>} {
    %c0 = arith.constant 0 : index
    %c0_0 = arith.constant 0 : index
    %0 = vector.load %arg2[%c0, %c0_0] : memref<32x1xf32, #tpu.memory_space<vmem>>, vector<32x1xf32>
    %cst = arith.constant 5.000000e-01 : f32
    %1 = vector.broadcast %cst : f32 to vector<32x1xf32>
    %2 = arith.cmpf ogt, %0, %1 : vector<32x1xf32>
    %c0_1 = arith.constant 0 : index
    %c0_2 = arith.constant 0 : index
    %3 = vector.load %arg0[%c0_1, %c0_2] : memref<32x128xbf16, #tpu.memory_space<vmem>>, vector<32x128xbf16>
    %c0_3 = arith.constant 0 : index
    %c0_4 = arith.constant 0 : index
    %4 = vector.load %arg4[%c0_3, %c0_4] : memref<1x128xbf16, #tpu.memory_space<vmem>>, vector<1x128xbf16>
    %5 = vector.shape_cast %4 : vector<1x128xbf16> to vector<1x128xbf16>
    %6 = vector.broadcast %5 : vector<1x128xbf16> to vector<32x128xbf16>
    %7 = vector.shape_cast %2 : vector<32x1xi1> to vector<32x1xi1>
    %8 = vector.broadcast %7 : vector<32x1xi1> to vector<32x128xi1>
    %9 = arith.select %8, %3, %6 : vector<32x128xi1>, vector<32x128xbf16>
    %c0_5 = arith.constant 0 : index
    %c0_6 = arith.constant 0 : index
    %10 = vector.load %arg3[%c0_5, %c0_6] : memref<16x1xf32, #tpu.memory_space<vmem>>, vector<16x1xf32>
    %cst_7 = arith.constant 5.000000e-01 : f32
    %11 = vector.broadcast %cst_7 : f32 to vector<16x1xf32>
    %12 = arith.cmpf ogt, %10, %11 : vector<16x1xf32>
    %c0_8 = arith.constant 0 : index
    %c0_9 = arith.constant 0 : index
    %13 = vector.load %arg1[%c0_8, %c0_9] : memref<16x128xbf16, #tpu.memory_space<vmem>>, vector<16x128xbf16>
    %c0_10 = arith.constant 0 : index
    %c0_11 = arith.constant 0 : index
    %14 = vector.load %arg5[%c0_10, %c0_11] : memref<1x128xbf16, #tpu.memory_space<vmem>>, vector<1x128xbf16>
    %15 = vector.shape_cast %14 : vector<1x128xbf16> to vector<1x128xbf16>
    %16 = vector.broadcast %15 : vector<1x128xbf16> to vector<16x128xbf16>
    %17 = vector.shape_cast %12 : vector<16x1xi1> to vector<16x1xi1>
    %18 = vector.broadcast %17 : vector<16x1xi1> to vector<16x128xi1>
    %19 = arith.select %18, %13, %16 : vector<16x128xi1>, vector<16x128xbf16>
    %c0_12 = arith.constant 0 : index
    %c0_13 = arith.constant 0 : index
    %c0_14 = arith.constant 0 : index
    %20 = vector.load %arg6[%c0_12, %c0_13, %c0_14] : memref<2x128x512xbf16, #tpu.memory_space<vmem>>, vector<1x128x512xbf16>
    %21 = vector.shape_cast %20 : vector<1x128x512xbf16> to vector<128x512xbf16>
    %cst_15 = arith.constant dense<0.000000e+00> : vector<32x512xf32>
    %22 = tpu.matmul %9, %21, %cst_15 {dimension_numbers = #tpu.dot_dimension_numbers<[1], [0], [0], [1], [0, 0, 1, 1], [], []>} : vector<32x128xbf16>, vector<128x512xbf16>, vector<32x512xf32> -> vector<32x512xf32>
    %c0_16 = arith.constant 0 : index
    %c0_17 = arith.constant 0 : index
    %c0_18 = arith.constant 0 : index
    %23 = vector.load %arg7[%c0_16, %c0_17, %c0_18] : memref<2x1x512xf32, #tpu.memory_space<vmem>>, vector<1x1x512xf32>
    %24 = vector.shape_cast %23 : vector<1x1x512xf32> to vector<1x512xf32>
    %25 = vector.broadcast %24 : vector<1x512xf32> to vector<32x512xf32>
    %26 = arith.addf %22, %25 : vector<32x512xf32>
    %cst_19 = arith.constant 0.000000e+00 : f32
    %27 = vector.broadcast %cst_19 : f32 to vector<32x512xf32>
    %28 = arith.subf %27, %26 : vector<32x512xf32>
    %29 = math.exp %28 : vector<32x512xf32>
    %cst_20 = arith.constant 1.000000e+00 : f32
    %30 = vector.broadcast %cst_20 : f32 to vector<32x512xf32>
    %31 = arith.addf %30, %29 : vector<32x512xf32>
    %32 = tpu.reciprocal %31 {approx = true} : vector<32x512xf32> -> vector<32x512xf32>
    %33 = arith.mulf %26, %32 : vector<32x512xf32>
    %34 = arith.truncf %33 : vector<32x512xf32> to vector<32x512xbf16>
    %c0_21 = arith.constant 0 : index
    %c0_22 = arith.constant 0 : index
    %c0_23 = arith.constant 0 : index
    %35 = vector.load %arg8[%c0_21, %c0_22, %c0_23] : memref<2x512x512xbf16, #tpu.memory_space<vmem>>, vector<1x512x512xbf16>
    %36 = vector.shape_cast %35 : vector<1x512x512xbf16> to vector<512x512xbf16>
    %cst_24 = arith.constant dense<0.000000e+00> : vector<32x512xf32>
    %37 = tpu.matmul %34, %36, %cst_24 {dimension_numbers = #tpu.dot_dimension_numbers<[1], [0], [0], [1], [0, 0, 1, 1], [], []>} : vector<32x512xbf16>, vector<512x512xbf16>, vector<32x512xf32> -> vector<32x512xf32>
    %c0_25 = arith.constant 0 : index
    %c0_26 = arith.constant 0 : index
    %c0_27 = arith.constant 0 : index
    %38 = vector.load %arg9[%c0_25, %c0_26, %c0_27] : memref<2x1x512xf32, #tpu.memory_space<vmem>>, vector<1x1x512xf32>
    %39 = vector.shape_cast %38 : vector<1x1x512xf32> to vector<1x512xf32>
    %40 = vector.broadcast %39 : vector<1x512xf32> to vector<32x512xf32>
    %41 = arith.addf %37, %40 : vector<32x512xf32>
    %cst_28 = arith.constant 0.000000e+00 : f32
    %42 = vector.broadcast %cst_28 : f32 to vector<32x512xf32>
    %43 = arith.subf %42, %41 : vector<32x512xf32>
    %44 = math.exp %43 : vector<32x512xf32>
    %cst_29 = arith.constant 1.000000e+00 : f32
    %45 = vector.broadcast %cst_29 : f32 to vector<32x512xf32>
    %46 = arith.addf %45, %44 : vector<32x512xf32>
    %47 = tpu.reciprocal %46 {approx = true} : vector<32x512xf32> -> vector<32x512xf32>
    %48 = arith.mulf %41, %47 : vector<32x512xf32>
    %49 = arith.truncf %48 : vector<32x512xf32> to vector<32x512xbf16>
    %c0_30 = arith.constant 0 : index
    %c0_31 = arith.constant 0 : index
    %c0_32 = arith.constant 0 : index
    %50 = vector.load %arg10[%c0_30, %c0_31, %c0_32] : memref<2x512x128xbf16, #tpu.memory_space<vmem>>, vector<1x512x128xbf16>
    %51 = vector.shape_cast %50 : vector<1x512x128xbf16> to vector<512x128xbf16>
    %cst_33 = arith.constant dense<0.000000e+00> : vector<32x128xf32>
    %52 = tpu.matmul %49, %51, %cst_33 {dimension_numbers = #tpu.dot_dimension_numbers<[1], [0], [0], [1], [0, 0, 1, 1], [], []>} : vector<32x512xbf16>, vector<512x128xbf16>, vector<32x128xf32> -> vector<32x128xf32>
    %c0_34 = arith.constant 0 : index
    %c0_35 = arith.constant 0 : index
    %c0_36 = arith.constant 0 : index
    %53 = vector.load %arg11[%c0_34, %c0_35, %c0_36] : memref<2x1x128xf32, #tpu.memory_space<vmem>>, vector<1x1x128xf32>
    %54 = vector.shape_cast %53 : vector<1x1x128xf32> to vector<1x128xf32>
    %55 = vector.broadcast %54 : vector<1x128xf32> to vector<32x128xf32>
    %56 = arith.addf %52, %55 : vector<32x128xf32>
    %c0_37 = arith.constant 0 : index
    %c0_38 = arith.constant 0 : index
    %57 = vector.load %arg12[%c0_37, %c0_38] : memref<32x128xf32, #tpu.memory_space<vmem>>, vector<32x128xf32>
    %58 = arith.addf %56, %57 : vector<32x128xf32>
    %c0_39 = arith.constant 0 : index
    %c0_40 = arith.constant 0 : index
    %59 = vector.load %arg14[%c0_39, %c0_40] : memref<32x128xf32, #tpu.memory_space<vmem>>, vector<32x128xf32>
    tpu.vector_store %arg14[%c0_39, %c0_40], %58 {strides = array<i32>} : memref<32x128xf32, #tpu.memory_space<vmem>>, vector<32x128xf32>,
    %c1 = arith.constant 1 : index
    %c0_41 = arith.constant 0 : index
    %c0_42 = arith.constant 0 : index
    %60 = vector.load %arg6[%c1, %c0_41, %c0_42] : memref<2x128x512xbf16, #tpu.memory_space<vmem>>, vector<1x128x512xbf16>
    %61 = vector.shape_cast %60 : vector<1x128x512xbf16> to vector<128x512xbf16>
    %cst_43 = arith.constant dense<0.000000e+00> : vector<16x512xf32>
    %62 = tpu.matmul %19, %61, %cst_43 {dimension_numbers = #tpu.dot_dimension_numbers<[1], [0], [0], [1], [0, 0, 1, 1], [], []>} : vector<16x128xbf16>, vector<128x512xbf16>, vector<16x512xf32> -> vector<16x512xf32>
    %c1_44 = arith.constant 1 : index
    %c0_45 = arith.constant 0 : index
    %c0_46 = arith.constant 0 : index
    %63 = vector.load %arg7[%c1_44, %c0_45, %c0_46] : memref<2x1x512xf32, #tpu.memory_space<vmem>>, vector<1x1x512xf32>
    %64 = vector.shape_cast %63 : vector<1x1x512xf32> to vector<1x512xf32>
    %65 = vector.broadcast %64 : vector<1x512xf32> to vector<16x512xf32>
    %66 = arith.addf %62, %65 : vector<16x512xf32>
    %cst_47 = arith.constant 0.000000e+00 : f32
    %67 = vector.broadcast %cst_47 : f32 to vector<16x512xf32>
    %68 = arith.subf %67, %66 : vector<16x512xf32>
    %69 = math.exp %68 : vector<16x512xf32>
    %cst_48 = arith.constant 1.000000e+00 : f32
    %70 = vector.broadcast %cst_48 : f32 to vector<16x512xf32>
    %71 = arith.addf %70, %69 : vector<16x512xf32>
    %72 = tpu.reciprocal %71 {approx = true} : vector<16x512xf32> -> vector<16x512xf32>
    %73 = arith.mulf %66, %72 : vector<16x512xf32>
    %74 = arith.truncf %73 : vector<16x512xf32> to vector<16x512xbf16>
    %c1_49 = arith.constant 1 : index
    %c0_50 = arith.constant 0 : index
    %c0_51 = arith.constant 0 : index
    %75 = vector.load %arg8[%c1_49, %c0_50, %c0_51] : memref<2x512x512xbf16, #tpu.memory_space<vmem>>, vector<1x512x512xbf16>
    %76 = vector.shape_cast %75 : vector<1x512x512xbf16> to vector<512x512xbf16>
    %cst_52 = arith.constant dense<0.000000e+00> : vector<16x512xf32>
    %77 = tpu.matmul %74, %76, %cst_52 {dimension_numbers = #tpu.dot_dimension_numbers<[1], [0], [0], [1], [0, 0, 1, 1], [], []>} : vector<16x512xbf16>, vector<512x512xbf16>, vector<16x512xf32> -> vector<16x512xf32>
    %c1_53 = arith.constant 1 : index
    %c0_54 = arith.constant 0 : index
    %c0_55 = arith.constant 0 : index
    %78 = vector.load %arg9[%c1_53, %c0_54, %c0_55] : memref<2x1x512xf32, #tpu.memory_space<vmem>>, vector<1x1x512xf32>
    %79 = vector.shape_cast %78 : vector<1x1x512xf32> to vector<1x512xf32>
    %80 = vector.broadcast %79 : vector<1x512xf32> to vector<16x512xf32>
    %81 = arith.addf %77, %80 : vector<16x512xf32>
    %cst_56 = arith.constant 0.000000e+00 : f32
    %82 = vector.broadcast %cst_56 : f32 to vector<16x512xf32>
    %83 = arith.subf %82, %81 : vector<16x512xf32>
    %84 = math.exp %83 : vector<16x512xf32>
    %cst_57 = arith.constant 1.000000e+00 : f32
    %85 = vector.broadcast %cst_57 : f32 to vector<16x512xf32>
    %86 = arith.addf %85, %84 : vector<16x512xf32>
    %87 = tpu.reciprocal %86 {approx = true} : vector<16x512xf32> -> vector<16x512xf32>
    %88 = arith.mulf %81, %87 : vector<16x512xf32>
    %89 = arith.truncf %88 : vector<16x512xf32> to vector<16x512xbf16>
    %c1_58 = arith.constant 1 : index
    %c0_59 = arith.constant 0 : index
    %c0_60 = arith.constant 0 : index
    %90 = vector.load %arg10[%c1_58, %c0_59, %c0_60] : memref<2x512x128xbf16, #tpu.memory_space<vmem>>, vector<1x512x128xbf16>
    %91 = vector.shape_cast %90 : vector<1x512x128xbf16> to vector<512x128xbf16>
    %cst_61 = arith.constant dense<0.000000e+00> : vector<16x128xf32>
    %92 = tpu.matmul %89, %91, %cst_61 {dimension_numbers = #tpu.dot_dimension_numbers<[1], [0], [0], [1], [0, 0, 1, 1], [], []>} : vector<16x512xbf16>, vector<512x128xbf16>, vector<16x128xf32> -> vector<16x128xf32>
    %c1_62 = arith.constant 1 : index
    %c0_63 = arith.constant 0 : index
    %c0_64 = arith.constant 0 : index
    %93 = vector.load %arg11[%c1_62, %c0_63, %c0_64] : memref<2x1x128xf32, #tpu.memory_space<vmem>>, vector<1x1x128xf32>
    %94 = vector.shape_cast %93 : vector<1x1x128xf32> to vector<1x128xf32>
    %95 = vector.broadcast %94 : vector<1x128xf32> to vector<16x128xf32>
    %96 = arith.addf %92, %95 : vector<16x128xf32>
    %c0_65 = arith.constant 0 : index
    %c0_66 = arith.constant 0 : index
    %97 = vector.load %arg13[%c0_65, %c0_66] : memref<16x128xf32, #tpu.memory_space<vmem>>, vector<16x128xf32>
    %98 = arith.addf %96, %97 : vector<16x128xf32>
    %c0_67 = arith.constant 0 : index
    %c0_68 = arith.constant 0 : index
    %99 = vector.load %arg15[%c0_67, %c0_68] : memref<16x128xf32, #tpu.memory_space<vmem>>, vector<16x128xf32>
    tpu.vector_store %arg15[%c0_67, %c0_68], %98 {strides = array<i32>} : memref<16x128xf32, #tpu.memory_space<vmem>>, vector<16x128xf32>,
    return
  }
}

</mosaic_0001>

<llo_original>
// kernel: tpu_custom_call.1
$region0: #{tpu_custom_call.1}
  #allocation0 [shape = 'u32[]', space=smem, size = 0x4, offset = 0x4, fixed_abs, tag = 'smem constant byte address 0x4 - core index']
  #allocation1 [shape = 'u32[144,128]{1,0:T(1,128)}', space=vmem, size = 0x12000, scoped, tag = 'internal scratch']
  %s0 = inlined_call_operand.vmem [shape: bf16[32,128], index: 0, kind: input, shape index: {}]
  %s1 = inlined_call_operand.hbm [shape: bf16[16,128], index: 1, kind: input, shape index: {}]
  %s2 = inlined_call_operand.vmem [shape: f32[32,1], index: 2, kind: input, shape index: {}]
  %s3 = inlined_call_operand.vmem [shape: f32[16,1], index: 3, kind: input, shape index: {}]
  %s4 = inlined_call_operand.hbm [shape: bf16[1,128], index: 4, kind: input, shape index: {}]
  %s5 = inlined_call_operand.hbm [shape: bf16[1,128], index: 5, kind: input, shape index: {}]
  %s6 = inlined_call_operand.hbm [shape: bf16[2,128,512], index: 6, kind: input, shape index: {}]
  %s7 = inlined_call_operand.vmem [shape: f32[2,1,512], index: 7, kind: input, shape index: {}]
  %s8 = inlined_call_operand.hbm [shape: bf16[2,512,512], index: 8, kind: input, shape index: {}]
  %s9 = inlined_call_operand.vmem [shape: f32[2,1,512], index: 9, kind: input, shape index: {}]
  %s10 = inlined_call_operand.hbm [shape: bf16[2,512,128], index: 10, kind: input, shape index: {}]
  %s11 = inlined_call_operand.vmem [shape: f32[2,1,128], index: 11, kind: input, shape index: {}]
  %s12 = inlined_call_operand.vmem [shape: f32[32,128], index: 12, kind: input, shape index: {}]
  %s13 = inlined_call_operand.vmem [shape: f32[16,128], index: 13, kind: input, shape index: {}]
  %s14 = inlined_call_operand.hbm [shape: f32[32,128], index: 14, kind: output, shape index: {0}]
  %s15 = inlined_call_operand.hbm [shape: f32[16,128], index: 15, kind: output, shape index: {1}]
  %16 = xla_tuple %s14, %s15
  %s17 = sld [smem:[#allocation0]]
  $region98: #{tpu_custom_call.1} parent=0
    _
  %s19 = ssub.s32 1, %s17
  %s20 = scalar_select 0, %s19, %s17
  $region1: #{tpu_custom_call.1} parent=0
    #allocation2 [shape = 'u8[4096]{0}', space=vmem, size = 0x1000, scoped, tag = 'input window, operand 1, single buffered']
    #allocation3 [shape = 's32[1]{0}', space=sflag, size = 0x4, scoped, tag = 'scoped memory for tpu_custom_call.1']
    #allocation4 [shape = 's32[1]{0}', space=sflag, size = 0x4, scoped, tag = 'scoped memory for tpu_custom_call.1']
    #allocation5 [shape = 'u8[512]{0}', space=vmem, size = 0x400, scoped, tag = 'input window, operand 4, single buffered']
    #allocation6 [shape = 's32[1]{0}', space=sflag, size = 0x4, scoped, tag = 'scoped memory for tpu_custom_call.1']
    #allocation7 [shape = 'u8[512]{0}', space=vmem, size = 0x400, scoped, tag = 'input window, operand 5, single buffered']
    #allocation8 [shape = 'u8[262144]{0}', space=vmem, size = 0x40000, scoped, tag = 'input window, operand 6, single buffered']
    #allocation9 [shape = 's32[1]{0}', space=sflag, size = 0x4, scoped, tag = 'scoped memory for tpu_custom_call.1']
    #allocation10 [shape = 'u8[1048576]{0}', space=vmem, size = 0x100000, scoped, tag = 'input window, operand 8, single buffered']
    #allocation11 [shape = 'u8[262144]{0}', space=vmem, size = 0x40000, scoped, tag = 'input window, operand 10, single buffered']
    #allocation12 [shape = 's32[1]{0}', space=sflag, size = 0x4, scoped, tag = 'scoped memory for tpu_custom_call.1']
    #allocation13 [shape = 'u8[16384]{0}', space=vmem, size = 0x4000, scoped, tag = 'output window, operand 0, single buffered']
    #allocation14 [shape = 'u8[8192]{0}', space=vmem, size = 0x2000, scoped, tag = 'output window, operand 1, single buffered']
    #allocation15 [shape = 's32[1]{0}', space=sflag, size = 0x4, scoped, tag = 'scoped memory for tpu_custom_call.1']
    %21 = vsyncpa [#allocation3], 0
    %22 = vsyncpa [#allocation6], 0
    %23 = vsyncpa [#allocation9], 0
    %24 = vsyncpa [#allocation12], 0
    %25 = vsyncpa [#allocation4], 0
    %26 = vsyncpa [#allocation15], 0
    // Predicated region
    $region2: #{tpu_custom_call.1} parent=1 // pred_check
      _
    $region3: #{tpu_custom_call.1} parent=1 // pred_check_branch
      %28 = sbr.rel (0) target = $region5
    $region4: #{tpu_custom_call.1} parent=1 // pred_region
      _
    $region5: #{tpu_custom_call.1} parent=1 // pred_fallthru
      _
    // Predicated region
    $region6: #{tpu_custom_call.1} parent=1 // pred_check
      _
    $region7: #{tpu_custom_call.1} parent=1 // pred_check_branch
      %30 = sbr.rel (0) target = $region9
    $region8: #{tpu_custom_call.1} parent=1 // pred_region
      %s32 = ssub.s32 128, 128
      %33 = vsyncadd [#allocation3], %s32
      %s34 = sshll.u32 [#allocation2], 4
      %s35 = int_to_ptr.vmem [resolvable:$true] %s34
      %40 = dma.hbm_to_vmem [thread:$0]  %s1, 128, %s35, [#allocation3], 64, 64, 4
    $region9: #{tpu_custom_call.1} parent=1 // pred_fallthru
      _
    // Predicated region
    $region10: #{tpu_custom_call.1} parent=1 // pred_check
      _
    $region11: #{tpu_custom_call.1} parent=1 // pred_check_branch
      %42 = sbr.rel (0) target = $region13
    $region12: #{tpu_custom_call.1} parent=1 // pred_region
      _
    $region13: #{tpu_custom_call.1} parent=1 // pred_fallthru
      _
    // Predicated region
    $region14: #{tpu_custom_call.1} parent=1 // pred_check
      _
    $region15: #{tpu_custom_call.1} parent=1 // pred_check_branch
      %44 = sbr.rel (0) target = $region17
    $region16: #{tpu_custom_call.1} parent=1 // pred_region
      _
    $region17: #{tpu_custom_call.1} parent=1 // pred_fallthru
      _
    // Predicated region
    $region18: #{tpu_custom_call.1} parent=1 // pred_check
      _
    $region19: #{tpu_custom_call.1} parent=1 // pred_check_branch
      %46 = sbr.rel (0) target = $region21
    $region20: #{tpu_custom_call.1} parent=1 // pred_region
      %s48 = ssub.s32 16, 16
      %49 = vsyncadd [#allocation6], %s48
      %s51 = sshll.u32 [#allocation5], 4
      %s52 = int_to_ptr.vmem [resolvable:$true] %s51
      %54 = dma.hbm_to_vmem [thread:$0]  %s4, 16, %s52, [#allocation6]
    $region21: #{tpu_custom_call.1} parent=1 // pred_fallthru
      _
    // Predicated region
    $region22: #{tpu_custom_call.1} parent=1 // pred_check
      _
    $region23: #{tpu_custom_call.1} parent=1 // pred_check_branch
      %56 = sbr.rel (0) target = $region25
    $region24: #{tpu_custom_call.1} parent=1 // pred_region
      %s58 = ssub.s32 16, 16
      %59 = vsyncadd [#allocation6], %s58
      %s61 = sshll.u32 [#allocation7], 4
      %s62 = int_to_ptr.vmem [resolvable:$true] %s61
      %64 = dma.hbm_to_vmem [thread:$0]  %s5, 16, %s62, [#allocation6]
    $region25: #{tpu_custom_call.1} parent=1 // pred_fallthru
      _
    // Predicated region
    $region26: #{tpu_custom_call.1} parent=1 // pred_check
      _
    $region27: #{tpu_custom_call.1} parent=1 // pred_check_branch
      %66 = sbr.rel (0) target = $region29
    $region28: #{tpu_custom_call.1} parent=1 // pred_region
      %s68 = ssub.s32 8192, 8192
      %69 = vsyncadd [#allocation9], %s68
      %s70 = sshll.u32 [#allocation8], 4
      %s71 = int_to_ptr.vmem [resolvable:$true] %s70
      %76 = dma.hbm_to_vmem [thread:$0]  %s6, 8192, %s71, [#allocation9], 256, 256, 16
    $region29: #{tpu_custom_call.1} parent=1 // pred_fallthru
      _
    // Predicated region
    $region30: #{tpu_custom_call.1} parent=1 // pred_check
      _
    $region31: #{tpu_custom_call.1} parent=1 // pred_check_branch
      %78 = sbr.rel (0) target = $region33
    $region32: #{tpu_custom_call.1} parent=1 // pred_region
      _
    $region33: #{tpu_custom_call.1} parent=1 // pred_fallthru
      _
    // Predicated region
    $region34: #{tpu_custom_call.1} parent=1 // pred_check
      _
    $region35: #{tpu_custom_call.1} parent=1 // pred_check_branch
      %80 = sbr.rel (0) target = $region37
    $region36: #{tpu_custom_call.1} parent=1 // pred_region
      %s82 = ssub.s32 32768, 32768
      %83 = vsyncadd [#allocation9], %s82
      %s84 = sshll.u32 [#allocation10], 4
      %s85 = int_to_ptr.vmem [resolvable:$true] %s84
      %90 = dma.hbm_to_vmem [thread:$0]  %s8, 32768, %s85, [#allocation9], 256, 256, 16
    $region37: #{tpu_custom_call.1} parent=1 // pred_fallthru
      _
    // Predicated region
    $region38: #{tpu_custom_call.1} parent=1 // pred_check
      _
    $region39: #{tpu_custom_call.1} parent=1 // pred_check_branch
      %92 = sbr.rel (0) target = $region41
    $region40: #{tpu_custom_call.1} parent=1 // pred_region
      _
    $region41: #{tpu_custom_call.1} parent=1 // pred_fallthru
      _
    // Predicated region
    $region42: #{tpu_custom_call.1} parent=1 // pred_check
      _
    $region43: #{tpu_custom_call.1} parent=1 // pred_check_branch
      %94 = sbr.rel (0) target = $region45
    $region44: #{tpu_custom_call.1} parent=1 // pred_region
      %s96 = ssub.s32 8192, 8192
      %97 = vsyncadd [#allocation12], %s96
      %s98 = sshll.u32 [#allocation11], 4
      %s99 = int_to_ptr.vmem [resolvable:$true] %s98
      %104 = dma.hbm_to_vmem [thread:$0]  %s10, 8192, %s99, [#allocation12], 64, 64, 4
    $region45: #{tpu_custom_call.1} parent=1 // pred_fallthru
      _
    // Predicated region
    $region46: #{tpu_custom_call.1} parent=1 // pred_check
      _
    $region47: #{tpu_custom_call.1} parent=1 // pred_check_branch
      %106 = sbr.rel (0) target = $region49
    $region48: #{tpu_custom_call.1} parent=1 // pred_region
      _
    $region49: #{tpu_custom_call.1} parent=1 // pred_fallthru
      _
    // Predicated region
    $region50: #{tpu_custom_call.1} parent=1 // pred_check
      _
    $region51: #{tpu_custom_call.1} parent=1 // pred_check_branch
      %108 = sbr.rel (0) target = $region53
    $region52: #{tpu_custom_call.1} parent=1 // pred_region
      _
    $region53: #{tpu_custom_call.1} parent=1 // pred_fallthru
      _
    // Predicated region
    $region54: #{tpu_custom_call.1} parent=1 // pred_check
      _
    $region55: #{tpu_custom_call.1} parent=1 // pred_check_branch
      %110 = sbr.rel (0) target = $region57
    $region56: #{tpu_custom_call.1} parent=1 // pred_region
      _
    $region57: #{tpu_custom_call.1} parent=1 // pred_fallthru
      _
    // Predicated region
    $region58: #{tpu_custom_call.1} parent=1 // pred_check
      _
    $region59: #{tpu_custom_call.1} parent=1 // pred_check_branch
      %112 = sbr.rel (0) target = $region61
    $region60: #{tpu_custom_call.1} parent=1 // pred_region
      %113 = dma.done [#allocation3], 128
    $region61: #{tpu_custom_call.1} parent=1 // pred_fallthru
      _
    // Predicated region
    $region62: #{tpu_custom_call.1} parent=1 // pred_check
      _
    $region63: #{tpu_custom_call.1} parent=1 // pred_check_branch
      %115 = sbr.rel (0) target = $region65
    $region64: #{tpu_custom_call.1} parent=1 // pred_region
      %116 = dma.done [#allocation6], 16
    $region65: #{tpu_custom_call.1} parent=1 // pred_fallthru
      _
    // Predicated region
    $region66: #{tpu_custom_call.1} parent=1 // pred_check
      _
    $region67: #{tpu_custom_call.1} parent=1 // pred_check_branch
      %118 = sbr.rel (0) target = $region69
    $region68: #{tpu_custom_call.1} parent=1 // pred_region
      %119 = dma.done [#allocation6], 16
    $region69: #{tpu_custom_call.1} parent=1 // pred_fallthru
      _
    // Predicated region
    $region70: #{tpu_custom_call.1} parent=1 // pred_check
      _
    $region71: #{tpu_custom_call.1} parent=1 // pred_check_branch
      %121 = sbr.rel (0) target = $region73
    $region72: #{tpu_custom_call.1} parent=1 // pred_region
      %122 = dma.done [#allocation9], 8192
    $region73: #{tpu_custom_call.1} parent=1 // pred_fallthru
      _
    // Predicated region
    $region74: #{tpu_custom_call.1} parent=1 // pred_check
      _
    $region75: #{tpu_custom_call.1} parent=1 // pred_check_branch
      %124 = sbr.rel (0) target = $region77
    $region76: #{tpu_custom_call.1} parent=1 // pred_region
      %125 = dma.done [#allocation9], 32768
    $region77: #{tpu_custom_call.1} parent=1 // pred_fallthru
      _
    // Predicated region
    $region78: #{tpu_custom_call.1} parent=1 // pred_check
      _
    $region79: #{tpu_custom_call.1} parent=1 // pred_check_branch
      %127 = sbr.rel (0) target = $region81
    $region80: #{tpu_custom_call.1} parent=1 // pred_region
      %128 = dma.done [#allocation12], 8192
    $region81: #{tpu_custom_call.1} parent=1 // pred_fallthru
      _
    %v130 = vld [vmem:[%s2] sm:$0xff]
    %v131 = vld [vmem:[%s2 + $0x8] sm:$0xff]
    %v132 = vld [vmem:[%s2 + $0x10] sm:$0xff]
    %v133 = vld [vmem:[%s2 + $0x18] sm:$0xff]
    %vm134 = vcmp.gt.f32.partialorder %v130, 0.5
    %vm135 = vcmp.gt.f32.partialorder %v131, 0.5
    %vm136 = vcmp.gt.f32.partialorder %v132, 0.5
    %vm137 = vcmp.gt.f32.partialorder %v133, 0.5
    %v138 = vld [vmem:[%s0] sm:$0xf]
    %v139 = vld [vmem:[%s0 + $0x4] sm:$0xf]
    %v140 = vld [vmem:[%s0 + $0x8] sm:$0xf]
    %v141 = vld [vmem:[%s0 + $0xc] sm:$0xf]
    %v142 = vld [vmem:[#allocation5] sm:$0x1]
    %v144 = vpack.i.b16 %v142, %v142
    %v146 = vlaneseq
    %v147 = vshrl.u32 %v146, 7
    %v148 = vsub.s32 0, %v147
    %v149 = vrot.slane %v144, %v148
    %v150 = vsel %vm134, 1, 0
    %v151 = vsel %vm135, 1, 0
    %v152 = vsel %vm136, 1, 0
    %v153 = vsel %vm137, 1, 0
    %154 = vset.pattern.permute.xlu0 0
    %155 = vperm.xlu0 %154, %v150
    %v156 = vpop.permute.xlu0 %155
    %157 = vset.pattern.permute.xlu0 0
    %158 = vperm.xlu0 %157, %v151
    %v159 = vpop.permute.xlu0 %158
    %160 = vset.pattern.permute.xlu0 0
    %161 = vperm.xlu0 %160, %v152
    %v162 = vpop.permute.xlu0 %161
    %163 = vset.pattern.permute.xlu0 0
    %164 = vperm.xlu0 %163, %v153
    %v165 = vpop.permute.xlu0 %164
    %vm166 = vcmp.eq.s32.totalorder %v156, 1
    %vm167 = vcmp.eq.s32.totalorder %v159, 1
    %vm168 = vcmp.eq.s32.totalorder %v162, 1
    %vm169 = vcmp.eq.s32.totalorder %v165, 1
    %vm170 = vmpackc.low %vm166, %vm166
    %vm171 = vmpackc.low %vm167, %vm167
    %vm172 = vmpackc.low %vm168, %vm168
    %vm173 = vmpackc.low %vm169, %vm169
    %v175 = vunpack.c.l.b16 %v149
    %v176 = vpack.c.b16 %v175, %v175
    %v178 = vsel %vm170, %v138, %v176
    %v179 = vsel %vm171, %v139, %v176
    %v180 = vsel %vm172, %v140, %v176
    %v181 = vsel %vm173, %v141, %v176
    %v182 = vld [vmem:[%s3] sm:$0xff]
    %v183 = vld [vmem:[%s3 + $0x8] sm:$0xff]
    %vm184 = vcmp.gt.f32.partialorder %v182, 0.5
    %vm185 = vcmp.gt.f32.partialorder %v183, 0.5
    %v186 = vld [vmem:[#allocation2] sm:$0xf]
    %v187 = vld [vmem:[#allocation2 + $0x4] sm:$0xf]
    %v188 = vld [vmem:[#allocation7] sm:$0x1]
    %v190 = vpack.i.b16 %v188, %v188
    %v192 = vlaneseq
    %v193 = vshrl.u32 %v192, 7
    %v194 = vsub.s32 0, %v193
    %v195 = vrot.slane %v190, %v194
    %v196 = vsel %vm184, 1, 0
    %v197 = vsel %vm185, 1, 0
    %198 = vset.pattern.permute.xlu0 0
    %199 = vperm.xlu0 %198, %v196
    %v200 = vpop.permute.xlu0 %199
    %201 = vset.pattern.permute.xlu0 0
    %202 = vperm.xlu0 %201, %v197
    %v203 = vpop.permute.xlu0 %202
    %vm204 = vcmp.eq.s32.totalorder %v200, 1
    %vm205 = vcmp.eq.s32.totalorder %v203, 1
    %vm206 = vmpackc.low %vm204, %vm204
    %vm207 = vmpackc.low %vm205, %vm205
    %v209 = vunpack.c.l.b16 %v195
    %v210 = vpack.c.b16 %v209, %v209
    %v212 = vsel %vm206, %v186, %v210
    %v213 = vsel %vm207, %v187, %v210
    %v214 = vld [vmem:[#allocation8] sm:$0xff]
    %v215 = vld [vmem:[#allocation8 + $0x8] sm:$0xff]
    %v216 = vld [vmem:[#allocation8 + $0x10] sm:$0xff]
    %v217 = vld [vmem:[#allocation8 + $0x18] sm:$0xff]
    %v218 = vld [vmem:[#allocation8 + $0x20] sm:$0xff]
    %v219 = vld [vmem:[#allocation8 + $0x28] sm:$0xff]
    %v220 = vld [vmem:[#allocation8 + $0x30] sm:$0xff]
    %v221 = vld [vmem:[#allocation8 + $0x38] sm:$0xff]
    %v222 = vld [vmem:[#allocation8 + $0x40] sm:$0xff]
    %v223 = vld [vmem:[#allocation8 + $0x48] sm:$0xff]
    %v224 = vld [vmem:[#allocation8 + $0x50] sm:$0xff]
    %v225 = vld [vmem:[#allocation8 + $0x58] sm:$0xff]
    %v226 = vld [vmem:[#allocation8 + $0x60] sm:$0xff]
    %v227 = vld [vmem:[#allocation8 + $0x68] sm:$0xff]
    %v228 = vld [vmem:[#allocation8 + $0x70] sm:$0xff]
    %v229 = vld [vmem:[#allocation8 + $0x78] sm:$0xff]
    %v230 = vld [vmem:[#allocation8 + $0x80] sm:$0xff]
    %v231 = vld [vmem:[#allocation8 + $0x88] sm:$0xff]
    %v232 = vld [vmem:[#allocation8 + $0x90] sm:$0xff]
    %v233 = vld [vmem:[#allocation8 + $0x98] sm:$0xff]
    %v234 = vld [vmem:[#allocation8 + $0xa0] sm:$0xff]
    %v235 = vld [vmem:[#allocation8 + $0xa8] sm:$0xff]
    %v236 = vld [vmem:[#allocation8 + $0xb0] sm:$0xff]
    %v237 = vld [vmem:[#allocation8 + $0xb8] sm:$0xff]
    %v238 = vld [vmem:[#allocation8 + $0xc0] sm:$0xff]
    %v239 = vld [vmem:[#allocation8 + $0xc8] sm:$0xff]
    %v240 = vld [vmem:[#allocation8 + $0xd0] sm:$0xff]
    %v241 = vld [vmem:[#allocation8 + $0xd8] sm:$0xff]
    %v242 = vld [vmem:[#allocation8 + $0xe0] sm:$0xff]
    %v243 = vld [vmem:[#allocation8 + $0xe8] sm:$0xff]
    %v244 = vld [vmem:[#allocation8 + $0xf0] sm:$0xff]
    %v245 = vld [vmem:[#allocation8 + $0xf8] sm:$0xff]
    %v246 = vld [vmem:[%s7] sm:$0xf]
    %v248 = vlaneseq
    %v249 = vshrl.u32 %v248, 7
    %v250 = vsub.s32 0, %v249
    %v251 = vrot.slane %v246, %v250
    %v252 = vlaneseq
    %v253 = vshrl.u32 %v252, 7
    %v254 = vsub.s32 1, %v253
    %v255 = vrot.slane %v246, %v254
    %v256 = vlaneseq
    %v257 = vshrl.u32 %v256, 7
    %v258 = vsub.s32 2, %v257
    %v259 = vrot.slane %v246, %v258
    %v260 = vlaneseq
    %v261 = vshrl.u32 %v260, 7
    %v262 = vsub.s32 3, %v261
    %v263 = vrot.slane %v246, %v262
    %v272 = vunpack.c.l.b16 %v178
    %v273 = vunpack.c.l.b16 %v179
    %v274 = vunpack.c.l.b16 %v180
    %v275 = vunpack.c.l.b16 %v181
    %v276 = vpack.c.b16 %v273, %v272
    %v277 = vpack.c.b16 %v275, %v274
    %v312 = vunpack.c.l.b16 %v214
    %v313 = vunpack.c.h.b16 %v214
    %v314 = vunpack.c.l.b16 %v215
    %v315 = vunpack.c.h.b16 %v215
    %v316 = vunpack.c.l.b16 %v216
    %v317 = vunpack.c.h.b16 %v216
    %v318 = vunpack.c.l.b16 %v217
    %v319 = vunpack.c.h.b16 %v217
    %v320 = vunpack.c.l.b16 %v218
    %v321 = vunpack.c.h.b16 %v218
    %v322 = vunpack.c.l.b16 %v219
    %v323 = vunpack.c.h.b16 %v219
    %v324 = vunpack.c.l.b16 %v220
    %v325 = vunpack.c.h.b16 %v220
    %v326 = vunpack.c.l.b16 %v221
    %v327 = vunpack.c.h.b16 %v221
    %v328 = vunpack.c.l.b16 %v222
    %v329 = vunpack.c.h.b16 %v222
    %v330 = vunpack.c.l.b16 %v223
    %v331 = vunpack.c.h.b16 %v223
    %v332 = vunpack.c.l.b16 %v224
    %v333 = vunpack.c.h.b16 %v224
    %v334 = vunpack.c.l.b16 %v225
    %v335 = vunpack.c.h.b16 %v225
    %v336 = vunpack.c.l.b16 %v226
    %v337 = vunpack.c.h.b16 %v226
    %v338 = vunpack.c.l.b16 %v227
    %v339 = vunpack.c.h.b16 %v227
    %v340 = vunpack.c.l.b16 %v228
    %v341 = vunpack.c.h.b16 %v228
    %v342 = vunpack.c.l.b16 %v229
    %v343 = vunpack.c.h.b16 %v229
    %v344 = vunpack.c.l.b16 %v230
    %v345 = vunpack.c.h.b16 %v230
    %v346 = vunpack.c.l.b16 %v231
    %v347 = vunpack.c.h.b16 %v231
    %v348 = vunpack.c.l.b16 %v232
    %v349 = vunpack.c.h.b16 %v232
    %v350 = vunpack.c.l.b16 %v233
    %v351 = vunpack.c.h.b16 %v233
    %v352 = vunpack.c.l.b16 %v234
    %v353 = vunpack.c.h.b16 %v234
    %v354 = vunpack.c.l.b16 %v235
    %v355 = vunpack.c.h.b16 %v235
    %v356 = vunpack.c.l.b16 %v236
    %v357 = vunpack.c.h.b16 %v236
    %v358 = vunpack.c.l.b16 %v237
    %v359 = vunpack.c.h.b16 %v237
    %v360 = vunpack.c.l.b16 %v238
    %v361 = vunpack.c.h.b16 %v238
    %v362 = vunpack.c.l.b16 %v239
    %v363 = vunpack.c.h.b16 %v239
    %v364 = vunpack.c.l.b16 %v240
    %v365 = vunpack.c.h.b16 %v240
    %v366 = vunpack.c.l.b16 %v241
    %v367 = vunpack.c.h.b16 %v241
    %v368 = vunpack.c.l.b16 %v242
    %v369 = vunpack.c.h.b16 %v242
    %v370 = vunpack.c.l.b16 %v243
    %v371 = vunpack.c.h.b16 %v243
    %v372 = vunpack.c.l.b16 %v244
    %v373 = vunpack.c.h.b16 %v244
    %v374 = vunpack.c.l.b16 %v245
    %v375 = vunpack.c.h.b16 %v245
    %v376 = vpack.c.b16 %v316, %v312
    %v377 = vpack.c.b16 %v317, %v313
    %v378 = vpack.c.b16 %v318, %v314
    %v379 = vpack.c.b16 %v319, %v315
    %v380 = vpack.c.b16 %v324, %v320
    %v381 = vpack.c.b16 %v325, %v321
    %v382 = vpack.c.b16 %v326, %v322
    %v383 = vpack.c.b16 %v327, %v323
    %v384 = vpack.c.b16 %v332, %v328
    %v385 = vpack.c.b16 %v333, %v329
    %v386 = vpack.c.b16 %v334, %v330
    %v387 = vpack.c.b16 %v335, %v331
    %v388 = vpack.c.b16 %v340, %v336
    %v389 = vpack.c.b16 %v341, %v337
    %v390 = vpack.c.b16 %v342, %v338
    %v391 = vpack.c.b16 %v343, %v339
    %v392 = vpack.c.b16 %v348, %v344
    %v393 = vpack.c.b16 %v349, %v345
    %v394 = vpack.c.b16 %v350, %v346
    %v395 = vpack.c.b16 %v351, %v347
    %v396 = vpack.c.b16 %v356, %v352
    %v397 = vpack.c.b16 %v357, %v353
    %v398 = vpack.c.b16 %v358, %v354
    %v399 = vpack.c.b16 %v359, %v355
    %v400 = vpack.c.b16 %v364, %v360
    %v401 = vpack.c.b16 %v365, %v361
    %v402 = vpack.c.b16 %v366, %v362
    %v403 = vpack.c.b16 %v367, %v363
    %v404 = vpack.c.b16 %v372, %v368
    %v405 = vpack.c.b16 %v373, %v369
    %v406 = vpack.c.b16 %v374, %v370
    %v407 = vpack.c.b16 %v375, %v371
    %440 = vmatprep.subr.bf16.mxu0 %v377
    %441 = vmatpush1.bf16.msra.mxu0 %v376
    %442 = vmatprep.subr.bf16.mxu0 %v381
    %443 = vmatpush1.bf16.msra.mxu0 %v380
    %444 = vmatprep.subr.bf16.mxu0 %v385
    %445 = vmatpush1.bf16.msra.mxu0 %v384
    %446 = vmatprep.subr.bf16.mxu0 %v389
    %447 = vmatpush1.bf16.msra.mxu0 %v388
    %448 = vmatprep.subr.bf16.mxu0 %v393
    %449 = vmatpush1.bf16.msra.mxu0 %v392
    %450 = vmatprep.subr.bf16.mxu0 %v397
    %451 = vmatpush1.bf16.msra.mxu0 %v396
    %452 = vmatprep.subr.bf16.mxu0 %v401
    %453 = vmatpush1.bf16.msra.mxu0 %v400
    %454 = vmatprep.subr.bf16.mxu0 %v405
    %455 = vmatpush1.bf16.msra.mxu0 %v404
    %456 = vmatprep.subr.bf16.mxu0 0
    %457 = vmatpush1.bf16.msra.mxu0 0
    %458 = vmatprep.subr.bf16.mxu0 0
    %459 = vmatpush1.bf16.msra.mxu0 0
    %460 = vmatprep.subr.bf16.mxu0 0
    %461 = vmatpush1.bf16.msra.mxu0 0
    %462 = vmatprep.subr.bf16.mxu0 0
    %463 = vmatpush1.bf16.msra.mxu0 0
    %464 = vmatprep.subr.bf16.mxu0 0
    %465 = vmatpush1.bf16.msra.mxu0 0
    %466 = vmatprep.subr.bf16.mxu0 0
    %467 = vmatpush1.bf16.msra.mxu0 0
    %468 = vmatprep.subr.bf16.mxu0 0
    %469 = vmatpush1.bf16.msra.mxu0 0
    %470 = vmatprep.subr.bf16.mxu0 0
    %471 = vmatpush1.bf16.msra.mxu0 0
    %472 = vmatprep.mubr.bf16.mxu0 0
    %473 = vmatmul.mubr.bf16.gmra.mrb[0].mxu0 %v276
    %v474 = vpop.f32.mrb[0].mxu0
    %v475 = vadd.f32 %v251, %v474
    %v476 = vpop.f32.mrb[0].mxu0
    %v477 = vadd.f32 %v255, %v476
    %v478 = vpop.f32.mrb[0].mxu0
    %v479 = vadd.f32 %v251, %v478
    %v480 = vpop.f32.mrb[0].mxu0
    %v481 = vadd.f32 %v255, %v480
    %482 = vmatprep.mubr.bf16.mxu0 0
    %483 = vmatmul.mubr.bf16.gmra.mrb[0].mxu0 %v277
    %v484 = vpop.f32.mrb[0].mxu0
    %v485 = vadd.f32 %v251, %v484
    %v486 = vpop.f32.mrb[0].mxu0
    %v487 = vadd.f32 %v255, %v486
    %v488 = vpop.f32.mrb[0].mxu0
    %v489 = vadd.f32 %v251, %v488
    %v490 = vpop.f32.mrb[0].mxu0
    %v491 = vadd.f32 %v255, %v490
    %492 = vdwg.mxu0
    %493 = vmatprep.subr.bf16.mxu0 %v379
    %494 = vmatpush1.bf16.msra.mxu0 %v378
    %495 = vmatprep.subr.bf16.mxu0 %v383
    %496 = vmatpush1.bf16.msra.mxu0 %v382
    %497 = vmatprep.subr.bf16.mxu0 %v387
    %498 = vmatpush1.bf16.msra.mxu0 %v386
    %499 = vmatprep.subr.bf16.mxu0 %v391
    %500 = vmatpush1.bf16.msra.mxu0 %v390
    %501 = vmatprep.subr.bf16.mxu0 %v395
    %502 = vmatpush1.bf16.msra.mxu0 %v394
    %503 = vmatprep.subr.bf16.mxu0 %v399
    %504 = vmatpush1.bf16.msra.mxu0 %v398
    %505 = vmatprep.subr.bf16.mxu0 %v403
    %506 = vmatpush1.bf16.msra.mxu0 %v402
    %507 = vmatprep.subr.bf16.mxu0 %v407
    %508 = vmatpush1.bf16.msra.mxu0 %v406
    %509 = vmatprep.subr.bf16.mxu0 0
    %510 = vmatpush1.bf16.msra.mxu0 0
    %511 = vmatprep.subr.bf16.mxu0 0
    %512 = vmatpush1.bf16.msra.mxu0 0
    %513 = vmatprep.subr.bf16.mxu0 0
    %514 = vmatpush1.bf16.msra.mxu0 0
    %515 = vmatprep.subr.bf16.mxu0 0
    %516 = vmatpush1.bf16.msra.mxu0 0
    %517 = vmatprep.subr.bf16.mxu0 0
    %518 = vmatpush1.bf16.msra.mxu0 0
    %519 = vmatprep.subr.bf16.mxu0 0
    %520 = vmatpush1.bf16.msra.mxu0 0
    %521 = vmatprep.subr.bf16.mxu0 0
    %522 = vmatpush1.bf16.msra.mxu0 0
    %523 = vmatprep.subr.bf16.mxu0 0
    %524 = vmatpush1.bf16.msra.mxu0 0
    %525 = vmatprep.mubr.bf16.mxu0 0
    %526 = vmatmul.mubr.bf16.gmra.mrb[0].mxu0 %v276
    %v527 = vpop.f32.mrb[0].mxu0
    %v528 = vadd.f32 %v259, %v527
    %v529 = vpop.f32.mrb[0].mxu0
    %v530 = vadd.f32 %v263, %v529
    %v531 = vpop.f32.mrb[0].mxu0
    %v532 = vadd.f32 %v259, %v531
    %v533 = vpop.f32.mrb[0].mxu0
    %v534 = vadd.f32 %v263, %v533
    %535 = vmatprep.mubr.bf16.mxu0 0
    %536 = vmatmul.mubr.bf16.gmra.mrb[0].mxu0 %v277
    %v537 = vpop.f32.mrb[0].mxu0
    %v538 = vadd.f32 %v259, %v537
    %v539 = vpop.f32.mrb[0].mxu0
    %v540 = vadd.f32 %v263, %v539
    %v541 = vpop.f32.mrb[0].mxu0
    %v542 = vadd.f32 %v259, %v541
    %v543 = vpop.f32.mrb[0].mxu0
    %v544 = vadd.f32 %v263, %v543
    %545 = vdwg.mxu0
    %v546 = vsub.f32 0.0, %v475
    %v547 = vsub.f32 0.0, %v477
    %v548 = vsub.f32 0.0, %v528
    %v549 = vsub.f32 0.0, %v530
    %v550 = vsub.f32 0.0, %v479
    %v551 = vsub.f32 0.0, %v481
    %v552 = vsub.f32 0.0, %v532
    %v553 = vsub.f32 0.0, %v534
    %v554 = vsub.f32 0.0, %v485
    %v555 = vsub.f32 0.0, %v487
    %v556 = vsub.f32 0.0, %v538
    %v557 = vsub.f32 0.0, %v540
    %v558 = vsub.f32 0.0, %v489
    %v559 = vsub.f32 0.0, %v491
    %v560 = vsub.f32 0.0, %v542
    %v561 = vsub.f32 0.0, %v544
    %v562 = vmul.f32 %v546, 1.442695
    %v563 = vpow.pop %v562
    %v564 = vmul.f32 %v547, 1.442695
    %v565 = vpow.pop %v564
    %v566 = vmul.f32 %v548, 1.442695
    %v567 = vpow.pop %v566
    %v568 = vmul.f32 %v549, 1.442695
    %v569 = vpow.pop %v568
    %v570 = vmul.f32 %v550, 1.442695
    %v571 = vpow.pop %v570
    %v572 = vmul.f32 %v551, 1.442695
    %v573 = vpow.pop %v572
    %v574 = vmul.f32 %v552, 1.442695
    %v575 = vpow.pop %v574
    %v576 = vmul.f32 %v553, 1.442695
    %v577 = vpow.pop %v576
    %v578 = vmul.f32 %v554, 1.442695
    %v579 = vpow.pop %v578
    %v580 = vmul.f32 %v555, 1.442695
    %v581 = vpow.pop %v580
    %v582 = vmul.f32 %v556, 1.442695
    %v583 = vpow.pop %v582
    %v584 = vmul.f32 %v557, 1.442695
    %v585 = vpow.pop %v584
    %v586 = vmul.f32 %v558, 1.442695
    %v587 = vpow.pop %v586
    %v588 = vmul.f32 %v559, 1.442695
    %v589 = vpow.pop %v588
    %v590 = vmul.f32 %v560, 1.442695
    %v591 = vpow.pop %v590
    %v592 = vmul.f32 %v561, 1.442695
    %v593 = vpow.pop %v592
    %v594 = vadd.f32 %v563, 1.0
    %v595 = vadd.f32 %v565, 1.0
    %v596 = vadd.f32 %v567, 1.0
    %v597 = vadd.f32 %v569, 1.0
    %v598 = vadd.f32 %v571, 1.0
    %v599 = vadd.f32 %v573, 1.0
    %v600 = vadd.f32 %v575, 1.0
    %v601 = vadd.f32 %v577, 1.0
    %v602 = vadd.f32 %v579, 1.0
    %v603 = vadd.f32 %v581, 1.0
    %v604 = vadd.f32 %v583, 1.0
    %v605 = vadd.f32 %v585, 1.0
    %v606 = vadd.f32 %v587, 1.0
    %v607 = vadd.f32 %v589, 1.0
    %v608 = vadd.f32 %v591, 1.0
    %v609 = vadd.f32 %v593, 1.0
    %v610 = vrcp.pop %v594
    %v611 = vrcp.pop %v595
    %v612 = vrcp.pop %v596
    %v613 = vrcp.pop %v597
    %v614 = vrcp.pop %v598
    %v615 = vrcp.pop %v599
    %v616 = vrcp.pop %v600
    %v617 = vrcp.pop %v601
    %v618 = vrcp.pop %v602
    %v619 = vrcp.pop %v603
    %v620 = vrcp.pop %v604
    %v621 = vrcp.pop %v605
    %v622 = vrcp.pop %v606
    %v623 = vrcp.pop %v607
    %v624 = vrcp.pop %v608
    %v625 = vrcp.pop %v609
    %v626 = vmul.f32 %v475, %v610
    %v627 = vmul.f32 %v477, %v611
    %v628 = vmul.f32 %v528, %v612
    %v629 = vmul.f32 %v530, %v613
    %v630 = vmul.f32 %v479, %v614
    %v631 = vmul.f32 %v481, %v615
    %v632 = vmul.f32 %v532, %v616
    %v633 = vmul.f32 %v534, %v617
    %v634 = vmul.f32 %v485, %v618
    %v635 = vmul.f32 %v487, %v619
    %v636 = vmul.f32 %v538, %v620
    %v637 = vmul.f32 %v540, %v621
    %v638 = vmul.f32 %v489, %v622
    %v639 = vmul.f32 %v491, %v623
    %v640 = vmul.f32 %v542, %v624
    %v641 = vmul.f32 %v544, %v625
    %v642 = vpack.c.bf16 %v630, %v626
    %v643 = vpack.c.bf16 %v631, %v627
    %v644 = vpack.c.bf16 %v632, %v628
    %v645 = vpack.c.bf16 %v633, %v629
    %v646 = vpack.c.bf16 %v638, %v634
    %v647 = vpack.c.bf16 %v639, %v635
    %v648 = vpack.c.bf16 %v640, %v636
    %v649 = vpack.c.bf16 %v641, %v637
    %v650 = vld [vmem:[#allocation10] sm:$0xff]
    %v651 = vld [vmem:[#allocation10 + $0x8] sm:$0xff]
    %v652 = vld [vmem:[#allocation10 + $0x10] sm:$0xff]
    %v653 = vld [vmem:[#allocation10 + $0x18] sm:$0xff]
    %v654 = vld [vmem:[#allocation10 + $0x20] sm:$0xff]
    %v655 = vld [vmem:[#allocation10 + $0x28] sm:$0xff]
    %v656 = vld [vmem:[#allocation10 + $0x30] sm:$0xff]
    %v657 = vld [vmem:[#allocation10 + $0x38] sm:$0xff]
    %v658 = vld [vmem:[#allocation10 + $0x40] sm:$0xff]
    %v659 = vld [vmem:[#allocation10 + $0x48] sm:$0xff]
    %v660 = vld [vmem:[#allocation10 + $0x50] sm:$0xff]
    %v661 = vld [vmem:[#allocation10 + $0x58] sm:$0xff]
    %v662 = vld [vmem:[#allocation10 + $0x60] sm:$0xff]
    %v663 = vld [vmem:[#allocation10 + $0x68] sm:$0xff]
    %v664 = vld [vmem:[#allocation10 + $0x70] sm:$0xff]
    %v665 = vld [vmem:[#allocation10 + $0x78] sm:$0xff]
    %v666 = vld [vmem:[#allocation10 + $0x80] sm:$0xff]
    %v667 = vld [vmem:[#allocation10 + $0x88] sm:$0xff]
    %v668 = vld [vmem:[#allocation10 + $0x90] sm:$0xff]
    %v669 = vld [vmem:[#allocation10 + $0x98] sm:$0xff]
    %v670 = vld [vmem:[#allocation10 + $0xa0] sm:$0xff]
    %v671 = vld [vmem:[#allocation10 + $0xa8] sm:$0xff]
    %v672 = vld [vmem:[#allocation10 + $0xb0] sm:$0xff]
    %v673 = vld [vmem:[#allocation10 + $0xb8] sm:$0xff]
    %v674 = vld [vmem:[#allocation10 + $0xc0] sm:$0xff]
    %v675 = vld [vmem:[#allocation10 + $0xc8] sm:$0xff]
    %v676 = vld [vmem:[#allocation10 + $0xd0] sm:$0xff]
    %v677 = vld [vmem:[#allocation10 + $0xd8] sm:$0xff]
    %v678 = vld [vmem:[#allocation10 + $0xe0] sm:$0xff]
    %v679 = vld [vmem:[#allocation10 + $0xe8] sm:$0xff]
    %v680 = vld [vmem:[#allocation10 + $0xf0] sm:$0xff]
    %v681 = vld [vmem:[#allocation10 + $0xf8] sm:$0xff]
    %v682 = vld [vmem:[#allocation10 + $0x100] sm:$0xff]
    %v683 = vld [vmem:[#allocation10 + $0x108] sm:$0xff]
    %v684 = vld [vmem:[#allocation10 + $0x110] sm:$0xff]
    %v685 = vld [vmem:[#allocation10 + $0x118] sm:$0xff]
    %v686 = vld [vmem:[#allocation10 + $0x120] sm:$0xff]
    %v687 = vld [vmem:[#allocation10 + $0x128] sm:$0xff]
    %v688 = vld [vmem:[#allocation10 + $0x130] sm:$0xff]
    %v689 = vld [vmem:[#allocation10 + $0x138] sm:$0xff]
    %v690 = vld [vmem:[#allocation10 + $0x140] sm:$0xff]
    %v691 = vld [vmem:[#allocation10 + $0x148] sm:$0xff]
    %v692 = vld [vmem:[#allocation10 + $0x150] sm:$0xff]
    %v693 = vld [vmem:[#allocation10 + $0x158] sm:$0xff]
    %v694 = vld [vmem:[#allocation10 + $0x160] sm:$0xff]
    %v695 = vld [vmem:[#allocation10 + $0x168] sm:$0xff]
    %v696 = vld [vmem:[#allocation10 + $0x170] sm:$0xff]
    %v697 = vld [vmem:[#allocation10 + $0x178] sm:$0xff]
    %v698 = vld [vmem:[#allocation10 + $0x180] sm:$0xff]
    %v699 = vld [vmem:[#allocation10 + $0x188] sm:$0xff]
    %v700 = vld [vmem:[#allocation10 + $0x190] sm:$0xff]
    %v701 = vld [vmem:[#allocation10 + $0x198] sm:$0xff]
    %v702 = vld [vmem:[#allocation10 + $0x1a0] sm:$0xff]
    %v703 = vld [vmem:[#allocation10 + $0x1a8] sm:$0xff]
    %v704 = vld [vmem:[#allocation10 + $0x1b0] sm:$0xff]
    %v705 = vld [vmem:[#allocation10 + $0x1b8] sm:$0xff]
    %v706 = vld [vmem:[#allocation10 + $0x1c0] sm:$0xff]
    %v707 = vld [vmem:[#allocation10 + $0x1c8] sm:$0xff]
    %v708 = vld [vmem:[#allocation10 + $0x1d0] sm:$0xff]
    %v709 = vld [vmem:[#allocation10 + $0x1d8] sm:$0xff]
    %v710 = vld [vmem:[#allocation10 + $0x1e0] sm:$0xff]
    %v711 = vld [vmem:[#allocation10 + $0x1e8] sm:$0xff]
    %v712 = vld [vmem:[#allocation10 + $0x1f0] sm:$0xff]
    %v713 = vld [vmem:[#allocation10 + $0x1f8] sm:$0xff]
    %v714 = vld [vmem:[#allocation10 + $0x200] sm:$0xff]
    %v715 = vld [vmem:[#allocation10 + $0x208] sm:$0xff]
    %v716 = vld [vmem:[#allocation10 + $0x210] sm:$0xff]
    %v717 = vld [vmem:[#allocation10 + $0x218] sm:$0xff]
    %v718 = vld [vmem:[#allocation10 + $0x220] sm:$0xff]
    %v719 = vld [vmem:[#allocation10 + $0x228] sm:$0xff]
    %v720 = vld [vmem:[#allocation10 + $0x230] sm:$0xff]
    %v721 = vld [vmem:[#allocation10 + $0x238] sm:$0xff]
    %v722 = vld [vmem:[#allocation10 + $0x240] sm:$0xff]
    %v723 = vld [vmem:[#allocation10 + $0x248] sm:$0xff]
    %v724 = vld [vmem:[#allocation10 + $0x250] sm:$0xff]
    %v725 = vld [vmem:[#allocation10 + $0x258] sm:$0xff]
    %v726 = vld [vmem:[#allocation10 + $0x260] sm:$0xff]
    %v727 = vld [vmem:[#allocation10 + $0x268] sm:$0xff]
    %v728 = vld [vmem:[#allocation10 + $0x270] sm:$0xff]
    %v729 = vld [vmem:[#allocation10 + $0x278] sm:$0xff]
    %v730 = vld [vmem:[#allocation10 + $0x280] sm:$0xff]
    %v731 = vld [vmem:[#allocation10 + $0x288] sm:$0xff]
    %v732 = vld [vmem:[#allocation10 + $0x290] sm:$0xff]
    %v733 = vld [vmem:[#allocation10 + $0x298] sm:$0xff]
    %v734 = vld [vmem:[#allocation10 + $0x2a0] sm:$0xff]
    %v735 = vld [vmem:[#allocation10 + $0x2a8] sm:$0xff]
    %v736 = vld [vmem:[#allocation10 + $0x2b0] sm:$0xff]
    %v737 = vld [vmem:[#allocation10 + $0x2b8] sm:$0xff]
    %v738 = vld [vmem:[#allocation10 + $0x2c0] sm:$0xff]
    %v739 = vld [vmem:[#allocation10 + $0x2c8] sm:$0xff]
    %v740 = vld [vmem:[#allocation10 + $0x2d0] sm:$0xff]
    %v741 = vld [vmem:[#allocation10 + $0x2d8] sm:$0xff]
    %v742 = vld [vmem:[#allocation10 + $0x2e0] sm:$0xff]
    %v743 = vld [vmem:[#allocation10 + $0x2e8] sm:$0xff]
    %v744 = vld [vmem:[#allocation10 + $0x2f0] sm:$0xff]
    %v745 = vld [vmem:[#allocation10 + $0x2f8] sm:$0xff]
    %v746 = vld [vmem:[#allocation10 + $0x300] sm:$0xff]
    %v747 = vld [vmem:[#allocation10 + $0x308] sm:$0xff]
    %v748 = vld [vmem:[#allocation10 + $0x310] sm:$0xff]
    %v749 = vld [vmem:[#allocation10 + $0x318] sm:$0xff]
    %v750 = vld [vmem:[#allocation10 + $0x320] sm:$0xff]
    %v751 = vld [vmem:[#allocation10 + $0x328] sm:$0xff]
    %v752 = vld [vmem:[#allocation10 + $0x330] sm:$0xff]
    %v753 = vld [vmem:[#allocation10 + $0x338] sm:$0xff]
    %v754 = vld [vmem:[#allocation10 + $0x340] sm:$0xff]
    %v755 = vld [vmem:[#allocation10 + $0x348] sm:$0xff]
    %v756 = vld [vmem:[#allocation10 + $0x350] sm:$0xff]
    %v757 = vld [vmem:[#allocation10 + $0x358] sm:$0xff]
    %v758 = vld [vmem:[#allocation10 + $0x360] sm:$0xff]
    %v759 = vld [vmem:[#allocation10 + $0x368] sm:$0xff]
    %v760 = vld [vmem:[#allocation10 + $0x370] sm:$0xff]
    %v761 = vld [vmem:[#allocation10 + $0x378] sm:$0xff]
    %v762 = vld [vmem:[#allocation10 + $0x380] sm:$0xff]
    %v763 = vld [vmem:[#allocation10 + $0x388] sm:$0xff]
    %v764 = vld [vmem:[#allocation10 + $0x390] sm:$0xff]
    %v765 = vld [vmem:[#allocation10 + $0x398] sm:$0xff]
    %v766 = vld [vmem:[#allocation10 + $0x3a0] sm:$0xff]
    %v767 = vld [vmem:[#allocation10 + $0x3a8] sm:$0xff]
    %v768 = vld [vmem:[#allocation10 + $0x3b0] sm:$0xff]
    %v769 = vld [vmem:[#allocation10 + $0x3b8] sm:$0xff]
    %v770 = vld [vmem:[#allocation10 + $0x3c0] sm:$0xff]
    %v771 = vld [vmem:[#allocation10 + $0x3c8] sm:$0xff]
    %v772 = vld [vmem:[#allocation10 + $0x3d0] sm:$0xff]
    %v773 = vld [vmem:[#allocation10 + $0x3d8] sm:$0xff]
    %v774 = vld [vmem:[#allocation10 + $0x3e0] sm:$0xff]
    %v775 = vld [vmem:[#allocation10 + $0x3e8] sm:$0xff]
    %v776 = vld [vmem:[#allocation10 + $0x3f0] sm:$0xff]
    %v777 = vld [vmem:[#allocation10 + $0x3f8] sm:$0xff]
    %v778 = vld [vmem:[%s9] sm:$0xf]
    %v780 = vlaneseq
    %v781 = vshrl.u32 %v780, 7
    %v782 = vsub.s32 0, %v781
    %v783 = vrot.slane %v778, %v782
    %v784 = vlaneseq
    %v785 = vshrl.u32 %v784, 7
    %v786 = vsub.s32 1, %v785
    %v787 = vrot.slane %v778, %v786
    %v788 = vlaneseq
    %v789 = vshrl.u32 %v788, 7
    %v790 = vsub.s32 2, %v789
    %v791 = vrot.slane %v778, %v790
    %v792 = vlaneseq
    %v793 = vshrl.u32 %v792, 7
    %v794 = vsub.s32 3, %v793
    %v795 = vrot.slane %v778, %v794
    %v928 = vunpack.c.l.b16 %v650
    %v929 = vunpack.c.h.b16 %v650
    %v930 = vunpack.c.l.b16 %v651
    %v931 = vunpack.c.h.b16 %v651
    %v932 = vunpack.c.l.b16 %v652
    %v933 = vunpack.c.h.b16 %v652
    %v934 = vunpack.c.l.b16 %v653
    %v935 = vunpack.c.h.b16 %v653
    %v936 = vunpack.c.l.b16 %v654
    %v937 = vunpack.c.h.b16 %v654
    %v938 = vunpack.c.l.b16 %v655
    %v939 = vunpack.c.h.b16 %v655
    %v940 = vunpack.c.l.b16 %v656
    %v941 = vunpack.c.h.b16 %v656
    %v942 = vunpack.c.l.b16 %v657
    %v943 = vunpack.c.h.b16 %v657
    %v944 = vunpack.c.l.b16 %v658
    %v945 = vunpack.c.h.b16 %v658
    %v946 = vunpack.c.l.b16 %v659
    %v947 = vunpack.c.h.b16 %v659
    %v948 = vunpack.c.l.b16 %v660
    %v949 = vunpack.c.h.b16 %v660
    %v950 = vunpack.c.l.b16 %v661
    %v951 = vunpack.c.h.b16 %v661
    %v952 = vunpack.c.l.b16 %v662
    %v953 = vunpack.c.h.b16 %v662
    %v954 = vunpack.c.l.b16 %v663
    %v955 = vunpack.c.h.b16 %v663
    %v956 = vunpack.c.l.b16 %v664
    %v957 = vunpack.c.h.b16 %v664
    %v958 = vunpack.c.l.b16 %v665
    %v959 = vunpack.c.h.b16 %v665
    %v960 = vunpack.c.l.b16 %v666
    %v961 = vunpack.c.h.b16 %v666
    %v962 = vunpack.c.l.b16 %v667
    %v963 = vunpack.c.h.b16 %v667
    %v964 = vunpack.c.l.b16 %v668
    %v965 = vunpack.c.h.b16 %v668
    %v966 = vunpack.c.l.b16 %v669
    %v967 = vunpack.c.h.b16 %v669
    %v968 = vunpack.c.l.b16 %v670
    %v969 = vunpack.c.h.b16 %v670
    %v970 = vunpack.c.l.b16 %v671
    %v971 = vunpack.c.h.b16 %v671
    %v972 = vunpack.c.l.b16 %v672
    %v973 = vunpack.c.h.b16 %v672
    %v974 = vunpack.c.l.b16 %v673
    %v975 = vunpack.c.h.b16 %v673
    %v976 = vunpack.c.l.b16 %v674
    %v977 = vunpack.c.h.b16 %v674
    %v978 = vunpack.c.l.b16 %v675
    %v979 = vunpack.c.h.b16 %v675
    %v980 = vunpack.c.l.b16 %v676
    %v981 = vunpack.c.h.b16 %v676
    %v982 = vunpack.c.l.b16 %v677
    %v983 = vunpack.c.h.b16 %v677
    %v984 = vunpack.c.l.b16 %v678
    %v985 = vunpack.c.h.b16 %v678
    %v986 = vunpack.c.l.b16 %v679
    %v987 = vunpack.c.h.b16 %v679
    %v988 = vunpack.c.l.b16 %v680
    %v989 = vunpack.c.h.b16 %v680
    %v990 = vunpack.c.l.b16 %v681
    %v991 = vunpack.c.h.b16 %v681
    %v992 = vunpack.c.l.b16 %v682
    %v993 = vunpack.c.h.b16 %v682
    %v994 = vunpack.c.l.b16 %v683
    %v995 = vunpack.c.h.b16 %v683
    %v996 = vunpack.c.l.b16 %v684
    %v997 = vunpack.c.h.b16 %v684
    %v998 = vunpack.c.l.b16 %v685
    %v999 = vunpack.c.h.b16 %v685
    %v1000 = vunpack.c.l.b16 %v686
    %v1001 = vunpack.c.h.b16 %v686
    %v1002 = vunpack.c.l.b16 %v687
    %v1003 = vunpack.c.h.b16 %v687
    %v1004 = vunpack.c.l.b16 %v688
    %v1005 = vunpack.c.h.b16 %v688
    %v1006 = vunpack.c.l.b16 %v689
    %v1007 = vunpack.c.h.b16 %v689
    %v1008 = vunpack.c.l.b16 %v690
    %v1009 = vunpack.c.h.b16 %v690
    %v1010 = vunpack.c.l.b16 %v691
    %v1011 = vunpack.c.h.b16 %v691
    %v1012 = vunpack.c.l.b16 %v692
    %v1013 = vunpack.c.h.b16 %v692
    %v1014 = vunpack.c.l.b16 %v693
    %v1015 = vunpack.c.h.b16 %v693
    %v1016 = vunpack.c.l.b16 %v694
    %v1017 = vunpack.c.h.b16 %v694
    %v1018 = vunpack.c.l.b16 %v695
    %v1019 = vunpack.c.h.b16 %v695
    %v1020 = vunpack.c.l.b16 %v696
    %v1021 = vunpack.c.h.b16 %v696
    %v1022 = vunpack.c.l.b16 %v697
    %v1023 = vunpack.c.h.b16 %v697
    %v1024 = vunpack.c.l.b16 %v698
    %v1025 = vunpack.c.h.b16 %v698
    %v1026 = vunpack.c.l.b16 %v699
    %v1027 = vunpack.c.h.b16 %v699
    %v1028 = vunpack.c.l.b16 %v700
    %v1029 = vunpack.c.h.b16 %v700
    %v1030 = vunpack.c.l.b16 %v701
    %v1031 = vunpack.c.h.b16 %v701
    %v1032 = vunpack.c.l.b16 %v702
    %v1033 = vunpack.c.h.b16 %v702
    %v1034 = vunpack.c.l.b16 %v703
    %v1035 = vunpack.c.h.b16 %v703
    %v1036 = vunpack.c.l.b16 %v704
    %v1037 = vunpack.c.h.b16 %v704
    %v1038 = vunpack.c.l.b16 %v705
    %v1039 = vunpack.c.h.b16 %v705
    %v1040 = vunpack.c.l.b16 %v706
    %v1041 = vunpack.c.h.b16 %v706
    %v1042 = vunpack.c.l.b16 %v707
    %v1043 = vunpack.c.h.b16 %v707
    %v1044 = vunpack.c.l.b16 %v708
    %v1045 = vunpack.c.h.b16 %v708
    %v1046 = vunpack.c.l.b16 %v709
    %v1047 = vunpack.c.h.b16 %v709
    %v1048 = vunpack.c.l.b16 %v710
    %v1049 = vunpack.c.h.b16 %v710
    %v1050 = vunpack.c.l.b16 %v711
    %v1051 = vunpack.c.h.b16 %v711
    %v1052 = vunpack.c.l.b16 %v712
    %v1053 = vunpack.c.h.b16 %v712
    %v1054 = vunpack.c.l.b16 %v713
    %v1055 = vunpack.c.h.b16 %v713
    %v1056 = vunpack.c.l.b16 %v714
    %v1057 = vunpack.c.h.b16 %v714
    %v1058 = vunpack.c.l.b16 %v715
    %v1059 = vunpack.c.h.b16 %v715
    %v1060 = vunpack.c.l.b16 %v716
    %v1061 = vunpack.c.h.b16 %v716
    %v1062 = vunpack.c.l.b16 %v717
    %v1063 = vunpack.c.h.b16 %v717
    %v1064 = vunpack.c.l.b16 %v718
    %v1065 = vunpack.c.h.b16 %v718
    %v1066 = vunpack.c.l.b16 %v719
    %v1067 = vunpack.c.h.b16 %v719
    %v1068 = vunpack.c.l.b16 %v720
    %v1069 = vunpack.c.h.b16 %v720
    %v1070 = vunpack.c.l.b16 %v721
    %v1071 = vunpack.c.h.b16 %v721
    %v1072 = vunpack.c.l.b16 %v722
    %v1073 = vunpack.c.h.b16 %v722
    %v1074 = vunpack.c.l.b16 %v723
    %v1075 = vunpack.c.h.b16 %v723
    %v1076 = vunpack.c.l.b16 %v724
    %v1077 = vunpack.c.h.b16 %v724
    %v1078 = vunpack.c.l.b16 %v725
    %v1079 = vunpack.c.h.b16 %v725
    %v1080 = vunpack.c.l.b16 %v726
    %v1081 = vunpack.c.h.b16 %v726
    %v1082 = vunpack.c.l.b16 %v727
    %v1083 = vunpack.c.h.b16 %v727
    %v1084 = vunpack.c.l.b16 %v728
    %v1085 = vunpack.c.h.b16 %v728
    %v1086 = vunpack.c.l.b16 %v729
    %v1087 = vunpack.c.h.b16 %v729
    %v1088 = vunpack.c.l.b16 %v730
    %v1089 = vunpack.c.h.b16 %v730
    %v1090 = vunpack.c.l.b16 %v731
    %v1091 = vunpack.c.h.b16 %v731
    %v1092 = vunpack.c.l.b16 %v732
    %v1093 = vunpack.c.h.b16 %v732
    %v1094 = vunpack.c.l.b16 %v733
    %v1095 = vunpack.c.h.b16 %v733
    %v1096 = vunpack.c.l.b16 %v734
    %v1097 = vunpack.c.h.b16 %v734
    %v1098 = vunpack.c.l.b16 %v735
    %v1099 = vunpack.c.h.b16 %v735
    %v1100 = vunpack.c.l.b16 %v736
    %v1101 = vunpack.c.h.b16 %v736
    %v1102 = vunpack.c.l.b16 %v737
    %v1103 = vunpack.c.h.b16 %v737
    %v1104 = vunpack.c.l.b16 %v738
    %v1105 = vunpack.c.h.b16 %v738
    %v1106 = vunpack.c.l.b16 %v739
    %v1107 = vunpack.c.h.b16 %v739
    %v1108 = vunpack.c.l.b16 %v740
    %v1109 = vunpack.c.h.b16 %v740
    %v1110 = vunpack.c.l.b16 %v741
    %v1111 = vunpack.c.h.b16 %v741
    %v1112 = vunpack.c.l.b16 %v742
    %v1113 = vunpack.c.h.b16 %v742
    %v1114 = vunpack.c.l.b16 %v743
    %v1115 = vunpack.c.h.b16 %v743
    %v1116 = vunpack.c.l.b16 %v744
    %v1117 = vunpack.c.h.b16 %v744
    %v1118 = vunpack.c.l.b16 %v745
    %v1119 = vunpack.c.h.b16 %v745
    %v1120 = vunpack.c.l.b16 %v746
    %v1121 = vunpack.c.h.b16 %v746
    %v1122 = vunpack.c.l.b16 %v747
    %v1123 = vunpack.c.h.b16 %v747
    %v1124 = vunpack.c.l.b16 %v748
    %v1125 = vunpack.c.h.b16 %v748
    %v1126 = vunpack.c.l.b16 %v749
    %v1127 = vunpack.c.h.b16 %v749
    %v1128 = vunpack.c.l.b16 %v750
    %v1129 = vunpack.c.h.b16 %v750
    %v1130 = vunpack.c.l.b16 %v751
    %v1131 = vunpack.c.h.b16 %v751
    %v1132 = vunpack.c.l.b16 %v752
    %v1133 = vunpack.c.h.b16 %v752
    %v1134 = vunpack.c.l.b16 %v753
    %v1135 = vunpack.c.h.b16 %v753
    %v1136 = vunpack.c.l.b16 %v754
    %v1137 = vunpack.c.h.b16 %v754
    %v1138 = vunpack.c.l.b16 %v755
    %v1139 = vunpack.c.h.b16 %v755
    %v1140 = vunpack.c.l.b16 %v756
    %v1141 = vunpack.c.h.b16 %v756
    %v1142 = vunpack.c.l.b16 %v757
    %v1143 = vunpack.c.h.b16 %v757
    %v1144 = vunpack.c.l.b16 %v758
    %v1145 = vunpack.c.h.b16 %v758
    %v1146 = vunpack.c.l.b16 %v759
    %v1147 = vunpack.c.h.b16 %v759
    %v1148 = vunpack.c.l.b16 %v760
    %v1149 = vunpack.c.h.b16 %v760
    %v1150 = vunpack.c.l.b16 %v761
    %v1151 = vunpack.c.h.b16 %v761
    %v1152 = vunpack.c.l.b16 %v762
    %v1153 = vunpack.c.h.b16 %v762
    %v1154 = vunpack.c.l.b16 %v763
    %v1155 = vunpack.c.h.b16 %v763
    %v1156 = vunpack.c.l.b16 %v764
    %v1157 = vunpack.c.h.b16 %v764
    %v1158 = vunpack.c.l.b16 %v765
    %v1159 = vunpack.c.h.b16 %v765
    %v1160 = vunpack.c.l.b16 %v766
    %v1161 = vunpack.c.h.b16 %v766
    %v1162 = vunpack.c.l.b16 %v767
    %v1163 = vunpack.c.h.b16 %v767
    %v1164 = vunpack.c.l.b16 %v768
    %v1165 = vunpack.c.h.b16 %v768
    %v1166 = vunpack.c.l.b16 %v769
    %v1167 = vunpack.c.h.b16 %v769
    %v1168 = vunpack.c.l.b16 %v770
    %v1169 = vunpack.c.h.b16 %v770
    %v1170 = vunpack.c.l.b16 %v771
    %v1171 = vunpack.c.h.b16 %v771
    %v1172 = vunpack.c.l.b16 %v772
    %v1173 = vunpack.c.h.b16 %v772
    %v1174 = vunpack.c.l.b16 %v773
    %v1175 = vunpack.c.h.b16 %v773
    %v1176 = vunpack.c.l.b16 %v774
    %v1177 = vunpack.c.h.b16 %v774
    %v1178 = vunpack.c.l.b16 %v775
    %v1179 = vunpack.c.h.b16 %v775
    %v1180 = vunpack.c.l.b16 %v776
    %v1181 = vunpack.c.h.b16 %v776
    %v1182 = vunpack.c.l.b16 %v777
    %v1183 = vunpack.c.h.b16 %v777
    %v1184 = vpack.c.b16 %v932, %v928
    %v1185 = vpack.c.b16 %v933, %v929
    %v1186 = vpack.c.b16 %v934, %v930
    %v1187 = vpack.c.b16 %v935, %v931
    %v1188 = vpack.c.b16 %v940, %v936
    %v1189 = vpack.c.b16 %v941, %v937
    %v1190 = vpack.c.b16 %v942, %v938
    %v1191 = vpack.c.b16 %v943, %v939
    %v1192 = vpack.c.b16 %v948, %v944
    %v1193 = vpack.c.b16 %v949, %v945
    %v1194 = vpack.c.b16 %v950, %v946
    %v1195 = vpack.c.b16 %v951, %v947
    %v1196 = vpack.c.b16 %v956, %v952
    %v1197 = vpack.c.b16 %v957, %v953
    %v1198 = vpack.c.b16 %v958, %v954
    %v1199 = vpack.c.b16 %v959, %v955
    %v1200 = vpack.c.b16 %v964, %v960
    %v1201 = vpack.c.b16 %v965, %v961
    %v1202 = vpack.c.b16 %v966, %v962
    %v1203 = vpack.c.b16 %v967, %v963
    %v1204 = vpack.c.b16 %v972, %v968
    %v1205 = vpack.c.b16 %v973, %v969
    %v1206 = vpack.c.b16 %v974, %v970
    %v1207 = vpack.c.b16 %v975, %v971
    %v1208 = vpack.c.b16 %v980, %v976
    %v1209 = vpack.c.b16 %v981, %v977
    %v1210 = vpack.c.b16 %v982, %v978
    %v1211 = vpack.c.b16 %v983, %v979
    %v1212 = vpack.c.b16 %v988, %v984
    %v1213 = vpack.c.b16 %v989, %v985
    %v1214 = vpack.c.b16 %v990, %v986
    %v1215 = vpack.c.b16 %v991, %v987
    %v1216 = vpack.c.b16 %v996, %v992
    %v1217 = vpack.c.b16 %v997, %v993
    %v1218 = vpack.c.b16 %v998, %v994
    %v1219 = vpack.c.b16 %v999, %v995
    %v1220 = vpack.c.b16 %v1004, %v1000
    %v1221 = vpack.c.b16 %v1005, %v1001
    %v1222 = vpack.c.b16 %v1006, %v1002
    %v1223 = vpack.c.b16 %v1007, %v1003
    %v1224 = vpack.c.b16 %v1012, %v1008
    %v1225 = vpack.c.b16 %v1013, %v1009
    %v1226 = vpack.c.b16 %v1014, %v1010
    %v1227 = vpack.c.b16 %v1015, %v1011
    %v1228 = vpack.c.b16 %v1020, %v1016
    %v1229 = vpack.c.b16 %v1021, %v1017
    %v1230 = vpack.c.b16 %v1022, %v1018
    %v1231 = vpack.c.b16 %v1023, %v1019
    %v1232 = vpack.c.b16 %v1028, %v1024
    %v1233 = vpack.c.b16 %v1029, %v1025
    %v1234 = vpack.c.b16 %v1030, %v1026
    %v1235 = vpack.c.b16 %v1031, %v1027
    %v1236 = vpack.c.b16 %v1036, %v1032
    %v1237 = vpack.c.b16 %v1037, %v1033
    %v1238 = vpack.c.b16 %v1038, %v1034
    %v1239 = vpack.c.b16 %v1039, %v1035
    %v1240 = vpack.c.b16 %v1044, %v1040
    %v1241 = vpack.c.b16 %v1045, %v1041
    %v1242 = vpack.c.b16 %v1046, %v1042
    %v1243 = vpack.c.b16 %v1047, %v1043
    %v1244 = vpack.c.b16 %v1052, %v1048
    %v1245 = vpack.c.b16 %v1053, %v1049
    %v1246 = vpack.c.b16 %v1054, %v1050
    %v1247 = vpack.c.b16 %v1055, %v1051
    %v1248 = vpack.c.b16 %v1060, %v1056
    %v1249 = vpack.c.b16 %v1061, %v1057
    %v1250 = vpack.c.b16 %v1062, %v1058
    %v1251 = vpack.c.b16 %v1063, %v1059
    %v1252 = vpack.c.b16 %v1068, %v1064
    %v1253 = vpack.c.b16 %v1069, %v1065
    %v1254 = vpack.c.b16 %v1070, %v1066
    %v1255 = vpack.c.b16 %v1071, %v1067
    %v1256 = vpack.c.b16 %v1076, %v1072
    %v1257 = vpack.c.b16 %v1077, %v1073
    %v1258 = vpack.c.b16 %v1078, %v1074
    %v1259 = vpack.c.b16 %v1079, %v1075
    %v1260 = vpack.c.b16 %v1084, %v1080
    %v1261 = vpack.c.b16 %v1085, %v1081
    %v1262 = vpack.c.b16 %v1086, %v1082
    %v1263 = vpack.c.b16 %v1087, %v1083
    %v1264 = vpack.c.b16 %v1092, %v1088
    %v1265 = vpack.c.b16 %v1093, %v1089
    %v1266 = vpack.c.b16 %v1094, %v1090
    %v1267 = vpack.c.b16 %v1095, %v1091
    %v1268 = vpack.c.b16 %v1100, %v1096
    %v1269 = vpack.c.b16 %v1101, %v1097
    %v1270 = vpack.c.b16 %v1102, %v1098
    %v1271 = vpack.c.b16 %v1103, %v1099
    %v1272 = vpack.c.b16 %v1108, %v1104
    %v1273 = vpack.c.b16 %v1109, %v1105
    %v1274 = vpack.c.b16 %v1110, %v1106
    %v1275 = vpack.c.b16 %v1111, %v1107
    %v1276 = vpack.c.b16 %v1116, %v1112
    %v1277 = vpack.c.b16 %v1117, %v1113
    %v1278 = vpack.c.b16 %v1118, %v1114
    %v1279 = vpack.c.b16 %v1119, %v1115
    %v1280 = vpack.c.b16 %v1124, %v1120
    %v1281 = vpack.c.b16 %v1125, %v1121
    %v1282 = vpack.c.b16 %v1126, %v1122
    %v1283 = vpack.c.b16 %v1127, %v1123
    %v1284 = vpack.c.b16 %v1132, %v1128
    %v1285 = vpack.c.b16 %v1133, %v1129
    %v1286 = vpack.c.b16 %v1134, %v1130
    %v1287 = vpack.c.b16 %v1135, %v1131
    %v1288 = vpack.c.b16 %v1140, %v1136
    %v1289 = vpack.c.b16 %v1141, %v1137
    %v1290 = vpack.c.b16 %v1142, %v1138
    %v1291 = vpack.c.b16 %v1143, %v1139
    %v1292 = vpack.c.b16 %v1148, %v1144
    %v1293 = vpack.c.b16 %v1149, %v1145
    %v1294 = vpack.c.b16 %v1150, %v1146
    %v1295 = vpack.c.b16 %v1151, %v1147
    %v1296 = vpack.c.b16 %v1156, %v1152
    %v1297 = vpack.c.b16 %v1157, %v1153
    %v1298 = vpack.c.b16 %v1158, %v1154
    %v1299 = vpack.c.b16 %v1159, %v1155
    %v1300 = vpack.c.b16 %v1164, %v1160
    %v1301 = vpack.c.b16 %v1165, %v1161
    %v1302 = vpack.c.b16 %v1166, %v1162
    %v1303 = vpack.c.b16 %v1167, %v1163
    %v1304 = vpack.c.b16 %v1172, %v1168
    %v1305 = vpack.c.b16 %v1173, %v1169
    %v1306 = vpack.c.b16 %v1174, %v1170
    %v1307 = vpack.c.b16 %v1175, %v1171
    %v1308 = vpack.c.b16 %v1180, %v1176
    %v1309 = vpack.c.b16 %v1181, %v1177
    %v1310 = vpack.c.b16 %v1182, %v1178
    %v1311 = vpack.c.b16 %v1183, %v1179
    %1440 = vmatprep.subr.bf16.mxu0 %v1185
    %1441 = vmatpush1.bf16.msra.mxu0 %v1184
    %1442 = vmatprep.subr.bf16.mxu0 %v1189
    %1443 = vmatpush1.bf16.msra.mxu0 %v1188
    %1444 = vmatprep.subr.bf16.mxu0 %v1193
    %1445 = vmatpush1.bf16.msra.mxu0 %v1192
    %1446 = vmatprep.subr.bf16.mxu0 %v1197
    %1447 = vmatpush1.bf16.msra.mxu0 %v1196
    %1448 = vmatprep.subr.bf16.mxu0 %v1201
    %1449 = vmatpush1.bf16.msra.mxu0 %v1200
    %1450 = vmatprep.subr.bf16.mxu0 %v1205
    %1451 = vmatpush1.bf16.msra.mxu0 %v1204
    %1452 = vmatprep.subr.bf16.mxu0 %v1209
    %1453 = vmatpush1.bf16.msra.mxu0 %v1208
    %1454 = vmatprep.subr.bf16.mxu0 %v1213
    %1455 = vmatpush1.bf16.msra.mxu0 %v1212
    %1456 = vmatprep.subr.bf16.mxu0 %v1217
    %1457 = vmatpush1.bf16.msra.mxu0 %v1216
    %1458 = vmatprep.subr.bf16.mxu0 %v1221
    %1459 = vmatpush1.bf16.msra.mxu0 %v1220
    %1460 = vmatprep.subr.bf16.mxu0 %v1225
    %1461 = vmatpush1.bf16.msra.mxu0 %v1224
    %1462 = vmatprep.subr.bf16.mxu0 %v1229
    %1463 = vmatpush1.bf16.msra.mxu0 %v1228
    %1464 = vmatprep.subr.bf16.mxu0 %v1233
    %1465 = vmatpush1.bf16.msra.mxu0 %v1232
    %1466 = vmatprep.subr.bf16.mxu0 %v1237
    %1467 = vmatpush1.bf16.msra.mxu0 %v1236
    %1468 = vmatprep.subr.bf16.mxu0 %v1241
    %1469 = vmatpush1.bf16.msra.mxu0 %v1240
    %1470 = vmatprep.subr.bf16.mxu0 %v1245
    %1471 = vmatpush1.bf16.msra.mxu0 %v1244
    %1472 = vmatprep.mubr.bf16.mxu0 %v643
    %1473 = vmatmul.mubr.bf16.gmra.mrb[0].mxu0 %v642
    %v1474 = vpop.f32.mrb[0].mxu0
    %v1475 = vadd.f32 %v783, %v1474
    %v1476 = vpop.f32.mrb[0].mxu0
    %v1477 = vadd.f32 %v787, %v1476
    %v1478 = vpop.f32.mrb[0].mxu0
    %v1479 = vadd.f32 %v783, %v1478
    %v1480 = vpop.f32.mrb[0].mxu0
    %v1481 = vadd.f32 %v787, %v1480
    %1482 = vmatprep.mubr.bf16.mxu0 %v647
    %1483 = vmatmul.mubr.bf16.gmra.mrb[0].mxu0 %v646
    %v1484 = vpop.f32.mrb[0].mxu0
    %v1485 = vadd.f32 %v783, %v1484
    %v1486 = vpop.f32.mrb[0].mxu0
    %v1487 = vadd.f32 %v787, %v1486
    %v1488 = vpop.f32.mrb[0].mxu0
    %v1489 = vadd.f32 %v783, %v1488
    %v1490 = vpop.f32.mrb[0].mxu0
    %v1491 = vadd.f32 %v787, %v1490
    %1492 = vdwg.mxu0
    %1493 = vmatprep.subr.bf16.mxu0 %v1249
    %1494 = vmatpush1.bf16.msra.mxu0 %v1248
    %1495 = vmatprep.subr.bf16.mxu0 %v1253
    %1496 = vmatpush1.bf16.msra.mxu0 %v1252
    %1497 = vmatprep.subr.bf16.mxu0 %v1257
    %1498 = vmatpush1.bf16.msra.mxu0 %v1256
    %1499 = vmatprep.subr.bf16.mxu0 %v1261
    %1500 = vmatpush1.bf16.msra.mxu0 %v1260
    %1501 = vmatprep.subr.bf16.mxu0 %v1265
    %1502 = vmatpush1.bf16.msra.mxu0 %v1264
    %1503 = vmatprep.subr.bf16.mxu0 %v1269
    %1504 = vmatpush1.bf16.msra.mxu0 %v1268
    %1505 = vmatprep.subr.bf16.mxu0 %v1273
    %1506 = vmatpush1.bf16.msra.mxu0 %v1272
    %1507 = vmatprep.subr.bf16.mxu0 %v1277
    %1508 = vmatpush1.bf16.msra.mxu0 %v1276
    %1509 = vmatprep.subr.bf16.mxu0 %v1281
    %1510 = vmatpush1.bf16.msra.mxu0 %v1280
    %1511 = vmatprep.subr.bf16.mxu0 %v1285
    %1512 = vmatpush1.bf16.msra.mxu0 %v1284
    %1513 = vmatprep.subr.bf16.mxu0 %v1289
    %1514 = vmatpush1.bf16.msra.mxu0 %v1288
    %1515 = vmatprep.subr.bf16.mxu0 %v1293
    %1516 = vmatpush1.bf16.msra.mxu0 %v1292
    %1517 = vmatprep.subr.bf16.mxu0 %v1297
    %1518 = vmatpush1.bf16.msra.mxu0 %v1296
    %1519 = vmatprep.subr.bf16.mxu0 %v1301
    %1520 = vmatpush1.bf16.msra.mxu0 %v1300
    %1521 = vmatprep.subr.bf16.mxu0 %v1305
    %1522 = vmatpush1.bf16.msra.mxu0 %v1304
    %1523 = vmatprep.subr.bf16.mxu0 %v1309
    %1524 = vmatpush1.bf16.msra.mxu0 %v1308
    %1525 = vmatprep.mubr.bf16.mxu0 %v645
    %1526 = vmatmul.mubr.bf16.gmra.mrb[0].mxu0 %v644
    %v1527 = vpop.f32.mrb[0].mxu0
    %v1528 = vadd.f32 %v1475, %v1527
    %v1529 = vpop.f32.mrb[0].mxu0
    %v1530 = vadd.f32 %v1477, %v1529
    %v1531 = vpop.f32.mrb[0].mxu0
    %v1532 = vadd.f32 %v1479, %v1531
    %v1533 = vpop.f32.mrb[0].mxu0
    %v1534 = vadd.f32 %v1481, %v1533
    %1535 = vmatprep.mubr.bf16.mxu0 %v649
    %1536 = vmatmul.mubr.bf16.gmra.mrb[0].mxu0 %v648
    %v1537 = vpop.f32.mrb[0].mxu0
    %v1538 = vadd.f32 %v1485, %v1537
    %v1539 = vpop.f32.mrb[0].mxu0
    %v1540 = vadd.f32 %v1487, %v1539
    %v1541 = vpop.f32.mrb[0].mxu0
    %v1542 = vadd.f32 %v1489, %v1541
    %v1543 = vpop.f32.mrb[0].mxu0
    %v1544 = vadd.f32 %v1491, %v1543
    %1545 = vdwg.mxu0
    %1546 = vmatprep.subr.bf16.mxu0 %v1187
    %1547 = vmatpush1.bf16.msra.mxu0 %v1186
    %1548 = vmatprep.subr.bf16.mxu0 %v1191
    %1549 = vmatpush1.bf16.msra.mxu0 %v1190
    %1550 = vmatprep.subr.bf16.mxu0 %v1195
    %1551 = vmatpush1.bf16.msra.mxu0 %v1194
    %1552 = vmatprep.subr.bf16.mxu0 %v1199
    %1553 = vmatpush1.bf16.msra.mxu0 %v1198
    %1554 = vmatprep.subr.bf16.mxu0 %v1203
    %1555 = vmatpush1.bf16.msra.mxu0 %v1202
    %1556 = vmatprep.subr.bf16.mxu0 %v1207
    %1557 = vmatpush1.bf16.msra.mxu0 %v1206
    %1558 = vmatprep.subr.bf16.mxu0 %v1211
    %1559 = vmatpush1.bf16.msra.mxu0 %v1210
    %1560 = vmatprep.subr.bf16.mxu0 %v1215
    %1561 = vmatpush1.bf16.msra.mxu0 %v1214
    %1562 = vmatprep.subr.bf16.mxu0 %v1219
    %1563 = vmatpush1.bf16.msra.mxu0 %v1218
    %1564 = vmatprep.subr.bf16.mxu0 %v1223
    %1565 = vmatpush1.bf16.msra.mxu0 %v1222
    %1566 = vmatprep.subr.bf16.mxu0 %v1227
    %1567 = vmatpush1.bf16.msra.mxu0 %v1226
    %1568 = vmatprep.subr.bf16.mxu0 %v1231
    %1569 = vmatpush1.bf16.msra.mxu0 %v1230
    %1570 = vmatprep.subr.bf16.mxu0 %v1235
    %1571 = vmatpush1.bf16.msra.mxu0 %v1234
    %1572 = vmatprep.subr.bf16.mxu0 %v1239
    %1573 = vmatpush1.bf16.msra.mxu0 %v1238
    %1574 = vmatprep.subr.bf16.mxu0 %v1243
    %1575 = vmatpush1.bf16.msra.mxu0 %v1242
    %1576 = vmatprep.subr.bf16.mxu0 %v1247
    %1577 = vmatpush1.bf16.msra.mxu0 %v1246
    %1578 = vmatprep.mubr.bf16.mxu0 %v643
    %1579 = vmatmul.mubr.bf16.gmra.mrb[0].mxu0 %v642
    %v1580 = vpop.f32.mrb[0].mxu0
    %v1581 = vadd.f32 %v791, %v1580
    %v1582 = vpop.f32.mrb[0].mxu0
    %v1583 = vadd.f32 %v795, %v1582
    %v1584 = vpop.f32.mrb[0].mxu0
    %v1585 = vadd.f32 %v791, %v1584
    %v1586 = vpop.f32.mrb[0].mxu0
    %v1587 = vadd.f32 %v795, %v1586
    %1588 = vmatprep.mubr.bf16.mxu0 %v647
    %1589 = vmatmul.mubr.bf16.gmra.mrb[0].mxu0 %v646
    %v1590 = vpop.f32.mrb[0].mxu0
    %v1591 = vadd.f32 %v791, %v1590
    %v1592 = vpop.f32.mrb[0].mxu0
    %v1593 = vadd.f32 %v795, %v1592
    %v1594 = vpop.f32.mrb[0].mxu0
    %v1595 = vadd.f32 %v791, %v1594
    %v1596 = vpop.f32.mrb[0].mxu0
    %v1597 = vadd.f32 %v795, %v1596
    %1598 = vdwg.mxu0
    %1599 = vmatprep.subr.bf16.mxu0 %v1251
    %1600 = vmatpush1.bf16.msra.mxu0 %v1250
    %1601 = vmatprep.subr.bf16.mxu0 %v1255
    %1602 = vmatpush1.bf16.msra.mxu0 %v1254
    %1603 = vmatprep.subr.bf16.mxu0 %v1259
    %1604 = vmatpush1.bf16.msra.mxu0 %v1258
    %1605 = vmatprep.subr.bf16.mxu0 %v1263
    %1606 = vmatpush1.bf16.msra.mxu0 %v1262
    %1607 = vmatprep.subr.bf16.mxu0 %v1267
    %1608 = vmatpush1.bf16.msra.mxu0 %v1266
    %1609 = vmatprep.subr.bf16.mxu0 %v1271
    %1610 = vmatpush1.bf16.msra.mxu0 %v1270
    %1611 = vmatprep.subr.bf16.mxu0 %v1275
    %1612 = vmatpush1.bf16.msra.mxu0 %v1274
    %1613 = vmatprep.subr.bf16.mxu0 %v1279
    %1614 = vmatpush1.bf16.msra.mxu0 %v1278
    %1615 = vmatprep.subr.bf16.mxu0 %v1283
    %1616 = vmatpush1.bf16.msra.mxu0 %v1282
    %1617 = vmatprep.subr.bf16.mxu0 %v1287
    %1618 = vmatpush1.bf16.msra.mxu0 %v1286
    %1619 = vmatprep.subr.bf16.mxu0 %v1291
    %1620 = vmatpush1.bf16.msra.mxu0 %v1290
    %1621 = vmatprep.subr.bf16.mxu0 %v1295
    %1622 = vmatpush1.bf16.msra.mxu0 %v1294
    %1623 = vmatprep.subr.bf16.mxu0 %v1299
    %1624 = vmatpush1.bf16.msra.mxu0 %v1298
    %1625 = vmatprep.subr.bf16.mxu0 %v1303
    %1626 = vmatpush1.bf16.msra.mxu0 %v1302
    %1627 = vmatprep.subr.bf16.mxu0 %v1307
    %1628 = vmatpush1.bf16.msra.mxu0 %v1306
    %1629 = vmatprep.subr.bf16.mxu0 %v1311
    %1630 = vmatpush1.bf16.msra.mxu0 %v1310
    %1631 = vmatprep.mubr.bf16.mxu0 %v645
    %1632 = vmatmul.mubr.bf16.gmra.mrb[0].mxu0 %v644
    %v1633 = vpop.f32.mrb[0].mxu0
    %v1634 = vadd.f32 %v1581, %v1633
    %v1635 = vpop.f32.mrb[0].mxu0
    %v1636 = vadd.f32 %v1583, %v1635
    %v1637 = vpop.f32.mrb[0].mxu0
    %v1638 = vadd.f32 %v1585, %v1637
    %v1639 = vpop.f32.mrb[0].mxu0
    %v1640 = vadd.f32 %v1587, %v1639
    %1641 = vmatprep.mubr.bf16.mxu0 %v649
    %1642 = vmatmul.mubr.bf16.gmra.mrb[0].mxu0 %v648
    %v1643 = vpop.f32.mrb[0].mxu0
    %v1644 = vadd.f32 %v1591, %v1643
    %v1645 = vpop.f32.mrb[0].mxu0
    %v1646 = vadd.f32 %v1593, %v1645
    %v1647 = vpop.f32.mrb[0].mxu0
    %v1648 = vadd.f32 %v1595, %v1647
    %v1649 = vpop.f32.mrb[0].mxu0
    %v1650 = vadd.f32 %v1597, %v1649
    %1651 = vdwg.mxu0
    %v1652 = vsub.f32 0.0, %v1528
    %v1653 = vsub.f32 0.0, %v1530
    %v1654 = vsub.f32 0.0, %v1634
    %v1655 = vsub.f32 0.0, %v1636
    %v1656 = vsub.f32 0.0, %v1532
    %v1657 = vsub.f32 0.0, %v1534
    %v1658 = vsub.f32 0.0, %v1638
    %v1659 = vsub.f32 0.0, %v1640
    %v1660 = vsub.f32 0.0, %v1538
    %v1661 = vsub.f32 0.0, %v1540
    %v1662 = vsub.f32 0.0, %v1644
    %v1663 = vsub.f32 0.0, %v1646
    %v1664 = vsub.f32 0.0, %v1542
    %v1665 = vsub.f32 0.0, %v1544
    %v1666 = vsub.f32 0.0, %v1648
    %v1667 = vsub.f32 0.0, %v1650
    %v1668 = vmul.f32 %v1652, 1.442695
    %v1669 = vpow.pop %v1668
    %v1670 = vmul.f32 %v1653, 1.442695
    %v1671 = vpow.pop %v1670
    %v1672 = vmul.f32 %v1654, 1.442695
    %v1673 = vpow.pop %v1672
    %v1674 = vmul.f32 %v1655, 1.442695
    %v1675 = vpow.pop %v1674
    %v1676 = vmul.f32 %v1656, 1.442695
    %v1677 = vpow.pop %v1676
    %v1678 = vmul.f32 %v1657, 1.442695
    %v1679 = vpow.pop %v1678
    %v1680 = vmul.f32 %v1658, 1.442695
    %v1681 = vpow.pop %v1680
    %v1682 = vmul.f32 %v1659, 1.442695
    %v1683 = vpow.pop %v1682
    %v1684 = vmul.f32 %v1660, 1.442695
    %v1685 = vpow.pop %v1684
    %v1686 = vmul.f32 %v1661, 1.442695
    %v1687 = vpow.pop %v1686
    %v1688 = vmul.f32 %v1662, 1.442695
    %v1689 = vpow.pop %v1688
    %v1690 = vmul.f32 %v1663, 1.442695
    %v1691 = vpow.pop %v1690
    %v1692 = vmul.f32 %v1664, 1.442695
    %v1693 = vpow.pop %v1692
    %v1694 = vmul.f32 %v1665, 1.442695
    %v1695 = vpow.pop %v1694
    %v1696 = vmul.f32 %v1666, 1.442695
    %v1697 = vpow.pop %v1696
    %v1698 = vmul.f32 %v1667, 1.442695
    %v1699 = vpow.pop %v1698
    %v1700 = vadd.f32 %v1669, 1.0
    %v1701 = vadd.f32 %v1671, 1.0
    %v1702 = vadd.f32 %v1673, 1.0
    %v1703 = vadd.f32 %v1675, 1.0
    %v1704 = vadd.f32 %v1677, 1.0
    %v1705 = vadd.f32 %v1679, 1.0
    %v1706 = vadd.f32 %v1681, 1.0
    %v1707 = vadd.f32 %v1683, 1.0
    %v1708 = vadd.f32 %v1685, 1.0
    %v1709 = vadd.f32 %v1687, 1.0
    %v1710 = vadd.f32 %v1689, 1.0
    %v1711 = vadd.f32 %v1691, 1.0
    %v1712 = vadd.f32 %v1693, 1.0
    %v1713 = vadd.f32 %v1695, 1.0
    %v1714 = vadd.f32 %v1697, 1.0
    %v1715 = vadd.f32 %v1699, 1.0
    %v1716 = vrcp.pop %v1700
    %v1717 = vrcp.pop %v1701
    %v1718 = vrcp.pop %v1702
    %v1719 = vrcp.pop %v1703
    %v1720 = vrcp.pop %v1704
    %v1721 = vrcp.pop %v1705
    %v1722 = vrcp.pop %v1706
    %v1723 = vrcp.pop %v1707
    %v1724 = vrcp.pop %v1708
    %v1725 = vrcp.pop %v1709
    %v1726 = vrcp.pop %v1710
    %v1727 = vrcp.pop %v1711
    %v1728 = vrcp.pop %v1712
    %v1729 = vrcp.pop %v1713
    %v1730 = vrcp.pop %v1714
    %v1731 = vrcp.pop %v1715
    %v1732 = vmul.f32 %v1528, %v1716
    %v1733 = vmul.f32 %v1530, %v1717
    %v1734 = vmul.f32 %v1634, %v1718
    %v1735 = vmul.f32 %v1636, %v1719
    %v1736 = vmul.f32 %v1532, %v1720
    %v1737 = vmul.f32 %v1534, %v1721
    %v1738 = vmul.f32 %v1638, %v1722
    %v1739 = vmul.f32 %v1640, %v1723
    %v1740 = vmul.f32 %v1538, %v1724
    %v1741 = vmul.f32 %v1540, %v1725
    %v1742 = vmul.f32 %v1644, %v1726
    %v1743 = vmul.f32 %v1646, %v1727
    %v1744 = vmul.f32 %v1542, %v1728
    %v1745 = vmul.f32 %v1544, %v1729
    %v1746 = vmul.f32 %v1648, %v1730
    %v1747 = vmul.f32 %v1650, %v1731
    %v1748 = vpack.c.bf16 %v1736, %v1732
    %v1749 = vpack.c.bf16 %v1737, %v1733
    %v1750 = vpack.c.bf16 %v1738, %v1734
    %v1751 = vpack.c.bf16 %v1739, %v1735
    %v1752 = vpack.c.bf16 %v1744, %v1740
    %v1753 = vpack.c.bf16 %v1745, %v1741
    %v1754 = vpack.c.bf16 %v1746, %v1742
    %v1755 = vpack.c.bf16 %v1747, %v1743
    %v1756 = vld [vmem:[#allocation11] sm:$0xf]
    %v1757 = vld [vmem:[#allocation11 + $0x4] sm:$0xf]
    %v1758 = vld [vmem:[#allocation11 + $0x8] sm:$0xf]
    %v1759 = vld [vmem:[#allocation11 + $0xc] sm:$0xf]
    %v1760 = vld [vmem:[#allocation11 + $0x10] sm:$0xf]
    %v1761 = vld [vmem:[#allocation11 + $0x14] sm:$0xf]
    %v1762 = vld [vmem:[#allocation11 + $0x18] sm:$0xf]
    %v1763 = vld [vmem:[#allocation11 + $0x1c] sm:$0xf]
    %v1764 = vld [vmem:[#allocation11 + $0x20] sm:$0xf]
    %v1765 = vld [vmem:[#allocation11 + $0x24] sm:$0xf]
    %v1766 = vld [vmem:[#allocation11 + $0x28] sm:$0xf]
    %v1767 = vld [vmem:[#allocation11 + $0x2c] sm:$0xf]
    %v1768 = vld [vmem:[#allocation11 + $0x30] sm:$0xf]
    %v1769 = vld [vmem:[#allocation11 + $0x34] sm:$0xf]
    %v1770 = vld [vmem:[#allocation11 + $0x38] sm:$0xf]
    %v1771 = vld [vmem:[#allocation11 + $0x3c] sm:$0xf]
    %v1772 = vld [vmem:[#allocation11 + $0x40] sm:$0xf]
    %v1773 = vld [vmem:[#allocation11 + $0x44] sm:$0xf]
    %v1774 = vld [vmem:[#allocation11 + $0x48] sm:$0xf]
    %v1775 = vld [vmem:[#allocation11 + $0x4c] sm:$0xf]
    %v1776 = vld [vmem:[#allocation11 + $0x50] sm:$0xf]
    %v1777 = vld [vmem:[#allocation11 + $0x54] sm:$0xf]
    %v1778 = vld [vmem:[#allocation11 + $0x58] sm:$0xf]
    %v1779 = vld [vmem:[#allocation11 + $0x5c] sm:$0xf]
    %v1780 = vld [vmem:[#allocation11 + $0x60] sm:$0xf]
    %v1781 = vld [vmem:[#allocation11 + $0x64] sm:$0xf]
    %v1782 = vld [vmem:[#allocation11 + $0x68] sm:$0xf]
    %v1783 = vld [vmem:[#allocation11 + $0x6c] sm:$0xf]
    %v1784 = vld [vmem:[#allocation11 + $0x70] sm:$0xf]
    %v1785 = vld [vmem:[#allocation11 + $0x74] sm:$0xf]
    %v1786 = vld [vmem:[#allocation11 + $0x78] sm:$0xf]
    %v1787 = vld [vmem:[#allocation11 + $0x7c] sm:$0xf]
    %v1788 = vld [vmem:[#allocation11 + $0x80] sm:$0xf]
    %v1789 = vld [vmem:[#allocation11 + $0x84] sm:$0xf]
    %v1790 = vld [vmem:[#allocation11 + $0x88] sm:$0xf]
    %v1791 = vld [vmem:[#allocation11 + $0x8c] sm:$0xf]
    %v1792 = vld [vmem:[#allocation11 + $0x90] sm:$0xf]
    %v1793 = vld [vmem:[#allocation11 + $0x94] sm:$0xf]
    %v1794 = vld [vmem:[#allocation11 + $0x98] sm:$0xf]
    %v1795 = vld [vmem:[#allocation11 + $0x9c] sm:$0xf]
    %v1796 = vld [vmem:[#allocation11 + $0xa0] sm:$0xf]
    %v1797 = vld [vmem:[#allocation11 + $0xa4] sm:$0xf]
    %v1798 = vld [vmem:[#allocation11 + $0xa8] sm:$0xf]
    %v1799 = vld [vmem:[#allocation11 + $0xac] sm:$0xf]
    %v1800 = vld [vmem:[#allocation11 + $0xb0] sm:$0xf]
    %v1801 = vld [vmem:[#allocation11 + $0xb4] sm:$0xf]
    %v1802 = vld [vmem:[#allocation11 + $0xb8] sm:$0xf]
    %v1803 = vld [vmem:[#allocation11 + $0xbc] sm:$0xf]
    %v1804 = vld [vmem:[#allocation11 + $0xc0] sm:$0xf]
    %v1805 = vld [vmem:[#allocation11 + $0xc4] sm:$0xf]
    %v1806 = vld [vmem:[#allocation11 + $0xc8] sm:$0xf]
    %v1807 = vld [vmem:[#allocation11 + $0xcc] sm:$0xf]
    %v1808 = vld [vmem:[#allocation11 + $0xd0] sm:$0xf]
    %v1809 = vld [vmem:[#allocation11 + $0xd4] sm:$0xf]
    %v1810 = vld [vmem:[#allocation11 + $0xd8] sm:$0xf]
    %v1811 = vld [vmem:[#allocation11 + $0xdc] sm:$0xf]
    %v1812 = vld [vmem:[#allocation11 + $0xe0] sm:$0xf]
    %v1813 = vld [vmem:[#allocation11 + $0xe4] sm:$0xf]
    %v1814 = vld [vmem:[#allocation11 + $0xe8] sm:$0xf]
    %v1815 = vld [vmem:[#allocation11 + $0xec] sm:$0xf]
    %v1816 = vld [vmem:[#allocation11 + $0xf0] sm:$0xf]
    %v1817 = vld [vmem:[#allocation11 + $0xf4] sm:$0xf]
    %v1818 = vld [vmem:[#allocation11 + $0xf8] sm:$0xf]
    %v1819 = vld [vmem:[#allocation11 + $0xfc] sm:$0xf]
    %v1820 = vld [vmem:[%s11] sm:$0x1]
    %v1822 = vlaneseq
    %v1823 = vshrl.u32 %v1822, 7
    %v1824 = vsub.s32 0, %v1823
    %v1825 = vrot.slane %v1820, %v1824
    %v1891 = vunpack.c.l.b16 %v1756
    %v1892 = vunpack.c.l.b16 %v1757
    %v1893 = vunpack.c.l.b16 %v1758
    %v1894 = vunpack.c.l.b16 %v1759
    %v1895 = vunpack.c.l.b16 %v1760
    %v1896 = vunpack.c.l.b16 %v1761
    %v1897 = vunpack.c.l.b16 %v1762
    %v1898 = vunpack.c.l.b16 %v1763
    %v1899 = vunpack.c.l.b16 %v1764
    %v1900 = vunpack.c.l.b16 %v1765
    %v1901 = vunpack.c.l.b16 %v1766
    %v1902 = vunpack.c.l.b16 %v1767
    %v1903 = vunpack.c.l.b16 %v1768
    %v1904 = vunpack.c.l.b16 %v1769
    %v1905 = vunpack.c.l.b16 %v1770
    %v1906 = vunpack.c.l.b16 %v1771
    %v1907 = vunpack.c.l.b16 %v1772
    %v1908 = vunpack.c.l.b16 %v1773
    %v1909 = vunpack.c.l.b16 %v1774
    %v1910 = vunpack.c.l.b16 %v1775
    %v1911 = vunpack.c.l.b16 %v1776
    %v1912 = vunpack.c.l.b16 %v1777
    %v1913 = vunpack.c.l.b16 %v1778
    %v1914 = vunpack.c.l.b16 %v1779
    %v1915 = vunpack.c.l.b16 %v1780
    %v1916 = vunpack.c.l.b16 %v1781
    %v1917 = vunpack.c.l.b16 %v1782
    %v1918 = vunpack.c.l.b16 %v1783
    %v1919 = vunpack.c.l.b16 %v1784
    %v1920 = vunpack.c.l.b16 %v1785
    %v1921 = vunpack.c.l.b16 %v1786
    %v1922 = vunpack.c.l.b16 %v1787
    %v1923 = vunpack.c.l.b16 %v1788
    %v1924 = vunpack.c.l.b16 %v1789
    %v1925 = vunpack.c.l.b16 %v1790
    %v1926 = vunpack.c.l.b16 %v1791
    %v1927 = vunpack.c.l.b16 %v1792
    %v1928 = vunpack.c.l.b16 %v1793
    %v1929 = vunpack.c.l.b16 %v1794
    %v1930 = vunpack.c.l.b16 %v1795
    %v1931 = vunpack.c.l.b16 %v1796
    %v1932 = vunpack.c.l.b16 %v1797
    %v1933 = vunpack.c.l.b16 %v1798
    %v1934 = vunpack.c.l.b16 %v1799
    %v1935 = vunpack.c.l.b16 %v1800
    %v1936 = vunpack.c.l.b16 %v1801
    %v1937 = vunpack.c.l.b16 %v1802
    %v1938 = vunpack.c.l.b16 %v1803
    %v1939 = vunpack.c.l.b16 %v1804
    %v1940 = vunpack.c.l.b16 %v1805
    %v1941 = vunpack.c.l.b16 %v1806
    %v1942 = vunpack.c.l.b16 %v1807
    %v1943 = vunpack.c.l.b16 %v1808
    %v1944 = vunpack.c.l.b16 %v1809
    %v1945 = vunpack.c.l.b16 %v1810
    %v1946 = vunpack.c.l.b16 %v1811
    %v1947 = vunpack.c.l.b16 %v1812
    %v1948 = vunpack.c.l.b16 %v1813
    %v1949 = vunpack.c.l.b16 %v1814
    %v1950 = vunpack.c.l.b16 %v1815
    %v1951 = vunpack.c.l.b16 %v1816
    %v1952 = vunpack.c.l.b16 %v1817
    %v1953 = vunpack.c.l.b16 %v1818
    %v1954 = vunpack.c.l.b16 %v1819
    %v1955 = vpack.c.b16 %v1892, %v1891
    %v1956 = vpack.c.b16 %v1894, %v1893
    %v1957 = vpack.c.b16 %v1896, %v1895
    %v1958 = vpack.c.b16 %v1898, %v1897
    %v1959 = vpack.c.b16 %v1900, %v1899
    %v1960 = vpack.c.b16 %v1902, %v1901
    %v1961 = vpack.c.b16 %v1904, %v1903
    %v1962 = vpack.c.b16 %v1906, %v1905
    %v1963 = vpack.c.b16 %v1908, %v1907
    %v1964 = vpack.c.b16 %v1910, %v1909
    %v1965 = vpack.c.b16 %v1912, %v1911
    %v1966 = vpack.c.b16 %v1914, %v1913
    %v1967 = vpack.c.b16 %v1916, %v1915
    %v1968 = vpack.c.b16 %v1918, %v1917
    %v1969 = vpack.c.b16 %v1920, %v1919
    %v1970 = vpack.c.b16 %v1922, %v1921
    %v1971 = vpack.c.b16 %v1924, %v1923
    %v1972 = vpack.c.b16 %v1926, %v1925
    %v1973 = vpack.c.b16 %v1928, %v1927
    %v1974 = vpack.c.b16 %v1930, %v1929
    %v1975 = vpack.c.b16 %v1932, %v1931
    %v1976 = vpack.c.b16 %v1934, %v1933
    %v1977 = vpack.c.b16 %v1936, %v1935
    %v1978 = vpack.c.b16 %v1938, %v1937
    %v1979 = vpack.c.b16 %v1940, %v1939
    %v1980 = vpack.c.b16 %v1942, %v1941
    %v1981 = vpack.c.b16 %v1944, %v1943
    %v1982 = vpack.c.b16 %v1946, %v1945
    %v1983 = vpack.c.b16 %v1948, %v1947
    %v1984 = vpack.c.b16 %v1950, %v1949
    %v1985 = vpack.c.b16 %v1952, %v1951
    %v1986 = vpack.c.b16 %v1954, %v1953
    %2019 = vmatprep.subr.bf16.mxu0 0
    %2020 = vmatpush1.bf16.msra.mxu0 %v1955
    %2021 = vmatprep.subr.bf16.mxu0 0
    %2022 = vmatpush1.bf16.msra.mxu0 %v1956
    %2023 = vmatprep.subr.bf16.mxu0 0
    %2024 = vmatpush1.bf16.msra.mxu0 %v1957
    %2025 = vmatprep.subr.bf16.mxu0 0
    %2026 = vmatpush1.bf16.msra.mxu0 %v1958
    %2027 = vmatprep.subr.bf16.mxu0 0
    %2028 = vmatpush1.bf16.msra.mxu0 %v1959
    %2029 = vmatprep.subr.bf16.mxu0 0
    %2030 = vmatpush1.bf16.msra.mxu0 %v1960
    %2031 = vmatprep.subr.bf16.mxu0 0
    %2032 = vmatpush1.bf16.msra.mxu0 %v1961
    %2033 = vmatprep.subr.bf16.mxu0 0
    %2034 = vmatpush1.bf16.msra.mxu0 %v1962
    %2035 = vmatprep.subr.bf16.mxu0 0
    %2036 = vmatpush1.bf16.msra.mxu0 %v1963
    %2037 = vmatprep.subr.bf16.mxu0 0
    %2038 = vmatpush1.bf16.msra.mxu0 %v1964
    %2039 = vmatprep.subr.bf16.mxu0 0
    %2040 = vmatpush1.bf16.msra.mxu0 %v1965
    %2041 = vmatprep.subr.bf16.mxu0 0
    %2042 = vmatpush1.bf16.msra.mxu0 %v1966
    %2043 = vmatprep.subr.bf16.mxu0 0
    %2044 = vmatpush1.bf16.msra.mxu0 %v1967
    %2045 = vmatprep.subr.bf16.mxu0 0
    %2046 = vmatpush1.bf16.msra.mxu0 %v1968
    %2047 = vmatprep.subr.bf16.mxu0 0
    %2048 = vmatpush1.bf16.msra.mxu0 %v1969
    %2049 = vmatprep.subr.bf16.mxu0 0
    %2050 = vmatpush1.bf16.msra.mxu0 %v1970
    %2051 = vmatprep.mubr.bf16.mxu0 %v1749
    %2052 = vmatmul.mubr.bf16.gmra.mrb[0].mxu0 %v1748
    %v2053 = vpop.f32.mrb[0].mxu0
    %v2054 = vadd.f32 %v1825, %v2053
    %v2055 = vpop.f32.mrb[0].mxu0
    %v2056 = vpop.f32.mrb[0].mxu0
    %v2057 = vadd.f32 %v1825, %v2056
    %v2058 = vpop.f32.mrb[0].mxu0
    %2059 = vmatprep.mubr.bf16.mxu0 %v1753
    %2060 = vmatmul.mubr.bf16.gmra.mrb[0].mxu0 %v1752
    %v2061 = vpop.f32.mrb[0].mxu0
    %v2062 = vadd.f32 %v1825, %v2061
    %v2063 = vpop.f32.mrb[0].mxu0
    %v2064 = vpop.f32.mrb[0].mxu0
    %v2065 = vadd.f32 %v1825, %v2064
    %v2066 = vpop.f32.mrb[0].mxu0
    %2067 = vdwg.mxu0
    %2068 = vmatprep.subr.bf16.mxu0 0
    %2069 = vmatpush1.bf16.msra.mxu0 %v1971
    %2070 = vmatprep.subr.bf16.mxu0 0
    %2071 = vmatpush1.bf16.msra.mxu0 %v1972
    %2072 = vmatprep.subr.bf16.mxu0 0
    %2073 = vmatpush1.bf16.msra.mxu0 %v1973
    %2074 = vmatprep.subr.bf16.mxu0 0
    %2075 = vmatpush1.bf16.msra.mxu0 %v1974
    %2076 = vmatprep.subr.bf16.mxu0 0
    %2077 = vmatpush1.bf16.msra.mxu0 %v1975
    %2078 = vmatprep.subr.bf16.mxu0 0
    %2079 = vmatpush1.bf16.msra.mxu0 %v1976
    %2080 = vmatprep.subr.bf16.mxu0 0
    %2081 = vmatpush1.bf16.msra.mxu0 %v1977
    %2082 = vmatprep.subr.bf16.mxu0 0
    %2083 = vmatpush1.bf16.msra.mxu0 %v1978
    %2084 = vmatprep.subr.bf16.mxu0 0
    %2085 = vmatpush1.bf16.msra.mxu0 %v1979
    %2086 = vmatprep.subr.bf16.mxu0 0
    %2087 = vmatpush1.bf16.msra.mxu0 %v1980
    %2088 = vmatprep.subr.bf16.mxu0 0
    %2089 = vmatpush1.bf16.msra.mxu0 %v1981
    %2090 = vmatprep.subr.bf16.mxu0 0
    %2091 = vmatpush1.bf16.msra.mxu0 %v1982
    %2092 = vmatprep.subr.bf16.mxu0 0
    %2093 = vmatpush1.bf16.msra.mxu0 %v1983
    %2094 = vmatprep.subr.bf16.mxu0 0
    %2095 = vmatpush1.bf16.msra.mxu0 %v1984
    %2096 = vmatprep.subr.bf16.mxu0 0
    %2097 = vmatpush1.bf16.msra.mxu0 %v1985
    %2098 = vmatprep.subr.bf16.mxu0 0
    %2099 = vmatpush1.bf16.msra.mxu0 %v1986
    %2100 = vmatprep.mubr.bf16.mxu0 %v1751
    %2101 = vmatmul.mubr.bf16.gmra.mrb[0].mxu0 %v1750
    %v2102 = vpop.f32.mrb[0].mxu0
    %v2103 = vadd.f32 %v2054, %v2102
    %v2104 = vpop.f32.mrb[0].mxu0
    %v2105 = vpop.f32.mrb[0].mxu0
    %v2106 = vadd.f32 %v2057, %v2105
    %v2107 = vpop.f32.mrb[0].mxu0
    %2108 = vmatprep.mubr.bf16.mxu0 %v1755
    %2109 = vmatmul.mubr.bf16.gmra.mrb[0].mxu0 %v1754
    %v2110 = vpop.f32.mrb[0].mxu0
    %v2111 = vadd.f32 %v2062, %v2110
    %v2112 = vpop.f32.mrb[0].mxu0
    %v2113 = vpop.f32.mrb[0].mxu0
    %v2114 = vadd.f32 %v2065, %v2113
    %v2115 = vpop.f32.mrb[0].mxu0
    %2116 = vdwg.mxu0
    %v2117 = vld [vmem:[%s12] sm:$0xff]
    %v2118 = vld [vmem:[%s12 + $0x8] sm:$0xff]
    %v2119 = vld [vmem:[%s12 + $0x10] sm:$0xff]
    %v2120 = vld [vmem:[%s12 + $0x18] sm:$0xff]
    %v2121 = vadd.f32 %v2103, %v2117
    %v2122 = vadd.f32 %v2106, %v2118
    %v2123 = vadd.f32 %v2111, %v2119
    %v2124 = vadd.f32 %v2114, %v2120
    %2125 = vst [vmem:[#allocation13] sm:$0xff] %v2121
    %2126 = vst [vmem:[#allocation13 + $0x8] sm:$0xff] %v2122
    %2127 = vst [vmem:[#allocation13 + $0x10] sm:$0xff] %v2123
    %2128 = vst [vmem:[#allocation13 + $0x18] sm:$0xff] %v2124
    %s2129 = scalar_lea.vmem [#allocation8], 256
    %v2130 = vld [vmem:[%s2129] sm:$0xff]
    %v2131 = vld [vmem:[%s2129 + $0x8] sm:$0xff]
    %v2132 = vld [vmem:[%s2129 + $0x10] sm:$0xff]
    %v2133 = vld [vmem:[%s2129 + $0x18] sm:$0xff]
    %v2134 = vld [vmem:[%s2129 + $0x20] sm:$0xff]
    %v2135 = vld [vmem:[%s2129 + $0x28] sm:$0xff]
    %v2136 = vld [vmem:[%s2129 + $0x30] sm:$0xff]
    %v2137 = vld [vmem:[%s2129 + $0x38] sm:$0xff]
    %v2138 = vld [vmem:[%s2129 + $0x40] sm:$0xff]
    %v2139 = vld [vmem:[%s2129 + $0x48] sm:$0xff]
    %v2140 = vld [vmem:[%s2129 + $0x50] sm:$0xff]
    %v2141 = vld [vmem:[%s2129 + $0x58] sm:$0xff]
    %v2142 = vld [vmem:[%s2129 + $0x60] sm:$0xff]
    %v2143 = vld [vmem:[%s2129 + $0x68] sm:$0xff]
    %v2144 = vld [vmem:[%s2129 + $0x70] sm:$0xff]
    %v2145 = vld [vmem:[%s2129 + $0x78] sm:$0xff]
    %v2146 = vld [vmem:[%s2129 + $0x80] sm:$0xff]
    %v2147 = vld [vmem:[%s2129 + $0x88] sm:$0xff]
    %v2148 = vld [vmem:[%s2129 + $0x90] sm:$0xff]
    %v2149 = vld [vmem:[%s2129 + $0x98] sm:$0xff]
    %v2150 = vld [vmem:[%s2129 + $0xa0] sm:$0xff]
    %v2151 = vld [vmem:[%s2129 + $0xa8] sm:$0xff]
    %v2152 = vld [vmem:[%s2129 + $0xb0] sm:$0xff]
    %v2153 = vld [vmem:[%s2129 + $0xb8] sm:$0xff]
    %v2154 = vld [vmem:[%s2129 + $0xc0] sm:$0xff]
    %v2155 = vld [vmem:[%s2129 + $0xc8] sm:$0xff]
    %v2156 = vld [vmem:[%s2129 + $0xd0] sm:$0xff]
    %v2157 = vld [vmem:[%s2129 + $0xd8] sm:$0xff]
    %v2158 = vld [vmem:[%s2129 + $0xe0] sm:$0xff]
    %v2159 = vld [vmem:[%s2129 + $0xe8] sm:$0xff]
    %v2160 = vld [vmem:[%s2129 + $0xf0] sm:$0xff]
    %v2161 = vld [vmem:[%s2129 + $0xf8] sm:$0xff]
    %s2162 = scalar_lea.vmem %s7, 4
    %v2163 = vld [vmem:[%s2162] sm:$0xf]
    %v2165 = vlaneseq
    %v2166 = vshrl.u32 %v2165, 7
    %v2167 = vsub.s32 0, %v2166
    %v2168 = vrot.slane %v2163, %v2167
    %v2169 = vlaneseq
    %v2170 = vshrl.u32 %v2169, 7
    %v2171 = vsub.s32 1, %v2170
    %v2172 = vrot.slane %v2163, %v2171
    %v2173 = vlaneseq
    %v2174 = vshrl.u32 %v2173, 7
    %v2175 = vsub.s32 2, %v2174
    %v2176 = vrot.slane %v2163, %v2175
    %v2177 = vlaneseq
    %v2178 = vshrl.u32 %v2177, 7
    %v2179 = vsub.s32 3, %v2178
    %v2180 = vrot.slane %v2163, %v2179
    %v2187 = vunpack.c.l.b16 %v212
    %v2188 = vunpack.c.l.b16 %v213
    %v2189 = vpack.c.b16 %v2188, %v2187
    %v2223 = vunpack.c.l.b16 %v2130
    %v2224 = vunpack.c.h.b16 %v2130
    %v2225 = vunpack.c.l.b16 %v2131
    %v2226 = vunpack.c.h.b16 %v2131
    %v2227 = vunpack.c.l.b16 %v2132
    %v2228 = vunpack.c.h.b16 %v2132
    %v2229 = vunpack.c.l.b16 %v2133
    %v2230 = vunpack.c.h.b16 %v2133
    %v2231 = vunpack.c.l.b16 %v2134
    %v2232 = vunpack.c.h.b16 %v2134
    %v2233 = vunpack.c.l.b16 %v2135
    %v2234 = vunpack.c.h.b16 %v2135
    %v2235 = vunpack.c.l.b16 %v2136
    %v2236 = vunpack.c.h.b16 %v2136
    %v2237 = vunpack.c.l.b16 %v2137
    %v2238 = vunpack.c.h.b16 %v2137
    %v2239 = vunpack.c.l.b16 %v2138
    %v2240 = vunpack.c.h.b16 %v2138
    %v2241 = vunpack.c.l.b16 %v2139
    %v2242 = vunpack.c.h.b16 %v2139
    %v2243 = vunpack.c.l.b16 %v2140
    %v2244 = vunpack.c.h.b16 %v2140
    %v2245 = vunpack.c.l.b16 %v2141
    %v2246 = vunpack.c.h.b16 %v2141
    %v2247 = vunpack.c.l.b16 %v2142
    %v2248 = vunpack.c.h.b16 %v2142
    %v2249 = vunpack.c.l.b16 %v2143
    %v2250 = vunpack.c.h.b16 %v2143
    %v2251 = vunpack.c.l.b16 %v2144
    %v2252 = vunpack.c.h.b16 %v2144
    %v2253 = vunpack.c.l.b16 %v2145
    %v2254 = vunpack.c.h.b16 %v2145
    %v2255 = vunpack.c.l.b16 %v2146
    %v2256 = vunpack.c.h.b16 %v2146
    %v2257 = vunpack.c.l.b16 %v2147
    %v2258 = vunpack.c.h.b16 %v2147
    %v2259 = vunpack.c.l.b16 %v2148
    %v2260 = vunpack.c.h.b16 %v2148
    %v2261 = vunpack.c.l.b16 %v2149
    %v2262 = vunpack.c.h.b16 %v2149
    %v2263 = vunpack.c.l.b16 %v2150
    %v2264 = vunpack.c.h.b16 %v2150
    %v2265 = vunpack.c.l.b16 %v2151
    %v2266 = vunpack.c.h.b16 %v2151
    %v2267 = vunpack.c.l.b16 %v2152
    %v2268 = vunpack.c.h.b16 %v2152
    %v2269 = vunpack.c.l.b16 %v2153
    %v2270 = vunpack.c.h.b16 %v2153
    %v2271 = vunpack.c.l.b16 %v2154
    %v2272 = vunpack.c.h.b16 %v2154
    %v2273 = vunpack.c.l.b16 %v2155
    %v2274 = vunpack.c.h.b16 %v2155
    %v2275 = vunpack.c.l.b16 %v2156
    %v2276 = vunpack.c.h.b16 %v2156
    %v2277 = vunpack.c.l.b16 %v2157
    %v2278 = vunpack.c.h.b16 %v2157
    %v2279 = vunpack.c.l.b16 %v2158
    %v2280 = vunpack.c.h.b16 %v2158
    %v2281 = vunpack.c.l.b16 %v2159
    %v2282 = vunpack.c.h.b16 %v2159
    %v2283 = vunpack.c.l.b16 %v2160
    %v2284 = vunpack.c.h.b16 %v2160
    %v2285 = vunpack.c.l.b16 %v2161
    %v2286 = vunpack.c.h.b16 %v2161
    %v2287 = vpack.c.b16 %v2227, %v2223
    %v2288 = vpack.c.b16 %v2228, %v2224
    %v2289 = vpack.c.b16 %v2229, %v2225
    %v2290 = vpack.c.b16 %v2230, %v2226
    %v2291 = vpack.c.b16 %v2235, %v2231
    %v2292 = vpack.c.b16 %v2236, %v2232
    %v2293 = vpack.c.b16 %v2237, %v2233
    %v2294 = vpack.c.b16 %v2238, %v2234
    %v2295 = vpack.c.b16 %v2243, %v2239
    %v2296 = vpack.c.b16 %v2244, %v2240
    %v2297 = vpack.c.b16 %v2245, %v2241
    %v2298 = vpack.c.b16 %v2246, %v2242
    %v2299 = vpack.c.b16 %v2251, %v2247
    %v2300 = vpack.c.b16 %v2252, %v2248
    %v2301 = vpack.c.b16 %v2253, %v2249
    %v2302 = vpack.c.b16 %v2254, %v2250
    %v2303 = vpack.c.b16 %v2259, %v2255
    %v2304 = vpack.c.b16 %v2260, %v2256
    %v2305 = vpack.c.b16 %v2261, %v2257
    %v2306 = vpack.c.b16 %v2262, %v2258
    %v2307 = vpack.c.b16 %v2267, %v2263
    %v2308 = vpack.c.b16 %v2268, %v2264
    %v2309 = vpack.c.b16 %v2269, %v2265
    %v2310 = vpack.c.b16 %v2270, %v2266
    %v2311 = vpack.c.b16 %v2275, %v2271
    %v2312 = vpack.c.b16 %v2276, %v2272
    %v2313 = vpack.c.b16 %v2277, %v2273
    %v2314 = vpack.c.b16 %v2278, %v2274
    %v2315 = vpack.c.b16 %v2283, %v2279
    %v2316 = vpack.c.b16 %v2284, %v2280
    %v2317 = vpack.c.b16 %v2285, %v2281
    %v2318 = vpack.c.b16 %v2286, %v2282
    %2351 = vmatprep.subr.bf16.mxu0 %v2288
    %2352 = vmatpush1.bf16.msra.mxu0 %v2287
    %2353 = vmatprep.subr.bf16.mxu0 %v2292
    %2354 = vmatpush1.bf16.msra.mxu0 %v2291
    %2355 = vmatprep.subr.bf16.mxu0 %v2296
    %2356 = vmatpush1.bf16.msra.mxu0 %v2295
    %2357 = vmatprep.subr.bf16.mxu0 %v2300
    %2358 = vmatpush1.bf16.msra.mxu0 %v2299
    %2359 = vmatprep.subr.bf16.mxu0 %v2304
    %2360 = vmatpush1.bf16.msra.mxu0 %v2303
    %2361 = vmatprep.subr.bf16.mxu0 %v2308
    %2362 = vmatpush1.bf16.msra.mxu0 %v2307
    %2363 = vmatprep.subr.bf16.mxu0 %v2312
    %2364 = vmatpush1.bf16.msra.mxu0 %v2311
    %2365 = vmatprep.subr.bf16.mxu0 %v2316
    %2366 = vmatpush1.bf16.msra.mxu0 %v2315
    %2367 = vmatprep.subr.bf16.mxu0 0
    %2368 = vmatpush1.bf16.msra.mxu0 0
    %2369 = vmatprep.subr.bf16.mxu0 0
    %2370 = vmatpush1.bf16.msra.mxu0 0
    %2371 = vmatprep.subr.bf16.mxu0 0
    %2372 = vmatpush1.bf16.msra.mxu0 0
    %2373 = vmatprep.subr.bf16.mxu0 0
    %2374 = vmatpush1.bf16.msra.mxu0 0
    %2375 = vmatprep.subr.bf16.mxu0 0
    %2376 = vmatpush1.bf16.msra.mxu0 0
    %2377 = vmatprep.subr.bf16.mxu0 0
    %2378 = vmatpush1.bf16.msra.mxu0 0
    %2379 = vmatprep.subr.bf16.mxu0 0
    %2380 = vmatpush1.bf16.msra.mxu0 0
    %2381 = vmatprep.subr.bf16.mxu0 0
    %2382 = vmatpush1.bf16.msra.mxu0 0
    %2383 = vmatprep.mubr.bf16.mxu0 0
    %2384 = vmatmul.mubr.bf16.gmra.mrb[0].mxu0 %v2189
    %v2385 = vpop.f32.mrb[0].mxu0
    %v2386 = vadd.f32 %v2168, %v2385
    %v2387 = vpop.f32.mrb[0].mxu0
    %v2388 = vadd.f32 %v2172, %v2387
    %v2389 = vpop.f32.mrb[0].mxu0
    %v2390 = vadd.f32 %v2168, %v2389
    %v2391 = vpop.f32.mrb[0].mxu0
    %v2392 = vadd.f32 %v2172, %v2391
    %2393 = vdwg.mxu0
    %2394 = vmatprep.subr.bf16.mxu0 %v2290
    %2395 = vmatpush1.bf16.msra.mxu0 %v2289
    %2396 = vmatprep.subr.bf16.mxu0 %v2294
    %2397 = vmatpush1.bf16.msra.mxu0 %v2293
    %2398 = vmatprep.subr.bf16.mxu0 %v2298
    %2399 = vmatpush1.bf16.msra.mxu0 %v2297
    %2400 = vmatprep.subr.bf16.mxu0 %v2302
    %2401 = vmatpush1.bf16.msra.mxu0 %v2301
    %2402 = vmatprep.subr.bf16.mxu0 %v2306
    %2403 = vmatpush1.bf16.msra.mxu0 %v2305
    %2404 = vmatprep.subr.bf16.mxu0 %v2310
    %2405 = vmatpush1.bf16.msra.mxu0 %v2309
    %2406 = vmatprep.subr.bf16.mxu0 %v2314
    %2407 = vmatpush1.bf16.msra.mxu0 %v2313
    %2408 = vmatprep.subr.bf16.mxu0 %v2318
    %2409 = vmatpush1.bf16.msra.mxu0 %v2317
    %2410 = vmatprep.subr.bf16.mxu0 0
    %2411 = vmatpush1.bf16.msra.mxu0 0
    %2412 = vmatprep.subr.bf16.mxu0 0
    %2413 = vmatpush1.bf16.msra.mxu0 0
    %2414 = vmatprep.subr.bf16.mxu0 0
    %2415 = vmatpush1.bf16.msra.mxu0 0
    %2416 = vmatprep.subr.bf16.mxu0 0
    %2417 = vmatpush1.bf16.msra.mxu0 0
    %2418 = vmatprep.subr.bf16.mxu0 0
    %2419 = vmatpush1.bf16.msra.mxu0 0
    %2420 = vmatprep.subr.bf16.mxu0 0
    %2421 = vmatpush1.bf16.msra.mxu0 0
    %2422 = vmatprep.subr.bf16.mxu0 0
    %2423 = vmatpush1.bf16.msra.mxu0 0
    %2424 = vmatprep.subr.bf16.mxu0 0
    %2425 = vmatpush1.bf16.msra.mxu0 0
    %2426 = vmatprep.mubr.bf16.mxu0 0
    %2427 = vmatmul.mubr.bf16.gmra.mrb[0].mxu0 %v2189
    %v2428 = vpop.f32.mrb[0].mxu0
    %v2429 = vadd.f32 %v2176, %v2428
    %v2430 = vpop.f32.mrb[0].mxu0
    %v2431 = vadd.f32 %v2180, %v2430
    %v2432 = vpop.f32.mrb[0].mxu0
    %v2433 = vadd.f32 %v2176, %v2432
    %v2434 = vpop.f32.mrb[0].mxu0
    %v2435 = vadd.f32 %v2180, %v2434
    %2436 = vdwg.mxu0
    %v2437 = vsub.f32 0.0, %v2386
    %v2438 = vsub.f32 0.0, %v2388
    %v2439 = vsub.f32 0.0, %v2429
    %v2440 = vsub.f32 0.0, %v2431
    %v2441 = vsub.f32 0.0, %v2390
    %v2442 = vsub.f32 0.0, %v2392
    %v2443 = vsub.f32 0.0, %v2433
    %v2444 = vsub.f32 0.0, %v2435
    %v2445 = vmul.f32 %v2437, 1.442695
    %v2446 = vpow.pop %v2445
    %v2447 = vmul.f32 %v2438, 1.442695
    %v2448 = vpow.pop %v2447
    %v2449 = vmul.f32 %v2439, 1.442695
    %v2450 = vpow.pop %v2449
    %v2451 = vmul.f32 %v2440, 1.442695
    %v2452 = vpow.pop %v2451
    %v2453 = vmul.f32 %v2441, 1.442695
    %v2454 = vpow.pop %v2453
    %v2455 = vmul.f32 %v2442, 1.442695
    %v2456 = vpow.pop %v2455
    %v2457 = vmul.f32 %v2443, 1.442695
    %v2458 = vpow.pop %v2457
    %v2459 = vmul.f32 %v2444, 1.442695
    %v2460 = vpow.pop %v2459
    %v2461 = vadd.f32 %v2446, 1.0
    %v2462 = vadd.f32 %v2448, 1.0
    %v2463 = vadd.f32 %v2450, 1.0
    %v2464 = vadd.f32 %v2452, 1.0
    %v2465 = vadd.f32 %v2454, 1.0
    %v2466 = vadd.f32 %v2456, 1.0
    %v2467 = vadd.f32 %v2458, 1.0
    %v2468 = vadd.f32 %v2460, 1.0
    %v2469 = vrcp.pop %v2461
    %v2470 = vrcp.pop %v2462
    %v2471 = vrcp.pop %v2463
    %v2472 = vrcp.pop %v2464
    %v2473 = vrcp.pop %v2465
    %v2474 = vrcp.pop %v2466
    %v2475 = vrcp.pop %v2467
    %v2476 = vrcp.pop %v2468
    %v2477 = vmul.f32 %v2386, %v2469
    %v2478 = vmul.f32 %v2388, %v2470
    %v2479 = vmul.f32 %v2429, %v2471
    %v2480 = vmul.f32 %v2431, %v2472
    %v2481 = vmul.f32 %v2390, %v2473
    %v2482 = vmul.f32 %v2392, %v2474
    %v2483 = vmul.f32 %v2433, %v2475
    %v2484 = vmul.f32 %v2435, %v2476
    %v2485 = vpack.c.bf16 %v2481, %v2477
    %v2486 = vpack.c.bf16 %v2482, %v2478
    %v2487 = vpack.c.bf16 %v2483, %v2479
    %v2488 = vpack.c.bf16 %v2484, %v2480
    %s2489 = scalar_lea.vmem [#allocation10], 1024
    %v2490 = vld [vmem:[%s2489] sm:$0xff]
    %v2491 = vld [vmem:[%s2489 + $0x8] sm:$0xff]
    %v2492 = vld [vmem:[%s2489 + $0x10] sm:$0xff]
    %v2493 = vld [vmem:[%s2489 + $0x18] sm:$0xff]
    %v2494 = vld [vmem:[%s2489 + $0x20] sm:$0xff]
    %v2495 = vld [vmem:[%s2489 + $0x28] sm:$0xff]
    %v2496 = vld [vmem:[%s2489 + $0x30] sm:$0xff]
    %v2497 = vld [vmem:[%s2489 + $0x38] sm:$0xff]
    %v2498 = vld [vmem:[%s2489 + $0x40] sm:$0xff]
    %v2499 = vld [vmem:[%s2489 + $0x48] sm:$0xff]
    %v2500 = vld [vmem:[%s2489 + $0x50] sm:$0xff]
    %v2501 = vld [vmem:[%s2489 + $0x58] sm:$0xff]
    %v2502 = vld [vmem:[%s2489 + $0x60] sm:$0xff]
    %v2503 = vld [vmem:[%s2489 + $0x68] sm:$0xff]
    %v2504 = vld [vmem:[%s2489 + $0x70] sm:$0xff]
    %v2505 = vld [vmem:[%s2489 + $0x78] sm:$0xff]
    %v2506 = vld [vmem:[%s2489 + $0x80] sm:$0xff]
    %v2507 = vld [vmem:[%s2489 + $0x88] sm:$0xff]
    %v2508 = vld [vmem:[%s2489 + $0x90] sm:$0xff]
    %v2509 = vld [vmem:[%s2489 + $0x98] sm:$0xff]
    %v2510 = vld [vmem:[%s2489 + $0xa0] sm:$0xff]
    %v2511 = vld [vmem:[%s2489 + $0xa8] sm:$0xff]
    %v2512 = vld [vmem:[%s2489 + $0xb0] sm:$0xff]
    %v2513 = vld [vmem:[%s2489 + $0xb8] sm:$0xff]
    %v2514 = vld [vmem:[%s2489 + $0xc0] sm:$0xff]
    %v2515 = vld [vmem:[%s2489 + $0xc8] sm:$0xff]
    %v2516 = vld [vmem:[%s2489 + $0xd0] sm:$0xff]
    %v2517 = vld [vmem:[%s2489 + $0xd8] sm:$0xff]
    %v2518 = vld [vmem:[%s2489 + $0xe0] sm:$0xff]
    %v2519 = vld [vmem:[%s2489 + $0xe8] sm:$0xff]
    %v2520 = vld [vmem:[%s2489 + $0xf0] sm:$0xff]
    %v2521 = vld [vmem:[%s2489 + $0xf8] sm:$0xff]
    %v2522 = vld [vmem:[%s2489 + $0x100] sm:$0xff]
    %v2523 = vld [vmem:[%s2489 + $0x108] sm:$0xff]
    %v2524 = vld [vmem:[%s2489 + $0x110] sm:$0xff]
    %v2525 = vld [vmem:[%s2489 + $0x118] sm:$0xff]
    %v2526 = vld [vmem:[%s2489 + $0x120] sm:$0xff]
    %v2527 = vld [vmem:[%s2489 + $0x128] sm:$0xff]
    %v2528 = vld [vmem:[%s2489 + $0x130] sm:$0xff]
    %v2529 = vld [vmem:[%s2489 + $0x138] sm:$0xff]
    %v2530 = vld [vmem:[%s2489 + $0x140] sm:$0xff]
    %v2531 = vld [vmem:[%s2489 + $0x148] sm:$0xff]
    %v2532 = vld [vmem:[%s2489 + $0x150] sm:$0xff]
    %v2533 = vld [vmem:[%s2489 + $0x158] sm:$0xff]
    %v2534 = vld [vmem:[%s2489 + $0x160] sm:$0xff]
    %v2535 = vld [vmem:[%s2489 + $0x168] sm:$0xff]
    %v2536 = vld [vmem:[%s2489 + $0x170] sm:$0xff]
    %v2537 = vld [vmem:[%s2489 + $0x178] sm:$0xff]
    %v2538 = vld [vmem:[%s2489 + $0x180] sm:$0xff]
    %v2539 = vld [vmem:[%s2489 + $0x188] sm:$0xff]
    %v2540 = vld [vmem:[%s2489 + $0x190] sm:$0xff]
    %v2541 = vld [vmem:[%s2489 + $0x198] sm:$0xff]
    %v2542 = vld [vmem:[%s2489 + $0x1a0] sm:$0xff]
    %v2543 = vld [vmem:[%s2489 + $0x1a8] sm:$0xff]
    %v2544 = vld [vmem:[%s2489 + $0x1b0] sm:$0xff]
    %v2545 = vld [vmem:[%s2489 + $0x1b8] sm:$0xff]
    %v2546 = vld [vmem:[%s2489 + $0x1c0] sm:$0xff]
    %v2547 = vld [vmem:[%s2489 + $0x1c8] sm:$0xff]
    %v2548 = vld [vmem:[%s2489 + $0x1d0] sm:$0xff]
    %v2549 = vld [vmem:[%s2489 + $0x1d8] sm:$0xff]
    %v2550 = vld [vmem:[%s2489 + $0x1e0] sm:$0xff]
    %v2551 = vld [vmem:[%s2489 + $0x1e8] sm:$0xff]
    %v2552 = vld [vmem:[%s2489 + $0x1f0] sm:$0xff]
    %v2553 = vld [vmem:[%s2489 + $0x1f8] sm:$0xff]
    %v2554 = vld [vmem:[%s2489 + $0x200] sm:$0xff]
    %v2555 = vld [vmem:[%s2489 + $0x208] sm:$0xff]
    %v2556 = vld [vmem:[%s2489 + $0x210] sm:$0xff]
    %v2557 = vld [vmem:[%s2489 + $0x218] sm:$0xff]
    %v2558 = vld [vmem:[%s2489 + $0x220] sm:$0xff]
    %v2559 = vld [vmem:[%s2489 + $0x228] sm:$0xff]
    %v2560 = vld [vmem:[%s2489 + $0x230] sm:$0xff]
    %v2561 = vld [vmem:[%s2489 + $0x238] sm:$0xff]
    %v2562 = vld [vmem:[%s2489 + $0x240] sm:$0xff]
    %v2563 = vld [vmem:[%s2489 + $0x248] sm:$0xff]
    %v2564 = vld [vmem:[%s2489 + $0x250] sm:$0xff]
    %v2565 = vld [vmem:[%s2489 + $0x258] sm:$0xff]
    %v2566 = vld [vmem:[%s2489 + $0x260] sm:$0xff]
    %v2567 = vld [vmem:[%s2489 + $0x268] sm:$0xff]
    %v2568 = vld [vmem:[%s2489 + $0x270] sm:$0xff]
    %v2569 = vld [vmem:[%s2489 + $0x278] sm:$0xff]
    %v2570 = vld [vmem:[%s2489 + $0x280] sm:$0xff]
    %v2571 = vld [vmem:[%s2489 + $0x288] sm:$0xff]
    %v2572 = vld [vmem:[%s2489 + $0x290] sm:$0xff]
    %v2573 = vld [vmem:[%s2489 + $0x298] sm:$0xff]
    %v2574 = vld [vmem:[%s2489 + $0x2a0] sm:$0xff]
    %v2575 = vld [vmem:[%s2489 + $0x2a8] sm:$0xff]
    %v2576 = vld [vmem:[%s2489 + $0x2b0] sm:$0xff]
    %v2577 = vld [vmem:[%s2489 + $0x2b8] sm:$0xff]
    %v2578 = vld [vmem:[%s2489 + $0x2c0] sm:$0xff]
    %v2579 = vld [vmem:[%s2489 + $0x2c8] sm:$0xff]
    %v2580 = vld [vmem:[%s2489 + $0x2d0] sm:$0xff]
    %v2581 = vld [vmem:[%s2489 + $0x2d8] sm:$0xff]
    %v2582 = vld [vmem:[%s2489 + $0x2e0] sm:$0xff]
    %v2583 = vld [vmem:[%s2489 + $0x2e8] sm:$0xff]
    %v2584 = vld [vmem:[%s2489 + $0x2f0] sm:$0xff]
    %v2585 = vld [vmem:[%s2489 + $0x2f8] sm:$0xff]
    %v2586 = vld [vmem:[%s2489 + $0x300] sm:$0xff]
    %v2587 = vld [vmem:[%s2489 + $0x308] sm:$0xff]
    %v2588 = vld [vmem:[%s2489 + $0x310] sm:$0xff]
    %v2589 = vld [vmem:[%s2489 + $0x318] sm:$0xff]
    %v2590 = vld [vmem:[%s2489 + $0x320] sm:$0xff]
    %v2591 = vld [vmem:[%s2489 + $0x328] sm:$0xff]
    %v2592 = vld [vmem:[%s2489 + $0x330] sm:$0xff]
    %v2593 = vld [vmem:[%s2489 + $0x338] sm:$0xff]
    %v2594 = vld [vmem:[%s2489 + $0x340] sm:$0xff]
    %v2595 = vld [vmem:[%s2489 + $0x348] sm:$0xff]
    %v2596 = vld [vmem:[%s2489 + $0x350] sm:$0xff]
    %v2597 = vld [vmem:[%s2489 + $0x358] sm:$0xff]
    %v2598 = vld [vmem:[%s2489 + $0x360] sm:$0xff]
    %v2599 = vld [vmem:[%s2489 + $0x368] sm:$0xff]
    %v2600 = vld [vmem:[%s2489 + $0x370] sm:$0xff]
    %v2601 = vld [vmem:[%s2489 + $0x378] sm:$0xff]
    %v2602 = vld [vmem:[%s2489 + $0x380] sm:$0xff]
    %v2603 = vld [vmem:[%s2489 + $0x388] sm:$0xff]
    %v2604 = vld [vmem:[%s2489 + $0x390] sm:$0xff]
    %v2605 = vld [vmem:[%s2489 + $0x398] sm:$0xff]
    %v2606 = vld [vmem:[%s2489 + $0x3a0] sm:$0xff]
    %v2607 = vld [vmem:[%s2489 + $0x3a8] sm:$0xff]
    %v2608 = vld [vmem:[%s2489 + $0x3b0] sm:$0xff]
    %v2609 = vld [vmem:[%s2489 + $0x3b8] sm:$0xff]
    %v2610 = vld [vmem:[%s2489 + $0x3c0] sm:$0xff]
    %v2611 = vld [vmem:[%s2489 + $0x3c8] sm:$0xff]
    %v2612 = vld [vmem:[%s2489 + $0x3d0] sm:$0xff]
    %v2613 = vld [vmem:[%s2489 + $0x3d8] sm:$0xff]
    %v2614 = vld [vmem:[%s2489 + $0x3e0] sm:$0xff]
    %v2615 = vld [vmem:[%s2489 + $0x3e8] sm:$0xff]
    %v2616 = vld [vmem:[%s2489 + $0x3f0] sm:$0xff]
    %v2617 = vld [vmem:[%s2489 + $0x3f8] sm:$0xff]
    %s2618 = scalar_lea.vmem %s9, 4
    %v2619 = vld [vmem:[%s2618] sm:$0xf]
    %v2621 = vlaneseq
    %v2622 = vshrl.u32 %v2621, 7
    %v2623 = vsub.s32 0, %v2622
    %v2624 = vrot.slane %v2619, %v2623
    %v2625 = vlaneseq
    %v2626 = vshrl.u32 %v2625, 7
    %v2627 = vsub.s32 1, %v2626
    %v2628 = vrot.slane %v2619, %v2627
    %v2629 = vlaneseq
    %v2630 = vshrl.u32 %v2629, 7
    %v2631 = vsub.s32 2, %v2630
    %v2632 = vrot.slane %v2619, %v2631
    %v2633 = vlaneseq
    %v2634 = vshrl.u32 %v2633, 7
    %v2635 = vsub.s32 3, %v2634
    %v2636 = vrot.slane %v2619, %v2635
    %v2769 = vunpack.c.l.b16 %v2490
    %v2770 = vunpack.c.h.b16 %v2490
    %v2771 = vunpack.c.l.b16 %v2491
    %v2772 = vunpack.c.h.b16 %v2491
    %v2773 = vunpack.c.l.b16 %v2492
    %v2774 = vunpack.c.h.b16 %v2492
    %v2775 = vunpack.c.l.b16 %v2493
    %v2776 = vunpack.c.h.b16 %v2493
    %v2777 = vunpack.c.l.b16 %v2494
    %v2778 = vunpack.c.h.b16 %v2494
    %v2779 = vunpack.c.l.b16 %v2495
    %v2780 = vunpack.c.h.b16 %v2495
    %v2781 = vunpack.c.l.b16 %v2496
    %v2782 = vunpack.c.h.b16 %v2496
    %v2783 = vunpack.c.l.b16 %v2497
    %v2784 = vunpack.c.h.b16 %v2497
    %v2785 = vunpack.c.l.b16 %v2498
    %v2786 = vunpack.c.h.b16 %v2498
    %v2787 = vunpack.c.l.b16 %v2499
    %v2788 = vunpack.c.h.b16 %v2499
    %v2789 = vunpack.c.l.b16 %v2500
    %v2790 = vunpack.c.h.b16 %v2500
    %v2791 = vunpack.c.l.b16 %v2501
    %v2792 = vunpack.c.h.b16 %v2501
    %v2793 = vunpack.c.l.b16 %v2502
    %v2794 = vunpack.c.h.b16 %v2502
    %v2795 = vunpack.c.l.b16 %v2503
    %v2796 = vunpack.c.h.b16 %v2503
    %v2797 = vunpack.c.l.b16 %v2504
    %v2798 = vunpack.c.h.b16 %v2504
    %v2799 = vunpack.c.l.b16 %v2505
    %v2800 = vunpack.c.h.b16 %v2505
    %v2801 = vunpack.c.l.b16 %v2506
    %v2802 = vunpack.c.h.b16 %v2506
    %v2803 = vunpack.c.l.b16 %v2507
    %v2804 = vunpack.c.h.b16 %v2507
    %v2805 = vunpack.c.l.b16 %v2508
    %v2806 = vunpack.c.h.b16 %v2508
    %v2807 = vunpack.c.l.b16 %v2509
    %v2808 = vunpack.c.h.b16 %v2509
    %v2809 = vunpack.c.l.b16 %v2510
    %v2810 = vunpack.c.h.b16 %v2510
    %v2811 = vunpack.c.l.b16 %v2511
    %v2812 = vunpack.c.h.b16 %v2511
    %v2813 = vunpack.c.l.b16 %v2512
    %v2814 = vunpack.c.h.b16 %v2512
    %v2815 = vunpack.c.l.b16 %v2513
    %v2816 = vunpack.c.h.b16 %v2513
    %v2817 = vunpack.c.l.b16 %v2514
    %v2818 = vunpack.c.h.b16 %v2514
    %v2819 = vunpack.c.l.b16 %v2515
    %v2820 = vunpack.c.h.b16 %v2515
    %v2821 = vunpack.c.l.b16 %v2516
    %v2822 = vunpack.c.h.b16 %v2516
    %v2823 = vunpack.c.l.b16 %v2517
    %v2824 = vunpack.c.h.b16 %v2517
    %v2825 = vunpack.c.l.b16 %v2518
    %v2826 = vunpack.c.h.b16 %v2518
    %v2827 = vunpack.c.l.b16 %v2519
    %v2828 = vunpack.c.h.b16 %v2519
    %v2829 = vunpack.c.l.b16 %v2520
    %v2830 = vunpack.c.h.b16 %v2520
    %v2831 = vunpack.c.l.b16 %v2521
    %v2832 = vunpack.c.h.b16 %v2521
    %v2833 = vunpack.c.l.b16 %v2522
    %v2834 = vunpack.c.h.b16 %v2522
    %v2835 = vunpack.c.l.b16 %v2523
    %v2836 = vunpack.c.h.b16 %v2523
    %v2837 = vunpack.c.l.b16 %v2524
    %v2838 = vunpack.c.h.b16 %v2524
    %v2839 = vunpack.c.l.b16 %v2525
    %v2840 = vunpack.c.h.b16 %v2525
    %v2841 = vunpack.c.l.b16 %v2526
    %v2842 = vunpack.c.h.b16 %v2526
    %v2843 = vunpack.c.l.b16 %v2527
    %v2844 = vunpack.c.h.b16 %v2527
    %v2845 = vunpack.c.l.b16 %v2528
    %v2846 = vunpack.c.h.b16 %v2528
    %v2847 = vunpack.c.l.b16 %v2529
    %v2848 = vunpack.c.h.b16 %v2529
    %v2849 = vunpack.c.l.b16 %v2530
    %v2850 = vunpack.c.h.b16 %v2530
    %v2851 = vunpack.c.l.b16 %v2531
    %v2852 = vunpack.c.h.b16 %v2531
    %v2853 = vunpack.c.l.b16 %v2532
    %v2854 = vunpack.c.h.b16 %v2532
    %v2855 = vunpack.c.l.b16 %v2533
    %v2856 = vunpack.c.h.b16 %v2533
    %v2857 = vunpack.c.l.b16 %v2534
    %v2858 = vunpack.c.h.b16 %v2534
    %v2859 = vunpack.c.l.b16 %v2535
    %v2860 = vunpack.c.h.b16 %v2535
    %v2861 = vunpack.c.l.b16 %v2536
    %v2862 = vunpack.c.h.b16 %v2536
    %v2863 = vunpack.c.l.b16 %v2537
    %v2864 = vunpack.c.h.b16 %v2537
    %v2865 = vunpack.c.l.b16 %v2538
    %v2866 = vunpack.c.h.b16 %v2538
    %v2867 = vunpack.c.l.b16 %v2539
    %v2868 = vunpack.c.h.b16 %v2539
    %v2869 = vunpack.c.l.b16 %v2540
    %v2870 = vunpack.c.h.b16 %v2540
    %v2871 = vunpack.c.l.b16 %v2541
    %v2872 = vunpack.c.h.b16 %v2541
    %v2873 = vunpack.c.l.b16 %v2542
    %v2874 = vunpack.c.h.b16 %v2542
    %v2875 = vunpack.c.l.b16 %v2543
    %v2876 = vunpack.c.h.b16 %v2543
    %v2877 = vunpack.c.l.b16 %v2544
    %v2878 = vunpack.c.h.b16 %v2544
    %v2879 = vunpack.c.l.b16 %v2545
    %v2880 = vunpack.c.h.b16 %v2545
    %v2881 = vunpack.c.l.b16 %v2546
    %v2882 = vunpack.c.h.b16 %v2546
    %v2883 = vunpack.c.l.b16 %v2547
    %v2884 = vunpack.c.h.b16 %v2547
    %v2885 = vunpack.c.l.b16 %v2548
    %v2886 = vunpack.c.h.b16 %v2548
    %v2887 = vunpack.c.l.b16 %v2549
    %v2888 = vunpack.c.h.b16 %v2549
    %v2889 = vunpack.c.l.b16 %v2550
    %v2890 = vunpack.c.h.b16 %v2550
    %v2891 = vunpack.c.l.b16 %v2551
    %v2892 = vunpack.c.h.b16 %v2551
    %v2893 = vunpack.c.l.b16 %v2552
    %v2894 = vunpack.c.h.b16 %v2552
    %v2895 = vunpack.c.l.b16 %v2553
    %v2896 = vunpack.c.h.b16 %v2553
    %v2897 = vunpack.c.l.b16 %v2554
    %v2898 = vunpack.c.h.b16 %v2554
    %v2899 = vunpack.c.l.b16 %v2555
    %v2900 = vunpack.c.h.b16 %v2555
    %v2901 = vunpack.c.l.b16 %v2556
    %v2902 = vunpack.c.h.b16 %v2556
    %v2903 = vunpack.c.l.b16 %v2557
    %v2904 = vunpack.c.h.b16 %v2557
    %v2905 = vunpack.c.l.b16 %v2558
    %v2906 = vunpack.c.h.b16 %v2558
    %v2907 = vunpack.c.l.b16 %v2559
    %v2908 = vunpack.c.h.b16 %v2559
    %v2909 = vunpack.c.l.b16 %v2560
    %v2910 = vunpack.c.h.b16 %v2560
    %v2911 = vunpack.c.l.b16 %v2561
    %v2912 = vunpack.c.h.b16 %v2561
    %v2913 = vunpack.c.l.b16 %v2562
    %v2914 = vunpack.c.h.b16 %v2562
    %v2915 = vunpack.c.l.b16 %v2563
    %v2916 = vunpack.c.h.b16 %v2563
    %v2917 = vunpack.c.l.b16 %v2564
    %v2918 = vunpack.c.h.b16 %v2564
    %v2919 = vunpack.c.l.b16 %v2565
    %v2920 = vunpack.c.h.b16 %v2565
    %v2921 = vunpack.c.l.b16 %v2566
    %v2922 = vunpack.c.h.b16 %v2566
    %v2923 = vunpack.c.l.b16 %v2567
    %v2924 = vunpack.c.h.b16 %v2567
    %v2925 = vunpack.c.l.b16 %v2568
    %v2926 = vunpack.c.h.b16 %v2568
    %v2927 = vunpack.c.l.b16 %v2569
    %v2928 = vunpack.c.h.b16 %v2569
    %v2929 = vunpack.c.l.b16 %v2570
    %v2930 = vunpack.c.h.b16 %v2570
    %v2931 = vunpack.c.l.b16 %v2571
    %v2932 = vunpack.c.h.b16 %v2571
    %v2933 = vunpack.c.l.b16 %v2572
    %v2934 = vunpack.c.h.b16 %v2572
    %v2935 = vunpack.c.l.b16 %v2573
    %v2936 = vunpack.c.h.b16 %v2573
    %v2937 = vunpack.c.l.b16 %v2574
    %v2938 = vunpack.c.h.b16 %v2574
    %v2939 = vunpack.c.l.b16 %v2575
    %v2940 = vunpack.c.h.b16 %v2575
    %v2941 = vunpack.c.l.b16 %v2576
    %v2942 = vunpack.c.h.b16 %v2576
    %v2943 = vunpack.c.l.b16 %v2577
    %v2944 = vunpack.c.h.b16 %v2577
    %v2945 = vunpack.c.l.b16 %v2578
    %v2946 = vunpack.c.h.b16 %v2578
    %v2947 = vunpack.c.l.b16 %v2579
    %v2948 = vunpack.c.h.b16 %v2579
    %v2949 = vunpack.c.l.b16 %v2580
    %v2950 = vunpack.c.h.b16 %v2580
    %v2951 = vunpack.c.l.b16 %v2581
    %v2952 = vunpack.c.h.b16 %v2581
    %v2953 = vunpack.c.l.b16 %v2582
    %v2954 = vunpack.c.h.b16 %v2582
    %v2955 = vunpack.c.l.b16 %v2583
    %v2956 = vunpack.c.h.b16 %v2583
    %v2957 = vunpack.c.l.b16 %v2584
    %v2958 = vunpack.c.h.b16 %v2584
    %v2959 = vunpack.c.l.b16 %v2585
    %v2960 = vunpack.c.h.b16 %v2585
    %v2961 = vunpack.c.l.b16 %v2586
    %v2962 = vunpack.c.h.b16 %v2586
    %v2963 = vunpack.c.l.b16 %v2587
    %v2964 = vunpack.c.h.b16 %v2587
    %v2965 = vunpack.c.l.b16 %v2588
    %v2966 = vunpack.c.h.b16 %v2588
    %v2967 = vunpack.c.l.b16 %v2589
    %v2968 = vunpack.c.h.b16 %v2589
    %v2969 = vunpack.c.l.b16 %v2590
    %v2970 = vunpack.c.h.b16 %v2590
    %v2971 = vunpack.c.l.b16 %v2591
    %v2972 = vunpack.c.h.b16 %v2591
    %v2973 = vunpack.c.l.b16 %v2592
    %v2974 = vunpack.c.h.b16 %v2592
    %v2975 = vunpack.c.l.b16 %v2593
    %v2976 = vunpack.c.h.b16 %v2593
    %v2977 = vunpack.c.l.b16 %v2594
    %v2978 = vunpack.c.h.b16 %v2594
    %v2979 = vunpack.c.l.b16 %v2595
    %v2980 = vunpack.c.h.b16 %v2595
    %v2981 = vunpack.c.l.b16 %v2596
    %v2982 = vunpack.c.h.b16 %v2596
    %v2983 = vunpack.c.l.b16 %v2597
    %v2984 = vunpack.c.h.b16 %v2597
    %v2985 = vunpack.c.l.b16 %v2598
    %v2986 = vunpack.c.h.b16 %v2598
    %v2987 = vunpack.c.l.b16 %v2599
    %v2988 = vunpack.c.h.b16 %v2599
    %v2989 = vunpack.c.l.b16 %v2600
    %v2990 = vunpack.c.h.b16 %v2600
    %v2991 = vunpack.c.l.b16 %v2601
    %v2992 = vunpack.c.h.b16 %v2601
    %v2993 = vunpack.c.l.b16 %v2602
    %v2994 = vunpack.c.h.b16 %v2602
    %v2995 = vunpack.c.l.b16 %v2603
    %v2996 = vunpack.c.h.b16 %v2603
    %v2997 = vunpack.c.l.b16 %v2604
    %v2998 = vunpack.c.h.b16 %v2604
    %v2999 = vunpack.c.l.b16 %v2605
    %v3000 = vunpack.c.h.b16 %v2605
    %v3001 = vunpack.c.l.b16 %v2606
    %v3002 = vunpack.c.h.b16 %v2606
    %v3003 = vunpack.c.l.b16 %v2607
    %v3004 = vunpack.c.h.b16 %v2607
    %v3005 = vunpack.c.l.b16 %v2608
    %v3006 = vunpack.c.h.b16 %v2608
    %v3007 = vunpack.c.l.b16 %v2609
    %v3008 = vunpack.c.h.b16 %v2609
    %v3009 = vunpack.c.l.b16 %v2610
    %v3010 = vunpack.c.h.b16 %v2610
    %v3011 = vunpack.c.l.b16 %v2611
    %v3012 = vunpack.c.h.b16 %v2611
    %v3013 = vunpack.c.l.b16 %v2612
    %v3014 = vunpack.c.h.b16 %v2612
    %v3015 = vunpack.c.l.b16 %v2613
    %v3016 = vunpack.c.h.b16 %v2613
    %v3017 = vunpack.c.l.b16 %v2614
    %v3018 = vunpack.c.h.b16 %v2614
    %v3019 = vunpack.c.l.b16 %v2615
    %v3020 = vunpack.c.h.b16 %v2615
    %v3021 = vunpack.c.l.b16 %v2616
    %v3022 = vunpack.c.h.b16 %v2616
    %v3023 = vunpack.c.l.b16 %v2617
    %v3024 = vunpack.c.h.b16 %v2617
    %v3025 = vpack.c.b16 %v2773, %v2769
    %v3026 = vpack.c.b16 %v2774, %v2770
    %v3027 = vpack.c.b16 %v2775, %v2771
    %v3028 = vpack.c.b16 %v2776, %v2772
    %v3029 = vpack.c.b16 %v2781, %v2777
    %v3030 = vpack.c.b16 %v2782, %v2778
    %v3031 = vpack.c.b16 %v2783, %v2779
    %v3032 = vpack.c.b16 %v2784, %v2780
    %v3033 = vpack.c.b16 %v2789, %v2785
    %v3034 = vpack.c.b16 %v2790, %v2786
    %v3035 = vpack.c.b16 %v2791, %v2787
    %v3036 = vpack.c.b16 %v2792, %v2788
    %v3037 = vpack.c.b16 %v2797, %v2793
    %v3038 = vpack.c.b16 %v2798, %v2794
    %v3039 = vpack.c.b16 %v2799, %v2795
    %v3040 = vpack.c.b16 %v2800, %v2796
    %v3041 = vpack.c.b16 %v2805, %v2801
    %v3042 = vpack.c.b16 %v2806, %v2802
    %v3043 = vpack.c.b16 %v2807, %v2803
    %v3044 = vpack.c.b16 %v2808, %v2804
    %v3045 = vpack.c.b16 %v2813, %v2809
    %v3046 = vpack.c.b16 %v2814, %v2810
    %v3047 = vpack.c.b16 %v2815, %v2811
    %v3048 = vpack.c.b16 %v2816, %v2812
    %v3049 = vpack.c.b16 %v2821, %v2817
    %v3050 = vpack.c.b16 %v2822, %v2818
    %v3051 = vpack.c.b16 %v2823, %v2819
    %v3052 = vpack.c.b16 %v2824, %v2820
    %v3053 = vpack.c.b16 %v2829, %v2825
    %v3054 = vpack.c.b16 %v2830, %v2826
    %v3055 = vpack.c.b16 %v2831, %v2827
    %v3056 = vpack.c.b16 %v2832, %v2828
    %v3057 = vpack.c.b16 %v2837, %v2833
    %v3058 = vpack.c.b16 %v2838, %v2834
    %v3059 = vpack.c.b16 %v2839, %v2835
    %v3060 = vpack.c.b16 %v2840, %v2836
    %v3061 = vpack.c.b16 %v2845, %v2841
    %v3062 = vpack.c.b16 %v2846, %v2842
    %v3063 = vpack.c.b16 %v2847, %v2843
    %v3064 = vpack.c.b16 %v2848, %v2844
    %v3065 = vpack.c.b16 %v2853, %v2849
    %v3066 = vpack.c.b16 %v2854, %v2850
    %v3067 = vpack.c.b16 %v2855, %v2851
    %v3068 = vpack.c.b16 %v2856, %v2852
    %v3069 = vpack.c.b16 %v2861, %v2857
    %v3070 = vpack.c.b16 %v2862, %v2858
    %v3071 = vpack.c.b16 %v2863, %v2859
    %v3072 = vpack.c.b16 %v2864, %v2860
    %v3073 = vpack.c.b16 %v2869, %v2865
    %v3074 = vpack.c.b16 %v2870, %v2866
    %v3075 = vpack.c.b16 %v2871, %v2867
    %v3076 = vpack.c.b16 %v2872, %v2868
    %v3077 = vpack.c.b16 %v2877, %v2873
    %v3078 = vpack.c.b16 %v2878, %v2874
    %v3079 = vpack.c.b16 %v2879, %v2875
    %v3080 = vpack.c.b16 %v2880, %v2876
    %v3081 = vpack.c.b16 %v2885, %v2881
    %v3082 = vpack.c.b16 %v2886, %v2882
    %v3083 = vpack.c.b16 %v2887, %v2883
    %v3084 = vpack.c.b16 %v2888, %v2884
    %v3085 = vpack.c.b16 %v2893, %v2889
    %v3086 = vpack.c.b16 %v2894, %v2890
    %v3087 = vpack.c.b16 %v2895, %v2891
    %v3088 = vpack.c.b16 %v2896, %v2892
    %v3089 = vpack.c.b16 %v2901, %v2897
    %v3090 = vpack.c.b16 %v2902, %v2898
    %v3091 = vpack.c.b16 %v2903, %v2899
    %v3092 = vpack.c.b16 %v2904, %v2900
    %v3093 = vpack.c.b16 %v2909, %v2905
    %v3094 = vpack.c.b16 %v2910, %v2906
    %v3095 = vpack.c.b16 %v2911, %v2907
    %v3096 = vpack.c.b16 %v2912, %v2908
    %v3097 = vpack.c.b16 %v2917, %v2913
    %v3098 = vpack.c.b16 %v2918, %v2914
    %v3099 = vpack.c.b16 %v2919, %v2915
    %v3100 = vpack.c.b16 %v2920, %v2916
    %v3101 = vpack.c.b16 %v2925, %v2921
    %v3102 = vpack.c.b16 %v2926, %v2922
    %v3103 = vpack.c.b16 %v2927, %v2923
    %v3104 = vpack.c.b16 %v2928, %v2924
    %v3105 = vpack.c.b16 %v2933, %v2929
    %v3106 = vpack.c.b16 %v2934, %v2930
    %v3107 = vpack.c.b16 %v2935, %v2931
    %v3108 = vpack.c.b16 %v2936, %v2932
    %v3109 = vpack.c.b16 %v2941, %v2937
    %v3110 = vpack.c.b16 %v2942, %v2938
    %v3111 = vpack.c.b16 %v2943, %v2939
    %v3112 = vpack.c.b16 %v2944, %v2940
    %v3113 = vpack.c.b16 %v2949, %v2945
    %v3114 = vpack.c.b16 %v2950, %v2946
    %v3115 = vpack.c.b16 %v2951, %v2947
    %v3116 = vpack.c.b16 %v2952, %v2948
    %v3117 = vpack.c.b16 %v2957, %v2953
    %v3118 = vpack.c.b16 %v2958, %v2954
    %v3119 = vpack.c.b16 %v2959, %v2955
    %v3120 = vpack.c.b16 %v2960, %v2956
    %v3121 = vpack.c.b16 %v2965, %v2961
    %v3122 = vpack.c.b16 %v2966, %v2962
    %v3123 = vpack.c.b16 %v2967, %v2963
    %v3124 = vpack.c.b16 %v2968, %v2964
    %v3125 = vpack.c.b16 %v2973, %v2969
    %v3126 = vpack.c.b16 %v2974, %v2970
    %v3127 = vpack.c.b16 %v2975, %v2971
    %v3128 = vpack.c.b16 %v2976, %v2972
    %v3129 = vpack.c.b16 %v2981, %v2977
    %v3130 = vpack.c.b16 %v2982, %v2978
    %v3131 = vpack.c.b16 %v2983, %v2979
    %v3132 = vpack.c.b16 %v2984, %v2980
    %v3133 = vpack.c.b16 %v2989, %v2985
    %v3134 = vpack.c.b16 %v2990, %v2986
    %v3135 = vpack.c.b16 %v2991, %v2987
    %v3136 = vpack.c.b16 %v2992, %v2988
    %v3137 = vpack.c.b16 %v2997, %v2993
    %v3138 = vpack.c.b16 %v2998, %v2994
    %v3139 = vpack.c.b16 %v2999, %v2995
    %v3140 = vpack.c.b16 %v3000, %v2996
    %v3141 = vpack.c.b16 %v3005, %v3001
    %v3142 = vpack.c.b16 %v3006, %v3002
    %v3143 = vpack.c.b16 %v3007, %v3003
    %v3144 = vpack.c.b16 %v3008, %v3004
    %v3145 = vpack.c.b16 %v3013, %v3009
    %v3146 = vpack.c.b16 %v3014, %v3010
    %v3147 = vpack.c.b16 %v3015, %v3011
    %v3148 = vpack.c.b16 %v3016, %v3012
    %v3149 = vpack.c.b16 %v3021, %v3017
    %v3150 = vpack.c.b16 %v3022, %v3018
    %v3151 = vpack.c.b16 %v3023, %v3019
    %v3152 = vpack.c.b16 %v3024, %v3020
    %3281 = vmatprep.subr.bf16.mxu0 %v3026
    %3282 = vmatpush1.bf16.msra.mxu0 %v3025
    %3283 = vmatprep.subr.bf16.mxu0 %v3030
    %3284 = vmatpush1.bf16.msra.mxu0 %v3029
    %3285 = vmatprep.subr.bf16.mxu0 %v3034
    %3286 = vmatpush1.bf16.msra.mxu0 %v3033
    %3287 = vmatprep.subr.bf16.mxu0 %v3038
    %3288 = vmatpush1.bf16.msra.mxu0 %v3037
    %3289 = vmatprep.subr.bf16.mxu0 %v3042
    %3290 = vmatpush1.bf16.msra.mxu0 %v3041
    %3291 = vmatprep.subr.bf16.mxu0 %v3046
    %3292 = vmatpush1.bf16.msra.mxu0 %v3045
    %3293 = vmatprep.subr.bf16.mxu0 %v3050
    %3294 = vmatpush1.bf16.msra.mxu0 %v3049
    %3295 = vmatprep.subr.bf16.mxu0 %v3054
    %3296 = vmatpush1.bf16.msra.mxu0 %v3053
    %3297 = vmatprep.subr.bf16.mxu0 %v3058
    %3298 = vmatpush1.bf16.msra.mxu0 %v3057
    %3299 = vmatprep.subr.bf16.mxu0 %v3062
    %3300 = vmatpush1.bf16.msra.mxu0 %v3061
    %3301 = vmatprep.subr.bf16.mxu0 %v3066
    %3302 = vmatpush1.bf16.msra.mxu0 %v3065
    %3303 = vmatprep.subr.bf16.mxu0 %v3070
    %3304 = vmatpush1.bf16.msra.mxu0 %v3069
    %3305 = vmatprep.subr.bf16.mxu0 %v3074
    %3306 = vmatpush1.bf16.msra.mxu0 %v3073
    %3307 = vmatprep.subr.bf16.mxu0 %v3078
    %3308 = vmatpush1.bf16.msra.mxu0 %v3077
    %3309 = vmatprep.subr.bf16.mxu0 %v3082
    %3310 = vmatpush1.bf16.msra.mxu0 %v3081
    %3311 = vmatprep.subr.bf16.mxu0 %v3086
    %3312 = vmatpush1.bf16.msra.mxu0 %v3085
    %3313 = vmatprep.mubr.bf16.mxu0 %v2486
    %3314 = vmatmul.mubr.bf16.gmra.mrb[0].mxu0 %v2485
    %v3315 = vpop.f32.mrb[0].mxu0
    %v3316 = vadd.f32 %v2624, %v3315
    %v3317 = vpop.f32.mrb[0].mxu0
    %v3318 = vadd.f32 %v2628, %v3317
    %v3319 = vpop.f32.mrb[0].mxu0
    %v3320 = vadd.f32 %v2624, %v3319
    %v3321 = vpop.f32.mrb[0].mxu0
    %v3322 = vadd.f32 %v2628, %v3321
    %3323 = vdwg.mxu0
    %3324 = vmatprep.subr.bf16.mxu0 %v3090
    %3325 = vmatpush1.bf16.msra.mxu0 %v3089
    %3326 = vmatprep.subr.bf16.mxu0 %v3094
    %3327 = vmatpush1.bf16.msra.mxu0 %v3093
    %3328 = vmatprep.subr.bf16.mxu0 %v3098
    %3329 = vmatpush1.bf16.msra.mxu0 %v3097
    %3330 = vmatprep.subr.bf16.mxu0 %v3102
    %3331 = vmatpush1.bf16.msra.mxu0 %v3101
    %3332 = vmatprep.subr.bf16.mxu0 %v3106
    %3333 = vmatpush1.bf16.msra.mxu0 %v3105
    %3334 = vmatprep.subr.bf16.mxu0 %v3110
    %3335 = vmatpush1.bf16.msra.mxu0 %v3109
    %3336 = vmatprep.subr.bf16.mxu0 %v3114
    %3337 = vmatpush1.bf16.msra.mxu0 %v3113
    %3338 = vmatprep.subr.bf16.mxu0 %v3118
    %3339 = vmatpush1.bf16.msra.mxu0 %v3117
    %3340 = vmatprep.subr.bf16.mxu0 %v3122
    %3341 = vmatpush1.bf16.msra.mxu0 %v3121
    %3342 = vmatprep.subr.bf16.mxu0 %v3126
    %3343 = vmatpush1.bf16.msra.mxu0 %v3125
    %3344 = vmatprep.subr.bf16.mxu0 %v3130
    %3345 = vmatpush1.bf16.msra.mxu0 %v3129
    %3346 = vmatprep.subr.bf16.mxu0 %v3134
    %3347 = vmatpush1.bf16.msra.mxu0 %v3133
    %3348 = vmatprep.subr.bf16.mxu0 %v3138
    %3349 = vmatpush1.bf16.msra.mxu0 %v3137
    %3350 = vmatprep.subr.bf16.mxu0 %v3142
    %3351 = vmatpush1.bf16.msra.mxu0 %v3141
    %3352 = vmatprep.subr.bf16.mxu0 %v3146
    %3353 = vmatpush1.bf16.msra.mxu0 %v3145
    %3354 = vmatprep.subr.bf16.mxu0 %v3150
    %3355 = vmatpush1.bf16.msra.mxu0 %v3149
    %3356 = vmatprep.mubr.bf16.mxu0 %v2488
    %3357 = vmatmul.mubr.bf16.gmra.mrb[0].mxu0 %v2487
    %v3358 = vpop.f32.mrb[0].mxu0
    %v3359 = vadd.f32 %v3316, %v3358
    %v3360 = vpop.f32.mrb[0].mxu0
    %v3361 = vadd.f32 %v3318, %v3360
    %v3362 = vpop.f32.mrb[0].mxu0
    %v3363 = vadd.f32 %v3320, %v3362
    %v3364 = vpop.f32.mrb[0].mxu0
    %v3365 = vadd.f32 %v3322, %v3364
    %3366 = vdwg.mxu0
    %3367 = vmatprep.subr.bf16.mxu0 %v3028
    %3368 = vmatpush1.bf16.msra.mxu0 %v3027
    %3369 = vmatprep.subr.bf16.mxu0 %v3032
    %3370 = vmatpush1.bf16.msra.mxu0 %v3031
    %3371 = vmatprep.subr.bf16.mxu0 %v3036
    %3372 = vmatpush1.bf16.msra.mxu0 %v3035
    %3373 = vmatprep.subr.bf16.mxu0 %v3040
    %3374 = vmatpush1.bf16.msra.mxu0 %v3039
    %3375 = vmatprep.subr.bf16.mxu0 %v3044
    %3376 = vmatpush1.bf16.msra.mxu0 %v3043
    %3377 = vmatprep.subr.bf16.mxu0 %v3048
    %3378 = vmatpush1.bf16.msra.mxu0 %v3047
    %3379 = vmatprep.subr.bf16.mxu0 %v3052
    %3380 = vmatpush1.bf16.msra.mxu0 %v3051
    %3381 = vmatprep.subr.bf16.mxu0 %v3056
    %3382 = vmatpush1.bf16.msra.mxu0 %v3055
    %3383 = vmatprep.subr.bf16.mxu0 %v3060
    %3384 = vmatpush1.bf16.msra.mxu0 %v3059
    %3385 = vmatprep.subr.bf16.mxu0 %v3064
    %3386 = vmatpush1.bf16.msra.mxu0 %v3063
    %3387 = vmatprep.subr.bf16.mxu0 %v3068
    %3388 = vmatpush1.bf16.msra.mxu0 %v3067
    %3389 = vmatprep.subr.bf16.mxu0 %v3072
    %3390 = vmatpush1.bf16.msra.mxu0 %v3071
    %3391 = vmatprep.subr.bf16.mxu0 %v3076
    %3392 = vmatpush1.bf16.msra.mxu0 %v3075
    %3393 = vmatprep.subr.bf16.mxu0 %v3080
    %3394 = vmatpush1.bf16.msra.mxu0 %v3079
    %3395 = vmatprep.subr.bf16.mxu0 %v3084
    %3396 = vmatpush1.bf16.msra.mxu0 %v3083
    %3397 = vmatprep.subr.bf16.mxu0 %v3088
    %3398 = vmatpush1.bf16.msra.mxu0 %v3087
    %3399 = vmatprep.mubr.bf16.mxu0 %v2486
    %3400 = vmatmul.mubr.bf16.gmra.mrb[0].mxu0 %v2485
    %v3401 = vpop.f32.mrb[0].mxu0
    %v3402 = vadd.f32 %v2632, %v3401
    %v3403 = vpop.f32.mrb[0].mxu0
    %v3404 = vadd.f32 %v2636, %v3403
    %v3405 = vpop.f32.mrb[0].mxu0
    %v3406 = vadd.f32 %v2632, %v3405
    %v3407 = vpop.f32.mrb[0].mxu0
    %v3408 = vadd.f32 %v2636, %v3407
    %3409 = vdwg.mxu0
    %3410 = vmatprep.subr.bf16.mxu0 %v3092
    %3411 = vmatpush1.bf16.msra.mxu0 %v3091
    %3412 = vmatprep.subr.bf16.mxu0 %v3096
    %3413 = vmatpush1.bf16.msra.mxu0 %v3095
    %3414 = vmatprep.subr.bf16.mxu0 %v3100
    %3415 = vmatpush1.bf16.msra.mxu0 %v3099
    %3416 = vmatprep.subr.bf16.mxu0 %v3104
    %3417 = vmatpush1.bf16.msra.mxu0 %v3103
    %3418 = vmatprep.subr.bf16.mxu0 %v3108
    %3419 = vmatpush1.bf16.msra.mxu0 %v3107
    %3420 = vmatprep.subr.bf16.mxu0 %v3112
    %3421 = vmatpush1.bf16.msra.mxu0 %v3111
    %3422 = vmatprep.subr.bf16.mxu0 %v3116
    %3423 = vmatpush1.bf16.msra.mxu0 %v3115
    %3424 = vmatprep.subr.bf16.mxu0 %v3120
    %3425 = vmatpush1.bf16.msra.mxu0 %v3119
    %3426 = vmatprep.subr.bf16.mxu0 %v3124
    %3427 = vmatpush1.bf16.msra.mxu0 %v3123
    %3428 = vmatprep.subr.bf16.mxu0 %v3128
    %3429 = vmatpush1.bf16.msra.mxu0 %v3127
    %3430 = vmatprep.subr.bf16.mxu0 %v3132
    %3431 = vmatpush1.bf16.msra.mxu0 %v3131
    %3432 = vmatprep.subr.bf16.mxu0 %v3136
    %3433 = vmatpush1.bf16.msra.mxu0 %v3135
    %3434 = vmatprep.subr.bf16.mxu0 %v3140
    %3435 = vmatpush1.bf16.msra.mxu0 %v3139
    %3436 = vmatprep.subr.bf16.mxu0 %v3144
    %3437 = vmatpush1.bf16.msra.mxu0 %v3143
    %3438 = vmatprep.subr.bf16.mxu0 %v3148
    %3439 = vmatpush1.bf16.msra.mxu0 %v3147
    %3440 = vmatprep.subr.bf16.mxu0 %v3152
    %3441 = vmatpush1.bf16.msra.mxu0 %v3151
    %3442 = vmatprep.mubr.bf16.mxu0 %v2488
    %3443 = vmatmul.mubr.bf16.gmra.mrb[0].mxu0 %v2487
    %v3444 = vpop.f32.mrb[0].mxu0
    %v3445 = vadd.f32 %v3402, %v3444
    %v3446 = vpop.f32.mrb[0].mxu0
    %v3447 = vadd.f32 %v3404, %v3446
    %v3448 = vpop.f32.mrb[0].mxu0
    %v3449 = vadd.f32 %v3406, %v3448
    %v3450 = vpop.f32.mrb[0].mxu0
    %v3451 = vadd.f32 %v3408, %v3450
    %3452 = vdwg.mxu0
    %v3453 = vsub.f32 0.0, %v3359
    %v3454 = vsub.f32 0.0, %v3361
    %v3455 = vsub.f32 0.0, %v3445
    %v3456 = vsub.f32 0.0, %v3447
    %v3457 = vsub.f32 0.0, %v3363
    %v3458 = vsub.f32 0.0, %v3365
    %v3459 = vsub.f32 0.0, %v3449
    %v3460 = vsub.f32 0.0, %v3451
    %v3461 = vmul.f32 %v3453, 1.442695
    %v3462 = vpow.pop %v3461
    %v3463 = vmul.f32 %v3454, 1.442695
    %v3464 = vpow.pop %v3463
    %v3465 = vmul.f32 %v3455, 1.442695
    %v3466 = vpow.pop %v3465
    %v3467 = vmul.f32 %v3456, 1.442695
    %v3468 = vpow.pop %v3467
    %v3469 = vmul.f32 %v3457, 1.442695
    %v3470 = vpow.pop %v3469
    %v3471 = vmul.f32 %v3458, 1.442695
    %v3472 = vpow.pop %v3471
    %v3473 = vmul.f32 %v3459, 1.442695
    %v3474 = vpow.pop %v3473
    %v3475 = vmul.f32 %v3460, 1.442695
    %v3476 = vpow.pop %v3475
    %v3477 = vadd.f32 %v3462, 1.0
    %v3478 = vadd.f32 %v3464, 1.0
    %v3479 = vadd.f32 %v3466, 1.0
    %v3480 = vadd.f32 %v3468, 1.0
    %v3481 = vadd.f32 %v3470, 1.0
    %v3482 = vadd.f32 %v3472, 1.0
    %v3483 = vadd.f32 %v3474, 1.0
    %v3484 = vadd.f32 %v3476, 1.0
    %v3485 = vrcp.pop %v3477
    %v3486 = vrcp.pop %v3478
    %v3487 = vrcp.pop %v3479
    %v3488 = vrcp.pop %v3480
    %v3489 = vrcp.pop %v3481
    %v3490 = vrcp.pop %v3482
    %v3491 = vrcp.pop %v3483
    %v3492 = vrcp.pop %v3484
    %v3493 = vmul.f32 %v3359, %v3485
    %v3494 = vmul.f32 %v3361, %v3486
    %v3495 = vmul.f32 %v3445, %v3487
    %v3496 = vmul.f32 %v3447, %v3488
    %v3497 = vmul.f32 %v3363, %v3489
    %v3498 = vmul.f32 %v3365, %v3490
    %v3499 = vmul.f32 %v3449, %v3491
    %v3500 = vmul.f32 %v3451, %v3492
    %v3501 = vpack.c.bf16 %v3497, %v3493
    %v3502 = vpack.c.bf16 %v3498, %v3494
    %v3503 = vpack.c.bf16 %v3499, %v3495
    %v3504 = vpack.c.bf16 %v3500, %v3496
    %s3505 = scalar_lea.vmem [#allocation11], 256
    %v3506 = vld [vmem:[%s3505] sm:$0xf]
    %v3507 = vld [vmem:[%s3505 + $0x4] sm:$0xf]
    %v3508 = vld [vmem:[%s3505 + $0x8] sm:$0xf]
    %v3509 = vld [vmem:[%s3505 + $0xc] sm:$0xf]
    %v3510 = vld [vmem:[%s3505 + $0x10] sm:$0xf]
    %v3511 = vld [vmem:[%s3505 + $0x14] sm:$0xf]
    %v3512 = vld [vmem:[%s3505 + $0x18] sm:$0xf]
    %v3513 = vld [vmem:[%s3505 + $0x1c] sm:$0xf]
    %v3514 = vld [vmem:[%s3505 + $0x20] sm:$0xf]
    %v3515 = vld [vmem:[%s3505 + $0x24] sm:$0xf]
    %v3516 = vld [vmem:[%s3505 + $0x28] sm:$0xf]
    %v3517 = vld [vmem:[%s3505 + $0x2c] sm:$0xf]
    %v3518 = vld [vmem:[%s3505 + $0x30] sm:$0xf]
    %v3519 = vld [vmem:[%s3505 + $0x34] sm:$0xf]
    %v3520 = vld [vmem:[%s3505 + $0x38] sm:$0xf]
    %v3521 = vld [vmem:[%s3505 + $0x3c] sm:$0xf]
    %v3522 = vld [vmem:[%s3505 + $0x40] sm:$0xf]
    %v3523 = vld [vmem:[%s3505 + $0x44] sm:$0xf]
    %v3524 = vld [vmem:[%s3505 + $0x48] sm:$0xf]
    %v3525 = vld [vmem:[%s3505 + $0x4c] sm:$0xf]
    %v3526 = vld [vmem:[%s3505 + $0x50] sm:$0xf]
    %v3527 = vld [vmem:[%s3505 + $0x54] sm:$0xf]
    %v3528 = vld [vmem:[%s3505 + $0x58] sm:$0xf]
    %v3529 = vld [vmem:[%s3505 + $0x5c] sm:$0xf]
    %v3530 = vld [vmem:[%s3505 + $0x60] sm:$0xf]
    %v3531 = vld [vmem:[%s3505 + $0x64] sm:$0xf]
    %v3532 = vld [vmem:[%s3505 + $0x68] sm:$0xf]
    %v3533 = vld [vmem:[%s3505 + $0x6c] sm:$0xf]
    %v3534 = vld [vmem:[%s3505 + $0x70] sm:$0xf]
    %v3535 = vld [vmem:[%s3505 + $0x74] sm:$0xf]
    %v3536 = vld [vmem:[%s3505 + $0x78] sm:$0xf]
    %v3537 = vld [vmem:[%s3505 + $0x7c] sm:$0xf]
    %v3538 = vld [vmem:[%s3505 + $0x80] sm:$0xf]
    %v3539 = vld [vmem:[%s3505 + $0x84] sm:$0xf]
    %v3540 = vld [vmem:[%s3505 + $0x88] sm:$0xf]
    %v3541 = vld [vmem:[%s3505 + $0x8c] sm:$0xf]
    %v3542 = vld [vmem:[%s3505 + $0x90] sm:$0xf]
    %v3543 = vld [vmem:[%s3505 + $0x94] sm:$0xf]
    %v3544 = vld [vmem:[%s3505 + $0x98] sm:$0xf]
    %v3545 = vld [vmem:[%s3505 + $0x9c] sm:$0xf]
    %v3546 = vld [vmem:[%s3505 + $0xa0] sm:$0xf]
    %v3547 = vld [vmem:[%s3505 + $0xa4] sm:$0xf]
    %v3548 = vld [vmem:[%s3505 + $0xa8] sm:$0xf]
    %v3549 = vld [vmem:[%s3505 + $0xac] sm:$0xf]
    %v3550 = vld [vmem:[%s3505 + $0xb0] sm:$0xf]
    %v3551 = vld [vmem:[%s3505 + $0xb4] sm:$0xf]
    %v3552 = vld [vmem:[%s3505 + $0xb8] sm:$0xf]
    %v3553 = vld [vmem:[%s3505 + $0xbc] sm:$0xf]
    %v3554 = vld [vmem:[%s3505 + $0xc0] sm:$0xf]
    %v3555 = vld [vmem:[%s3505 + $0xc4] sm:$0xf]
    %v3556 = vld [vmem:[%s3505 + $0xc8] sm:$0xf]
    %v3557 = vld [vmem:[%s3505 + $0xcc] sm:$0xf]
    %v3558 = vld [vmem:[%s3505 + $0xd0] sm:$0xf]
    %v3559 = vld [vmem:[%s3505 + $0xd4] sm:$0xf]
    %v3560 = vld [vmem:[%s3505 + $0xd8] sm:$0xf]
    %v3561 = vld [vmem:[%s3505 + $0xdc] sm:$0xf]
    %v3562 = vld [vmem:[%s3505 + $0xe0] sm:$0xf]
    %v3563 = vld [vmem:[%s3505 + $0xe4] sm:$0xf]
    %v3564 = vld [vmem:[%s3505 + $0xe8] sm:$0xf]
    %v3565 = vld [vmem:[%s3505 + $0xec] sm:$0xf]
    %v3566 = vld [vmem:[%s3505 + $0xf0] sm:$0xf]
    %v3567 = vld [vmem:[%s3505 + $0xf4] sm:$0xf]
    %v3568 = vld [vmem:[%s3505 + $0xf8] sm:$0xf]
    %v3569 = vld [vmem:[%s3505 + $0xfc] sm:$0xf]
    %s3570 = scalar_lea.vmem %s11, 1
    %v3571 = vld [vmem:[%s3570] sm:$0x1]
    %v3573 = vlaneseq
    %v3574 = vshrl.u32 %v3573, 7
    %v3575 = vsub.s32 0, %v3574
    %v3576 = vrot.slane %v3571, %v3575
    %v3642 = vunpack.c.l.b16 %v3506
    %v3643 = vunpack.c.l.b16 %v3507
    %v3644 = vunpack.c.l.b16 %v3508
    %v3645 = vunpack.c.l.b16 %v3509
    %v3646 = vunpack.c.l.b16 %v3510
    %v3647 = vunpack.c.l.b16 %v3511
    %v3648 = vunpack.c.l.b16 %v3512
    %v3649 = vunpack.c.l.b16 %v3513
    %v3650 = vunpack.c.l.b16 %v3514
    %v3651 = vunpack.c.l.b16 %v3515
    %v3652 = vunpack.c.l.b16 %v3516
    %v3653 = vunpack.c.l.b16 %v3517
    %v3654 = vunpack.c.l.b16 %v3518
    %v3655 = vunpack.c.l.b16 %v3519
    %v3656 = vunpack.c.l.b16 %v3520
    %v3657 = vunpack.c.l.b16 %v3521
    %v3658 = vunpack.c.l.b16 %v3522
    %v3659 = vunpack.c.l.b16 %v3523
    %v3660 = vunpack.c.l.b16 %v3524
    %v3661 = vunpack.c.l.b16 %v3525
    %v3662 = vunpack.c.l.b16 %v3526
    %v3663 = vunpack.c.l.b16 %v3527
    %v3664 = vunpack.c.l.b16 %v3528
    %v3665 = vunpack.c.l.b16 %v3529
    %v3666 = vunpack.c.l.b16 %v3530
    %v3667 = vunpack.c.l.b16 %v3531
    %v3668 = vunpack.c.l.b16 %v3532
    %v3669 = vunpack.c.l.b16 %v3533
    %v3670 = vunpack.c.l.b16 %v3534
    %v3671 = vunpack.c.l.b16 %v3535
    %v3672 = vunpack.c.l.b16 %v3536
    %v3673 = vunpack.c.l.b16 %v3537
    %v3674 = vunpack.c.l.b16 %v3538
    %v3675 = vunpack.c.l.b16 %v3539
    %v3676 = vunpack.c.l.b16 %v3540
    %v3677 = vunpack.c.l.b16 %v3541
    %v3678 = vunpack.c.l.b16 %v3542
    %v3679 = vunpack.c.l.b16 %v3543
    %v3680 = vunpack.c.l.b16 %v3544
    %v3681 = vunpack.c.l.b16 %v3545
    %v3682 = vunpack.c.l.b16 %v3546
    %v3683 = vunpack.c.l.b16 %v3547
    %v3684 = vunpack.c.l.b16 %v3548
    %v3685 = vunpack.c.l.b16 %v3549
    %v3686 = vunpack.c.l.b16 %v3550
    %v3687 = vunpack.c.l.b16 %v3551
    %v3688 = vunpack.c.l.b16 %v3552
    %v3689 = vunpack.c.l.b16 %v3553
    %v3690 = vunpack.c.l.b16 %v3554
    %v3691 = vunpack.c.l.b16 %v3555
    %v3692 = vunpack.c.l.b16 %v3556
    %v3693 = vunpack.c.l.b16 %v3557
    %v3694 = vunpack.c.l.b16 %v3558
    %v3695 = vunpack.c.l.b16 %v3559
    %v3696 = vunpack.c.l.b16 %v3560
    %v3697 = vunpack.c.l.b16 %v3561
    %v3698 = vunpack.c.l.b16 %v3562
    %v3699 = vunpack.c.l.b16 %v3563
    %v3700 = vunpack.c.l.b16 %v3564
    %v3701 = vunpack.c.l.b16 %v3565
    %v3702 = vunpack.c.l.b16 %v3566
    %v3703 = vunpack.c.l.b16 %v3567
    %v3704 = vunpack.c.l.b16 %v3568
    %v3705 = vunpack.c.l.b16 %v3569
    %v3706 = vpack.c.b16 %v3643, %v3642
    %v3707 = vpack.c.b16 %v3645, %v3644
    %v3708 = vpack.c.b16 %v3647, %v3646
    %v3709 = vpack.c.b16 %v3649, %v3648
    %v3710 = vpack.c.b16 %v3651, %v3650
    %v3711 = vpack.c.b16 %v3653, %v3652
    %v3712 = vpack.c.b16 %v3655, %v3654
    %v3713 = vpack.c.b16 %v3657, %v3656
    %v3714 = vpack.c.b16 %v3659, %v3658
    %v3715 = vpack.c.b16 %v3661, %v3660
    %v3716 = vpack.c.b16 %v3663, %v3662
    %v3717 = vpack.c.b16 %v3665, %v3664
    %v3718 = vpack.c.b16 %v3667, %v3666
    %v3719 = vpack.c.b16 %v3669, %v3668
    %v3720 = vpack.c.b16 %v3671, %v3670
    %v3721 = vpack.c.b16 %v3673, %v3672
    %v3722 = vpack.c.b16 %v3675, %v3674
    %v3723 = vpack.c.b16 %v3677, %v3676
    %v3724 = vpack.c.b16 %v3679, %v3678
    %v3725 = vpack.c.b16 %v3681, %v3680
    %v3726 = vpack.c.b16 %v3683, %v3682
    %v3727 = vpack.c.b16 %v3685, %v3684
    %v3728 = vpack.c.b16 %v3687, %v3686
    %v3729 = vpack.c.b16 %v3689, %v3688
    %v3730 = vpack.c.b16 %v3691, %v3690
    %v3731 = vpack.c.b16 %v3693, %v3692
    %v3732 = vpack.c.b16 %v3695, %v3694
    %v3733 = vpack.c.b16 %v3697, %v3696
    %v3734 = vpack.c.b16 %v3699, %v3698
    %v3735 = vpack.c.b16 %v3701, %v3700
    %v3736 = vpack.c.b16 %v3703, %v3702
    %v3737 = vpack.c.b16 %v3705, %v3704
    %3770 = vmatprep.subr.bf16.mxu0 0
    %3771 = vmatpush1.bf16.msra.mxu0 %v3706
    %3772 = vmatprep.subr.bf16.mxu0 0
    %3773 = vmatpush1.bf16.msra.mxu0 %v3707
    %3774 = vmatprep.subr.bf16.mxu0 0
    %3775 = vmatpush1.bf16.msra.mxu0 %v3708
    %3776 = vmatprep.subr.bf16.mxu0 0
    %3777 = vmatpush1.bf16.msra.mxu0 %v3709
    %3778 = vmatprep.subr.bf16.mxu0 0
    %3779 = vmatpush1.bf16.msra.mxu0 %v3710
    %3780 = vmatprep.subr.bf16.mxu0 0
    %3781 = vmatpush1.bf16.msra.mxu0 %v3711
    %3782 = vmatprep.subr.bf16.mxu0 0
    %3783 = vmatpush1.bf16.msra.mxu0 %v3712
    %3784 = vmatprep.subr.bf16.mxu0 0
    %3785 = vmatpush1.bf16.msra.mxu0 %v3713
    %3786 = vmatprep.subr.bf16.mxu0 0
    %3787 = vmatpush1.bf16.msra.mxu0 %v3714
    %3788 = vmatprep.subr.bf16.mxu0 0
    %3789 = vmatpush1.bf16.msra.mxu0 %v3715
    %3790 = vmatprep.subr.bf16.mxu0 0
    %3791 = vmatpush1.bf16.msra.mxu0 %v3716
    %3792 = vmatprep.subr.bf16.mxu0 0
    %3793 = vmatpush1.bf16.msra.mxu0 %v3717
    %3794 = vmatprep.subr.bf16.mxu0 0
    %3795 = vmatpush1.bf16.msra.mxu0 %v3718
    %3796 = vmatprep.subr.bf16.mxu0 0
    %3797 = vmatpush1.bf16.msra.mxu0 %v3719
    %3798 = vmatprep.subr.bf16.mxu0 0
    %3799 = vmatpush1.bf16.msra.mxu0 %v3720
    %3800 = vmatprep.subr.bf16.mxu0 0
    %3801 = vmatpush1.bf16.msra.mxu0 %v3721
    %3802 = vmatprep.mubr.bf16.mxu0 %v3502
    %3803 = vmatmul.mubr.bf16.gmra.mrb[0].mxu0 %v3501
    %v3804 = vpop.f32.mrb[0].mxu0
    %v3805 = vadd.f32 %v3576, %v3804
    %v3806 = vpop.f32.mrb[0].mxu0
    %v3807 = vpop.f32.mrb[0].mxu0
    %v3808 = vadd.f32 %v3576, %v3807
    %v3809 = vpop.f32.mrb[0].mxu0
    %3810 = vdwg.mxu0
    %3811 = vmatprep.subr.bf16.mxu0 0
    %3812 = vmatpush1.bf16.msra.mxu0 %v3722
    %3813 = vmatprep.subr.bf16.mxu0 0
    %3814 = vmatpush1.bf16.msra.mxu0 %v3723
    %3815 = vmatprep.subr.bf16.mxu0 0
    %3816 = vmatpush1.bf16.msra.mxu0 %v3724
    %3817 = vmatprep.subr.bf16.mxu0 0
    %3818 = vmatpush1.bf16.msra.mxu0 %v3725
    %3819 = vmatprep.subr.bf16.mxu0 0
    %3820 = vmatpush1.bf16.msra.mxu0 %v3726
    %3821 = vmatprep.subr.bf16.mxu0 0
    %3822 = vmatpush1.bf16.msra.mxu0 %v3727
    %3823 = vmatprep.subr.bf16.mxu0 0
    %3824 = vmatpush1.bf16.msra.mxu0 %v3728
    %3825 = vmatprep.subr.bf16.mxu0 0
    %3826 = vmatpush1.bf16.msra.mxu0 %v3729
    %3827 = vmatprep.subr.bf16.mxu0 0
    %3828 = vmatpush1.bf16.msra.mxu0 %v3730
    %3829 = vmatprep.subr.bf16.mxu0 0
    %3830 = vmatpush1.bf16.msra.mxu0 %v3731
    %3831 = vmatprep.subr.bf16.mxu0 0
    %3832 = vmatpush1.bf16.msra.mxu0 %v3732
    %3833 = vmatprep.subr.bf16.mxu0 0
    %3834 = vmatpush1.bf16.msra.mxu0 %v3733
    %3835 = vmatprep.subr.bf16.mxu0 0
    %3836 = vmatpush1.bf16.msra.mxu0 %v3734
    %3837 = vmatprep.subr.bf16.mxu0 0
    %3838 = vmatpush1.bf16.msra.mxu0 %v3735
    %3839 = vmatprep.subr.bf16.mxu0 0
    %3840 = vmatpush1.bf16.msra.mxu0 %v3736
    %3841 = vmatprep.subr.bf16.mxu0 0
    %3842 = vmatpush1.bf16.msra.mxu0 %v3737
    %3843 = vmatprep.mubr.bf16.mxu0 %v3504
    %3844 = vmatmul.mubr.bf16.gmra.mrb[0].mxu0 %v3503
    %v3845 = vpop.f32.mrb[0].mxu0
    %v3846 = vadd.f32 %v3805, %v3845
    %v3847 = vpop.f32.mrb[0].mxu0
    %v3848 = vpop.f32.mrb[0].mxu0
    %v3849 = vadd.f32 %v3808, %v3848
    %v3850 = vpop.f32.mrb[0].mxu0
    %3851 = vdwg.mxu0
    %v3852 = vld [vmem:[%s13] sm:$0xff]
    %v3853 = vld [vmem:[%s13 + $0x8] sm:$0xff]
    %v3854 = vadd.f32 %v3846, %v3852
    %v3855 = vadd.f32 %v3849, %v3853
    %3856 = vst [vmem:[#allocation14] sm:$0xff] %v3854
    %3857 = vst [vmem:[#allocation14 + $0x8] sm:$0xff] %v3855
    // Predicated region
    $region82: #{tpu_custom_call.1} parent=1 // pred_check
      _
    $region83: #{tpu_custom_call.1} parent=1 // pred_check_branch
      %3859 = sbr.rel (0) target = $region85
    $region84: #{tpu_custom_call.1} parent=1 // pred_region
      %s3861 = ssub.s32 512, 512
      %3862 = vsyncadd [#allocation4], %s3861
      %s3863 = sshll.u32 [#allocation13], 4
      %s3864 = int_to_ptr.vmem [resolvable:$true] %s3863
      %3869 = dma.vmem_to_hbm [thread:$0]  %s3864, 512, %s14, [#allocation4], 128, 128, 8
    $region85: #{tpu_custom_call.1} parent=1 // pred_fallthru
      _
    // Predicated region
    $region86: #{tpu_custom_call.1} parent=1 // pred_check
      _
    $region87: #{tpu_custom_call.1} parent=1 // pred_check_branch
      %3871 = sbr.rel (0) target = $region89
    $region88: #{tpu_custom_call.1} parent=1 // pred_region
      %s3873 = ssub.s32 256, 256
      %3874 = vsyncadd [#allocation15], %s3873
      %s3875 = sshll.u32 [#allocation14], 4
      %s3876 = int_to_ptr.vmem [resolvable:$true] %s3875
      %3881 = dma.vmem_to_hbm [thread:$0]  %s3876, 256, %s15, [#allocation15], 128, 128, 8
    $region89: #{tpu_custom_call.1} parent=1 // pred_fallthru
      _
    // Predicated region
    $region90: #{tpu_custom_call.1} parent=1 // pred_check
      _
    $region91: #{tpu_custom_call.1} parent=1 // pred_check_branch
      %3883 = sbr.rel (0) target = $region93
    $region92: #{tpu_custom_call.1} parent=1 // pred_region
      %3884 = dma.done [#allocation4], 512
    $region93: #{tpu_custom_call.1} parent=1 // pred_fallthru
      _
    // Predicated region
    $region94: #{tpu_custom_call.1} parent=1 // pred_check
      _
    $region95: #{tpu_custom_call.1} parent=1 // pred_check_branch
      %3886 = sbr.rel (0) target = $region97
    $region96: #{tpu_custom_call.1} parent=1 // pred_region
      %3887 = dma.done [#allocation15], 256
    $region97: #{tpu_custom_call.1} parent=1 // pred_fallthru
      _
    %3888 = vsyncpa [#allocation3], 1
    %3889 = vsyncpa [#allocation6], 1
    %3890 = vsyncpa [#allocation9], 1
    %3891 = vsyncpa [#allocation12], 1
    %3892 = vsyncpa [#allocation4], 1
    %3893 = vsyncpa [#allocation15], 1

</llo_original>
